<compile_context>
chip_gen: v7x
topology: tpu7x:2x2x1
jax: 0.10.0
libtpu: 0.0.40
codegen_flags: <defaults>
</compile_context>

<pallas_src>
import functools

import jax
import jax.numpy as jnp
from jax import lax
from jax.experimental import pallas as pl
from jax.experimental.pallas import tpu as pltpu


LANE = 128


def _round_up(x, m):
    return ((x + m - 1) // m) * m


# ----------------------------------------------------------------------------
# Fused kernel: all layers + FC head, recurrence as an in-kernel fori_loop.
# ----------------------------------------------------------------------------
def _make_fused_kernel(seq, b_pad, hl, num_layers):
    """hl = lane-padded hidden width (multiple of 128); gate order is (i,f,o,g)."""
    unroll = seq if seq <= 16 else 4  # bound vreg live ranges at long sequences

    def kernel(*args):
        # args: x_flat, (w_ih_t, w_hh_t, bias) * L, fc_w_t, fc_b, out, scratch...
        x_ref = args[0]
        lw = args[1:1 + 3 * num_layers]
        fc_w_ref = args[1 + 3 * num_layers]
        fc_b_ref = args[2 + 3 * num_layers]
        out_ref = args[3 + 3 * num_layers]
        seq_sc, proj_sc, h_sc, c_sc = args[4 + 3 * num_layers:]

        for layer in range(num_layers):
            w_ih = lw[3 * layer][...]          # (D_in or hl, 4*hl)
            w_hh = lw[3 * layer + 1][...]      # (hl, 4*hl)
            bias = lw[3 * layer + 2][...]      # (1, 4*hl)

            # ---- hoisted input projection: one big MXU matmul per layer ----
            xin = x_ref[...] if layer == 0 else seq_sc[...]     # (S*Bp, D_in|hl)
            proj_sc[...] = (
                jnp.dot(xin, w_ih, preferred_element_type=jnp.float32) + bias
            )

            h_sc[...] = jnp.zeros_like(h_sc)
            c_sc[...] = jnp.zeros_like(c_sc)

            write_seq = layer < num_layers - 1  # last layer: only h_last needed

            def step(t, carry, w_hh=w_hh, write_seq=write_seq):
                row = pl.multiple_of(t * b_pad, b_pad)
                gates = proj_sc[pl.ds(row, b_pad), :] + jnp.dot(
                    h_sc[...], w_hh, preferred_element_type=jnp.float32
                )                                            # (Bp, 4*hl)
                # gate blocks are 128-lane aligned: pure block slices, no XLU.
                sig = jax.nn.sigmoid(gates[:, : 3 * hl])     # one EUP slab
                i_g = sig[:, 0 * hl:1 * hl]
                f_g = sig[:, 1 * hl:2 * hl]
                o_g = sig[:, 2 * hl:3 * hl]
                g_g = jnp.tanh(gates[:, 3 * hl:4 * hl])
                c_new = f_g * c_sc[...] + i_g * g_g
                h_new = o_g * jnp.tanh(c_new)
                c_sc[...] = c_new
                h_sc[...] = h_new
                if write_seq:
                    seq_sc[pl.ds(row, b_pad), :] = h_new
                return carry

            lax.fori_loop(0, seq, step, 0, unroll=unroll)

        # ---- FC head on the last hidden state: single lane-dense HBM write ----
        out_ref[...] = (
            jnp.dot(h_sc[...], fc_w_ref[...], preferred_element_type=jnp.float32)
            + fc_b_ref[...]
        ).astype(out_ref.dtype)

    return kernel


def _vmem_bytes_estimate(seq, b_pad, d_in, hl, ol, num_layers):
    f32 = 4
    total = seq * b_pad * d_in * f32                 # x_flat
    total += seq * b_pad * 4 * hl * f32              # proj_sc
    total += seq * b_pad * hl * f32                  # seq_sc
    total += 2 * b_pad * hl * f32                    # h, c
    for layer in range(num_layers):
        din = d_in if layer == 0 else hl
        total += (din * 4 * hl + hl * 4 * hl + 4 * hl) * f32
    total += (hl * ol + ol + b_pad * ol) * f32       # fc + out
    return total


def fused_lstm_fc(x_flat, layer_params, fc_w_t, fc_b, *, seq, b_pad, hl, ol,
                  num_layers, vmem_limit_bytes):
    kernel = _make_fused_kernel(seq, b_pad, hl, num_layers)

    in_arrays = [x_flat]
    in_specs = [pl.BlockSpec(x_flat.shape, lambda: (0, 0))]
    for lp in layer_params:
        for name in ("w_ih_t", "w_hh_t", "bias"):
            a = lp[name]
            in_arrays.append(a)
            in_specs.append(pl.BlockSpec(a.shape, lambda: (0, 0)))
    in_arrays += [fc_w_t, fc_b]
    in_specs += [
        pl.BlockSpec(fc_w_t.shape, lambda: (0, 0)),
        pl.BlockSpec(fc_b.shape, lambda: (0, 0)),
    ]

    return pl.pallas_call(
        kernel,
        out_shape=jax.ShapeDtypeStruct((b_pad, ol), jnp.float32),
        in_specs=in_specs,
        out_specs=pl.BlockSpec((b_pad, ol), lambda: (0, 0)),
        scratch_shapes=[
            pltpu.VMEM((seq * b_pad, hl), jnp.float32),      # layer output seq
            pltpu.VMEM((seq * b_pad, 4 * hl), jnp.float32),  # input projection
            pltpu.VMEM((b_pad, hl), jnp.float32),            # h state
            pltpu.VMEM((b_pad, hl), jnp.float32),            # c state
        ],
        compiler_params=pltpu.CompilerParams(vmem_limit_bytes=vmem_limit_bytes),
    )(*in_arrays)


# ----------------------------------------------------------------------------
# Parameters: PyTorch-style raw params + kernel packing (gate reorder + lane pad).
# ----------------------------------------------------------------------------
def init_params(key, input_dim, hidden_dim, num_layers, output_dim):
    """PyTorch-style uniform(-k, k), k = 1/sqrt(hidden_dim). Gate order (i,f,g,o)."""
    k = 1.0 / jnp.sqrt(jnp.float32(hidden_dim))
    layers = []
    for layer in range(num_layers):
        d_in = input_dim if layer == 0 else hidden_dim
        key, k1, k2, k3, k4 = jax.random.split(key, 5)
        layers.append(dict(
            w_ih=jax.random.uniform(k1, (4 * hidden_dim, d_in), jnp.float32, -k, k),
            w_hh=jax.random.uniform(k2, (4 * hidden_dim, hidden_dim), jnp.float32, -k, k),
            b_ih=jax.random.uniform(k3, (4 * hidden_dim,), jnp.float32, -k, k),
            b_hh=jax.random.uniform(k4, (4 * hidden_dim,), jnp.float32, -k, k),
        ))
    key, k5, k6 = jax.random.split(key, 3)
    fc_w = jax.random.uniform(k5, (output_dim, hidden_dim), jnp.float32, -k, k)
    fc_b = jax.random.uniform(k6, (output_dim,), jnp.float32, -k, k)
    return dict(layers=layers, fc_w=fc_w, fc_b=fc_b)


def _reorder_ifgo_to_ifog(a, hidden):
    """Reorder leading-axis gate blocks from (i,f,g,o) to (i,f,o,g)."""
    i = a[0 * hidden:1 * hidden]
    f = a[1 * hidden:2 * hidden]
    g = a[2 * hidden:3 * hidden]
    o = a[3 * hidden:4 * hidden]
    return jnp.concatenate([i, f, o, g], axis=0)


def pack_params(raw, hidden_dim):
    """Gate reorder to (i,f,o,g), bias fold, and 128-lane gate/row zero-padding."""
    hl = _round_up(hidden_dim, LANE)
    output_dim = raw["fc_w"].shape[0]
    ol = _round_up(output_dim, LANE)

    def gate_pad(a2d):
        # (rows, 4H) -> (rows, 4*hl): each gate gets its own full 128-lane block.
        rows = a2d.shape[0]
        g = a2d.reshape(rows, 4, hidden_dim)
        gp = jnp.zeros((rows, 4, hl), jnp.float32).at[:, :, :hidden_dim].set(g)
        return gp.reshape(rows, 4 * hl)

    def row_pad(a2d, rows_to):
        out = jnp.zeros((rows_to, a2d.shape[1]), jnp.float32)
        return out.at[:a2d.shape[0], :].set(a2d)

    packed = {"layers": []}
    for li, lp in enumerate(raw["layers"]):
        w_ih = gate_pad(_reorder_ifgo_to_ifog(lp["w_ih"], hidden_dim).T)
        if li > 0:
            w_ih = row_pad(w_ih, hl)          # layer input is lane-padded h-seq
        w_hh = row_pad(gate_pad(_reorder_ifgo_to_ifog(lp["w_hh"], hidden_dim).T), hl)
        bias = gate_pad(
            _reorder_ifgo_to_ifog(lp["b_ih"] + lp["b_hh"], hidden_dim)[None, :])
        packed["layers"].append(dict(w_ih_t=w_ih, w_hh_t=w_hh, bias=bias))

    fc_w_t = jnp.zeros((hidden_dim, ol), jnp.float32).at[:, :output_dim].set(raw["fc_w"].T)
    packed["fc_w_t"] = row_pad(fc_w_t, hl)                    # (hl, ol)
    packed["fc_b"] = jnp.zeros((1, ol), jnp.float32).at[0, :output_dim].set(raw["fc_b"])
    return packed


# ----------------------------------------------------------------------------
# Full forward (matches the PyTorch LSTM module's forward()).
# ----------------------------------------------------------------------------
@functools.partial(jax.jit, static_argnames=("out_dim",))
def lstm_forward(packed, x, *, out_dim):
    """x: (B, S, input_dim) batch_first; returns (B, out_dim)."""
    B, S, D = x.shape
    num_layers = len(packed["layers"])
    hl = packed["fc_w_t"].shape[0]            # lane-padded hidden
    ol = packed["fc_w_t"].shape[1]            # lane-padded output
    b_pad = max(8, _round_up(B, 8))           # pad batch to sublane multiple

    # time-major + single zero-pad on the batch axis (one copy, no zeros+set).
    x_tm = jnp.transpose(x, (1, 0, 2))        # (S, B, D)
    if b_pad != B:
        x_tm = jnp.pad(x_tm, ((0, 0), (0, b_pad - B), (0, 0)))
    x_flat = x_tm.reshape(S * b_pad, D)       # (S*Bp, D)

    est = _vmem_bytes_estimate(S, b_pad, D, hl, ol, num_layers)
    vmem_limit = int(min(64 << 20, max(2 * est + (2 << 20), 16 << 20)))

    out = fused_lstm_fc(
        x_flat, packed["layers"], packed["fc_w_t"], packed["fc_b"],
        seq=S, b_pad=b_pad, hl=hl, ol=ol, num_layers=num_layers,
        vmem_limit_bytes=vmem_limit,
    )
    return out[:B, :out_dim]


# ----------------------------------------------------------------------------
# Plain-JAX reference (PyTorch semantics, gate order i,f,g,o) for sanity check.
# ----------------------------------------------------------------------------
def lstm_forward_ref(raw, x):
    B = x.shape[0]
    h_seq = jnp.transpose(x, (1, 0, 2))
    for lp in raw["layers"]:
        H = lp["w_hh"].shape[1]
        wi, wh = lp["w_ih"].T, lp["w_hh"].T
        b = (lp["b_ih"] + lp["b_hh"])[None, :]
        h = jnp.zeros((B, H), jnp.float32)
        c = jnp.zeros((B, H), jnp.float32)
        outs = []
        for t in range(h_seq.shape[0]):
            gates = h_seq[t] @ wi + h @ wh + b
            i_g = jax.nn.sigmoid(gates[:, 0 * H:1 * H])
            f_g = jax.nn.sigmoid(gates[:, 1 * H:2 * H])
            g_g = jnp.tanh(gates[:, 2 * H:3 * H])
            o_g = jax.nn.sigmoid(gates[:, 3 * H:4 * H])
            c = f_g * c + i_g * g_g
            h = o_g * jnp.tanh(c)
            outs.append(h)
        h_seq = jnp.stack(outs, axis=0)
    return h_seq[-1] @ raw["fc_w"].T + raw["fc_b"][None, :]


if __name__ == "__main__":
    batch, seq, input_dim, hidden_dim, num_layers, output_dim = 2, 8, 16, 32, 2, 4

    key = jax.random.PRNGKey(0)
    key, kx = jax.random.split(key)
    x = jax.random.normal(kx, (batch, seq, input_dim), jnp.float32)

    raw_params = init_params(key, input_dim, hidden_dim, num_layers, output_dim)
    packed_params = pack_params(raw_params, hidden_dim)

    out = lstm_forward(packed_params, x, out_dim=output_dim)
    out = jax.block_until_ready(out)

    ref = lstm_forward_ref(raw_params, x)
    assert out.shape == (batch, output_dim)
    assert jnp.allclose(out, ref, atol=2e-5, rtol=2e-5), "mismatch vs reference"

    print("KERNEL_OK")
</pallas_src>

<mosaic_0001>
module attributes {stable_mosaic.version = 11 : i64} {
  func.func @kernel(%arg0: memref<64x16xf32, #tpu.memory_space<vmem>>, %arg1: memref<16x512xf32, #tpu.memory_space<vmem>>, %arg2: memref<128x512xf32, #tpu.memory_space<vmem>>, %arg3: memref<1x512xf32, #tpu.memory_space<vmem>>, %arg4: memref<128x512xf32, #tpu.memory_space<vmem>>, %arg5: memref<128x512xf32, #tpu.memory_space<vmem>>, %arg6: memref<1x512xf32, #tpu.memory_space<vmem>>, %arg7: memref<128x128xf32, #tpu.memory_space<vmem>>, %arg8: memref<1x128xf32, #tpu.memory_space<vmem>>, %arg9: memref<8x128xf32, #tpu.memory_space<vmem>>, %arg10: memref<64x128xf32, #tpu.memory_space<vmem>>, %arg11: memref<64x512xf32, #tpu.memory_space<vmem>>, %arg12: memref<8x128xf32, #tpu.memory_space<vmem>>, %arg13: memref<8x128xf32, #tpu.memory_space<vmem>>) attributes {dimension_semantics = [], scalar_prefetch = 0 : i64, scratch_operands = 4 : i64, tpu.core_type = #tpu.core_type<tc>} {
    %c0 = arith.constant 0 : index
    %c0_0 = arith.constant 0 : index
    %0 = vector.load %arg1[%c0, %c0_0] : memref<16x512xf32, #tpu.memory_space<vmem>>, vector<16x512xf32>
    %c0_1 = arith.constant 0 : index
    %c0_2 = arith.constant 0 : index
    %1 = vector.load %arg2[%c0_1, %c0_2] : memref<128x512xf32, #tpu.memory_space<vmem>>, vector<128x512xf32>
    %c0_3 = arith.constant 0 : index
    %c0_4 = arith.constant 0 : index
    %2 = vector.load %arg3[%c0_3, %c0_4] : memref<1x512xf32, #tpu.memory_space<vmem>>, vector<1x512xf32>
    %c0_5 = arith.constant 0 : index
    %c0_6 = arith.constant 0 : index
    %3 = vector.load %arg0[%c0_5, %c0_6] : memref<64x16xf32, #tpu.memory_space<vmem>>, vector<64x16xf32>
    %cst = arith.constant dense<0.000000e+00> : vector<64x512xf32>
    %4 = tpu.matmul %3, %0, %cst {dimension_numbers = #tpu.dot_dimension_numbers<[1], [0], [0], [1], [0, 0, 1, 1], [], []>} : vector<64x16xf32>, vector<16x512xf32>, vector<64x512xf32> -> vector<64x512xf32>
    %5 = vector.broadcast %2 : vector<1x512xf32> to vector<64x512xf32>
    %6 = arith.addf %4, %5 : vector<64x512xf32>
    %c0_7 = arith.constant 0 : index
    %c0_8 = arith.constant 0 : index
    %7 = vector.load %arg11[%c0_7, %c0_8] : memref<64x512xf32, #tpu.memory_space<vmem>>, vector<64x512xf32>
    tpu.vector_store %arg11[%c0_7, %c0_8], %6 {strides = array<i32>} : memref<64x512xf32, #tpu.memory_space<vmem>>, vector<64x512xf32>,
    %cst_9 = arith.constant 0.000000e+00 : f32
    %8 = vector.broadcast %cst_9 : f32 to vector<8x128xf32>
    %c0_10 = arith.constant 0 : index
    %c0_11 = arith.constant 0 : index
    %9 = vector.load %arg12[%c0_10, %c0_11] : memref<8x128xf32, #tpu.memory_space<vmem>>, vector<8x128xf32>
    tpu.vector_store %arg12[%c0_10, %c0_11], %8 {strides = array<i32>} : memref<8x128xf32, #tpu.memory_space<vmem>>, vector<8x128xf32>,
    %cst_12 = arith.constant 0.000000e+00 : f32
    %10 = vector.broadcast %cst_12 : f32 to vector<8x128xf32>
    %c0_13 = arith.constant 0 : index
    %c0_14 = arith.constant 0 : index
    %11 = vector.load %arg13[%c0_13, %c0_14] : memref<8x128xf32, #tpu.memory_space<vmem>>, vector<8x128xf32>
    tpu.vector_store %arg13[%c0_13, %c0_14], %10 {strides = array<i32>} : memref<8x128xf32, #tpu.memory_space<vmem>>, vector<8x128xf32>,
    %c0_i32 = arith.constant 0 : i32
    %c8_i32 = arith.constant 8 : i32
    %12 = arith.muli %c0_i32, %c8_i32 : i32
    %13 = tpu.assume_multiple %12, 8 : i32
    %14 = arith.index_cast %13 : i32 to index
    %c0_15 = arith.constant 0 : index
    %15 = vector.load %arg11[%14, %c0_15] : memref<64x512xf32, #tpu.memory_space<vmem>>, vector<8x512xf32>
    %c0_16 = arith.constant 0 : index
    %c0_17 = arith.constant 0 : index
    %16 = vector.load %arg12[%c0_16, %c0_17] : memref<8x128xf32, #tpu.memory_space<vmem>>, vector<8x128xf32>
    %cst_18 = arith.constant dense<0.000000e+00> : vector<8x512xf32>
    %17 = tpu.matmul %16, %1, %cst_18 {dimension_numbers = #tpu.dot_dimension_numbers<[1], [0], [0], [1], [0, 0, 1, 1], [], []>} : vector<8x128xf32>, vector<128x512xf32>, vector<8x512xf32> -> vector<8x512xf32>
    %18 = arith.addf %15, %17 : vector<8x512xf32>
    %19 = vector.extract_strided_slice %18 {offsets = [0, 0], sizes = [8, 384], strides = [1, 1]} : vector<8x512xf32> to vector<8x384xf32>
    %20 = arith.negf %19 : vector<8x384xf32>
    %21 = math.exp %20 : vector<8x384xf32>
    %cst_19 = arith.constant 1.000000e+00 : f32
    %22 = vector.broadcast %cst_19 : f32 to vector<8x384xf32>
    %23 = arith.addf %22, %21 : vector<8x384xf32>
    %24 = arith.divf %22, %23 : vector<8x384xf32>
    %25 = vector.extract_strided_slice %24 {offsets = [0, 0], sizes = [8, 128], strides = [1, 1]} : vector<8x384xf32> to vector<8x128xf32>
    %26 = vector.extract_strided_slice %24 {offsets = [0, 128], sizes = [8, 128], strides = [1, 1]} : vector<8x384xf32> to vector<8x128xf32>
    %27 = vector.extract_strided_slice %24 {offsets = [0, 256], sizes = [8, 128], strides = [1, 1]} : vector<8x384xf32> to vector<8x128xf32>
    %28 = vector.extract_strided_slice %18 {offsets = [0, 384], sizes = [8, 128], strides = [1, 1]} : vector<8x512xf32> to vector<8x128xf32>
    %29 = math.tanh %28 : vector<8x128xf32>
    %c0_20 = arith.constant 0 : index
    %c0_21 = arith.constant 0 : index
    %30 = vector.load %arg13[%c0_20, %c0_21] : memref<8x128xf32, #tpu.memory_space<vmem>>, vector<8x128xf32>
    %31 = arith.mulf %26, %30 : vector<8x128xf32>
    %32 = arith.mulf %25, %29 : vector<8x128xf32>
    %33 = arith.addf %31, %32 : vector<8x128xf32>
    %34 = math.tanh %33 : vector<8x128xf32>
    %35 = arith.mulf %27, %34 : vector<8x128xf32>
    %c0_22 = arith.constant 0 : index
    %c0_23 = arith.constant 0 : index
    %36 = vector.load %arg13[%c0_22, %c0_23] : memref<8x128xf32, #tpu.memory_space<vmem>>, vector<8x128xf32>
    tpu.vector_store %arg13[%c0_22, %c0_23], %33 {strides = array<i32>} : memref<8x128xf32, #tpu.memory_space<vmem>>, vector<8x128xf32>,
    %c0_24 = arith.constant 0 : index
    %c0_25 = arith.constant 0 : index
    %37 = vector.load %arg12[%c0_24, %c0_25] : memref<8x128xf32, #tpu.memory_space<vmem>>, vector<8x128xf32>
    tpu.vector_store %arg12[%c0_24, %c0_25], %35 {strides = array<i32>} : memref<8x128xf32, #tpu.memory_space<vmem>>, vector<8x128xf32>,
    %38 = arith.index_cast %13 : i32 to index
    %c0_26 = arith.constant 0 : index
    %39 = vector.load %arg10[%38, %c0_26] : memref<64x128xf32, #tpu.memory_space<vmem>>, vector<8x128xf32>
    tpu.vector_store %arg10[%38, %c0_26], %35 {strides = array<i32>} : memref<64x128xf32, #tpu.memory_space<vmem>>, vector<8x128xf32>,
    %c1_i32 = arith.constant 1 : i32
    %c8_i32_27 = arith.constant 8 : i32
    %40 = arith.muli %c1_i32, %c8_i32_27 : i32
    %41 = tpu.assume_multiple %40, 8 : i32
    %42 = arith.index_cast %41 : i32 to index
    %c0_28 = arith.constant 0 : index
    %43 = vector.load %arg11[%42, %c0_28] : memref<64x512xf32, #tpu.memory_space<vmem>>, vector<8x512xf32>
    %c0_29 = arith.constant 0 : index
    %c0_30 = arith.constant 0 : index
    %44 = vector.load %arg12[%c0_29, %c0_30] : memref<8x128xf32, #tpu.memory_space<vmem>>, vector<8x128xf32>
    %cst_31 = arith.constant dense<0.000000e+00> : vector<8x512xf32>
    %45 = tpu.matmul %44, %1, %cst_31 {dimension_numbers = #tpu.dot_dimension_numbers<[1], [0], [0], [1], [0, 0, 1, 1], [], []>} : vector<8x128xf32>, vector<128x512xf32>, vector<8x512xf32> -> vector<8x512xf32>
    %46 = arith.addf %43, %45 : vector<8x512xf32>
    %47 = vector.extract_strided_slice %46 {offsets = [0, 0], sizes = [8, 384], strides = [1, 1]} : vector<8x512xf32> to vector<8x384xf32>
    %48 = arith.negf %47 : vector<8x384xf32>
    %49 = math.exp %48 : vector<8x384xf32>
    %cst_32 = arith.constant 1.000000e+00 : f32
    %50 = vector.broadcast %cst_32 : f32 to vector<8x384xf32>
    %51 = arith.addf %50, %49 : vector<8x384xf32>
    %52 = arith.divf %50, %51 : vector<8x384xf32>
    %53 = vector.extract_strided_slice %52 {offsets = [0, 0], sizes = [8, 128], strides = [1, 1]} : vector<8x384xf32> to vector<8x128xf32>
    %54 = vector.extract_strided_slice %52 {offsets = [0, 128], sizes = [8, 128], strides = [1, 1]} : vector<8x384xf32> to vector<8x128xf32>
    %55 = vector.extract_strided_slice %52 {offsets = [0, 256], sizes = [8, 128], strides = [1, 1]} : vector<8x384xf32> to vector<8x128xf32>
    %56 = vector.extract_strided_slice %46 {offsets = [0, 384], sizes = [8, 128], strides = [1, 1]} : vector<8x512xf32> to vector<8x128xf32>
    %57 = math.tanh %56 : vector<8x128xf32>
    %c0_33 = arith.constant 0 : index
    %c0_34 = arith.constant 0 : index
    %58 = vector.load %arg13[%c0_33, %c0_34] : memref<8x128xf32, #tpu.memory_space<vmem>>, vector<8x128xf32>
    %59 = arith.mulf %54, %58 : vector<8x128xf32>
    %60 = arith.mulf %53, %57 : vector<8x128xf32>
    %61 = arith.addf %59, %60 : vector<8x128xf32>
    %62 = math.tanh %61 : vector<8x128xf32>
    %63 = arith.mulf %55, %62 : vector<8x128xf32>
    %c0_35 = arith.constant 0 : index
    %c0_36 = arith.constant 0 : index
    %64 = vector.load %arg13[%c0_35, %c0_36] : memref<8x128xf32, #tpu.memory_space<vmem>>, vector<8x128xf32>
    tpu.vector_store %arg13[%c0_35, %c0_36], %61 {strides = array<i32>} : memref<8x128xf32, #tpu.memory_space<vmem>>, vector<8x128xf32>,
    %c0_37 = arith.constant 0 : index
    %c0_38 = arith.constant 0 : index
    %65 = vector.load %arg12[%c0_37, %c0_38] : memref<8x128xf32, #tpu.memory_space<vmem>>, vector<8x128xf32>
    tpu.vector_store %arg12[%c0_37, %c0_38], %63 {strides = array<i32>} : memref<8x128xf32, #tpu.memory_space<vmem>>, vector<8x128xf32>,
    %66 = arith.index_cast %41 : i32 to index
    %c0_39 = arith.constant 0 : index
    %67 = vector.load %arg10[%66, %c0_39] : memref<64x128xf32, #tpu.memory_space<vmem>>, vector<8x128xf32>
    tpu.vector_store %arg10[%66, %c0_39], %63 {strides = array<i32>} : memref<64x128xf32, #tpu.memory_space<vmem>>, vector<8x128xf32>,
    %c2_i32 = arith.constant 2 : i32
    %c8_i32_40 = arith.constant 8 : i32
    %68 = arith.muli %c2_i32, %c8_i32_40 : i32
    %69 = tpu.assume_multiple %68, 8 : i32
    %70 = arith.index_cast %69 : i32 to index
    %c0_41 = arith.constant 0 : index
    %71 = vector.load %arg11[%70, %c0_41] : memref<64x512xf32, #tpu.memory_space<vmem>>, vector<8x512xf32>
    %c0_42 = arith.constant 0 : index
    %c0_43 = arith.constant 0 : index
    %72 = vector.load %arg12[%c0_42, %c0_43] : memref<8x128xf32, #tpu.memory_space<vmem>>, vector<8x128xf32>
    %cst_44 = arith.constant dense<0.000000e+00> : vector<8x512xf32>
    %73 = tpu.matmul %72, %1, %cst_44 {dimension_numbers = #tpu.dot_dimension_numbers<[1], [0], [0], [1], [0, 0, 1, 1], [], []>} : vector<8x128xf32>, vector<128x512xf32>, vector<8x512xf32> -> vector<8x512xf32>
    %74 = arith.addf %71, %73 : vector<8x512xf32>
    %75 = vector.extract_strided_slice %74 {offsets = [0, 0], sizes = [8, 384], strides = [1, 1]} : vector<8x512xf32> to vector<8x384xf32>
    %76 = arith.negf %75 : vector<8x384xf32>
    %77 = math.exp %76 : vector<8x384xf32>
    %cst_45 = arith.constant 1.000000e+00 : f32
    %78 = vector.broadcast %cst_45 : f32 to vector<8x384xf32>
    %79 = arith.addf %78, %77 : vector<8x384xf32>
    %80 = arith.divf %78, %79 : vector<8x384xf32>
    %81 = vector.extract_strided_slice %80 {offsets = [0, 0], sizes = [8, 128], strides = [1, 1]} : vector<8x384xf32> to vector<8x128xf32>
    %82 = vector.extract_strided_slice %80 {offsets = [0, 128], sizes = [8, 128], strides = [1, 1]} : vector<8x384xf32> to vector<8x128xf32>
    %83 = vector.extract_strided_slice %80 {offsets = [0, 256], sizes = [8, 128], strides = [1, 1]} : vector<8x384xf32> to vector<8x128xf32>
    %84 = vector.extract_strided_slice %74 {offsets = [0, 384], sizes = [8, 128], strides = [1, 1]} : vector<8x512xf32> to vector<8x128xf32>
    %85 = math.tanh %84 : vector<8x128xf32>
    %c0_46 = arith.constant 0 : index
    %c0_47 = arith.constant 0 : index
    %86 = vector.load %arg13[%c0_46, %c0_47] : memref<8x128xf32, #tpu.memory_space<vmem>>, vector<8x128xf32>
    %87 = arith.mulf %82, %86 : vector<8x128xf32>
    %88 = arith.mulf %81, %85 : vector<8x128xf32>
    %89 = arith.addf %87, %88 : vector<8x128xf32>
    %90 = math.tanh %89 : vector<8x128xf32>
    %91 = arith.mulf %83, %90 : vector<8x128xf32>
    %c0_48 = arith.constant 0 : index
    %c0_49 = arith.constant 0 : index
    %92 = vector.load %arg13[%c0_48, %c0_49] : memref<8x128xf32, #tpu.memory_space<vmem>>, vector<8x128xf32>
    tpu.vector_store %arg13[%c0_48, %c0_49], %89 {strides = array<i32>} : memref<8x128xf32, #tpu.memory_space<vmem>>, vector<8x128xf32>,
    %c0_50 = arith.constant 0 : index
    %c0_51 = arith.constant 0 : index
    %93 = vector.load %arg12[%c0_50, %c0_51] : memref<8x128xf32, #tpu.memory_space<vmem>>, vector<8x128xf32>
    tpu.vector_store %arg12[%c0_50, %c0_51], %91 {strides = array<i32>} : memref<8x128xf32, #tpu.memory_space<vmem>>, vector<8x128xf32>,
    %94 = arith.index_cast %69 : i32 to index
    %c0_52 = arith.constant 0 : index
    %95 = vector.load %arg10[%94, %c0_52] : memref<64x128xf32, #tpu.memory_space<vmem>>, vector<8x128xf32>
    tpu.vector_store %arg10[%94, %c0_52], %91 {strides = array<i32>} : memref<64x128xf32, #tpu.memory_space<vmem>>, vector<8x128xf32>,
    %c3_i32 = arith.constant 3 : i32
    %c8_i32_53 = arith.constant 8 : i32
    %96 = arith.muli %c3_i32, %c8_i32_53 : i32
    %97 = tpu.assume_multiple %96, 8 : i32
    %98 = arith.index_cast %97 : i32 to index
    %c0_54 = arith.constant 0 : index
    %99 = vector.load %arg11[%98, %c0_54] : memref<64x512xf32, #tpu.memory_space<vmem>>, vector<8x512xf32>
    %c0_55 = arith.constant 0 : index
    %c0_56 = arith.constant 0 : index
    %100 = vector.load %arg12[%c0_55, %c0_56] : memref<8x128xf32, #tpu.memory_space<vmem>>, vector<8x128xf32>
    %cst_57 = arith.constant dense<0.000000e+00> : vector<8x512xf32>
    %101 = tpu.matmul %100, %1, %cst_57 {dimension_numbers = #tpu.dot_dimension_numbers<[1], [0], [0], [1], [0, 0, 1, 1], [], []>} : vector<8x128xf32>, vector<128x512xf32>, vector<8x512xf32> -> vector<8x512xf32>
    %102 = arith.addf %99, %101 : vector<8x512xf32>
    %103 = vector.extract_strided_slice %102 {offsets = [0, 0], sizes = [8, 384], strides = [1, 1]} : vector<8x512xf32> to vector<8x384xf32>
    %104 = arith.negf %103 : vector<8x384xf32>
    %105 = math.exp %104 : vector<8x384xf32>
    %cst_58 = arith.constant 1.000000e+00 : f32
    %106 = vector.broadcast %cst_58 : f32 to vector<8x384xf32>
    %107 = arith.addf %106, %105 : vector<8x384xf32>
    %108 = arith.divf %106, %107 : vector<8x384xf32>
    %109 = vector.extract_strided_slice %108 {offsets = [0, 0], sizes = [8, 128], strides = [1, 1]} : vector<8x384xf32> to vector<8x128xf32>
    %110 = vector.extract_strided_slice %108 {offsets = [0, 128], sizes = [8, 128], strides = [1, 1]} : vector<8x384xf32> to vector<8x128xf32>
    %111 = vector.extract_strided_slice %108 {offsets = [0, 256], sizes = [8, 128], strides = [1, 1]} : vector<8x384xf32> to vector<8x128xf32>
    %112 = vector.extract_strided_slice %102 {offsets = [0, 384], sizes = [8, 128], strides = [1, 1]} : vector<8x512xf32> to vector<8x128xf32>
    %113 = math.tanh %112 : vector<8x128xf32>
    %c0_59 = arith.constant 0 : index
    %c0_60 = arith.constant 0 : index
    %114 = vector.load %arg13[%c0_59, %c0_60] : memref<8x128xf32, #tpu.memory_space<vmem>>, vector<8x128xf32>
    %115 = arith.mulf %110, %114 : vector<8x128xf32>
    %116 = arith.mulf %109, %113 : vector<8x128xf32>
    %117 = arith.addf %115, %116 : vector<8x128xf32>
    %118 = math.tanh %117 : vector<8x128xf32>
    %119 = arith.mulf %111, %118 : vector<8x128xf32>
    %c0_61 = arith.constant 0 : index
    %c0_62 = arith.constant 0 : index
    %120 = vector.load %arg13[%c0_61, %c0_62] : memref<8x128xf32, #tpu.memory_space<vmem>>, vector<8x128xf32>
    tpu.vector_store %arg13[%c0_61, %c0_62], %117 {strides = array<i32>} : memref<8x128xf32, #tpu.memory_space<vmem>>, vector<8x128xf32>,
    %c0_63 = arith.constant 0 : index
    %c0_64 = arith.constant 0 : index
    %121 = vector.load %arg12[%c0_63, %c0_64] : memref<8x128xf32, #tpu.memory_space<vmem>>, vector<8x128xf32>
    tpu.vector_store %arg12[%c0_63, %c0_64], %119 {strides = array<i32>} : memref<8x128xf32, #tpu.memory_space<vmem>>, vector<8x128xf32>,
    %122 = arith.index_cast %97 : i32 to index
    %c0_65 = arith.constant 0 : index
    %123 = vector.load %arg10[%122, %c0_65] : memref<64x128xf32, #tpu.memory_space<vmem>>, vector<8x128xf32>
    tpu.vector_store %arg10[%122, %c0_65], %119 {strides = array<i32>} : memref<64x128xf32, #tpu.memory_space<vmem>>, vector<8x128xf32>,
    %c4_i32 = arith.constant 4 : i32
    %c8_i32_66 = arith.constant 8 : i32
    %124 = arith.muli %c4_i32, %c8_i32_66 : i32
    %125 = tpu.assume_multiple %124, 8 : i32
    %126 = arith.index_cast %125 : i32 to index
    %c0_67 = arith.constant 0 : index
    %127 = vector.load %arg11[%126, %c0_67] : memref<64x512xf32, #tpu.memory_space<vmem>>, vector<8x512xf32>
    %c0_68 = arith.constant 0 : index
    %c0_69 = arith.constant 0 : index
    %128 = vector.load %arg12[%c0_68, %c0_69] : memref<8x128xf32, #tpu.memory_space<vmem>>, vector<8x128xf32>
    %cst_70 = arith.constant dense<0.000000e+00> : vector<8x512xf32>
    %129 = tpu.matmul %128, %1, %cst_70 {dimension_numbers = #tpu.dot_dimension_numbers<[1], [0], [0], [1], [0, 0, 1, 1], [], []>} : vector<8x128xf32>, vector<128x512xf32>, vector<8x512xf32> -> vector<8x512xf32>
    %130 = arith.addf %127, %129 : vector<8x512xf32>
    %131 = vector.extract_strided_slice %130 {offsets = [0, 0], sizes = [8, 384], strides = [1, 1]} : vector<8x512xf32> to vector<8x384xf32>
    %132 = arith.negf %131 : vector<8x384xf32>
    %133 = math.exp %132 : vector<8x384xf32>
    %cst_71 = arith.constant 1.000000e+00 : f32
    %134 = vector.broadcast %cst_71 : f32 to vector<8x384xf32>
    %135 = arith.addf %134, %133 : vector<8x384xf32>
    %136 = arith.divf %134, %135 : vector<8x384xf32>
    %137 = vector.extract_strided_slice %136 {offsets = [0, 0], sizes = [8, 128], strides = [1, 1]} : vector<8x384xf32> to vector<8x128xf32>
    %138 = vector.extract_strided_slice %136 {offsets = [0, 128], sizes = [8, 128], strides = [1, 1]} : vector<8x384xf32> to vector<8x128xf32>
    %139 = vector.extract_strided_slice %136 {offsets = [0, 256], sizes = [8, 128], strides = [1, 1]} : vector<8x384xf32> to vector<8x128xf32>
    %140 = vector.extract_strided_slice %130 {offsets = [0, 384], sizes = [8, 128], strides = [1, 1]} : vector<8x512xf32> to vector<8x128xf32>
    %141 = math.tanh %140 : vector<8x128xf32>
    %c0_72 = arith.constant 0 : index
    %c0_73 = arith.constant 0 : index
    %142 = vector.load %arg13[%c0_72, %c0_73] : memref<8x128xf32, #tpu.memory_space<vmem>>, vector<8x128xf32>
    %143 = arith.mulf %138, %142 : vector<8x128xf32>
    %144 = arith.mulf %137, %141 : vector<8x128xf32>
    %145 = arith.addf %143, %144 : vector<8x128xf32>
    %146 = math.tanh %145 : vector<8x128xf32>
    %147 = arith.mulf %139, %146 : vector<8x128xf32>
    %c0_74 = arith.constant 0 : index
    %c0_75 = arith.constant 0 : index
    %148 = vector.load %arg13[%c0_74, %c0_75] : memref<8x128xf32, #tpu.memory_space<vmem>>, vector<8x128xf32>
    tpu.vector_store %arg13[%c0_74, %c0_75], %145 {strides = array<i32>} : memref<8x128xf32, #tpu.memory_space<vmem>>, vector<8x128xf32>,
    %c0_76 = arith.constant 0 : index
    %c0_77 = arith.constant 0 : index
    %149 = vector.load %arg12[%c0_76, %c0_77] : memref<8x128xf32, #tpu.memory_space<vmem>>, vector<8x128xf32>
    tpu.vector_store %arg12[%c0_76, %c0_77], %147 {strides = array<i32>} : memref<8x128xf32, #tpu.memory_space<vmem>>, vector<8x128xf32>,
    %150 = arith.index_cast %125 : i32 to index
    %c0_78 = arith.constant 0 : index
    %151 = vector.load %arg10[%150, %c0_78] : memref<64x128xf32, #tpu.memory_space<vmem>>, vector<8x128xf32>
    tpu.vector_store %arg10[%150, %c0_78], %147 {strides = array<i32>} : memref<64x128xf32, #tpu.memory_space<vmem>>, vector<8x128xf32>,
    %c5_i32 = arith.constant 5 : i32
    %c8_i32_79 = arith.constant 8 : i32
    %152 = arith.muli %c5_i32, %c8_i32_79 : i32
    %153 = tpu.assume_multiple %152, 8 : i32
    %154 = arith.index_cast %153 : i32 to index
    %c0_80 = arith.constant 0 : index
    %155 = vector.load %arg11[%154, %c0_80] : memref<64x512xf32, #tpu.memory_space<vmem>>, vector<8x512xf32>
    %c0_81 = arith.constant 0 : index
    %c0_82 = arith.constant 0 : index
    %156 = vector.load %arg12[%c0_81, %c0_82] : memref<8x128xf32, #tpu.memory_space<vmem>>, vector<8x128xf32>
    %cst_83 = arith.constant dense<0.000000e+00> : vector<8x512xf32>
    %157 = tpu.matmul %156, %1, %cst_83 {dimension_numbers = #tpu.dot_dimension_numbers<[1], [0], [0], [1], [0, 0, 1, 1], [], []>} : vector<8x128xf32>, vector<128x512xf32>, vector<8x512xf32> -> vector<8x512xf32>
    %158 = arith.addf %155, %157 : vector<8x512xf32>
    %159 = vector.extract_strided_slice %158 {offsets = [0, 0], sizes = [8, 384], strides = [1, 1]} : vector<8x512xf32> to vector<8x384xf32>
    %160 = arith.negf %159 : vector<8x384xf32>
    %161 = math.exp %160 : vector<8x384xf32>
    %cst_84 = arith.constant 1.000000e+00 : f32
    %162 = vector.broadcast %cst_84 : f32 to vector<8x384xf32>
    %163 = arith.addf %162, %161 : vector<8x384xf32>
    %164 = arith.divf %162, %163 : vector<8x384xf32>
    %165 = vector.extract_strided_slice %164 {offsets = [0, 0], sizes = [8, 128], strides = [1, 1]} : vector<8x384xf32> to vector<8x128xf32>
    %166 = vector.extract_strided_slice %164 {offsets = [0, 128], sizes = [8, 128], strides = [1, 1]} : vector<8x384xf32> to vector<8x128xf32>
    %167 = vector.extract_strided_slice %164 {offsets = [0, 256], sizes = [8, 128], strides = [1, 1]} : vector<8x384xf32> to vector<8x128xf32>
    %168 = vector.extract_strided_slice %158 {offsets = [0, 384], sizes = [8, 128], strides = [1, 1]} : vector<8x512xf32> to vector<8x128xf32>
    %169 = math.tanh %168 : vector<8x128xf32>
    %c0_85 = arith.constant 0 : index
    %c0_86 = arith.constant 0 : index
    %170 = vector.load %arg13[%c0_85, %c0_86] : memref<8x128xf32, #tpu.memory_space<vmem>>, vector<8x128xf32>
    %171 = arith.mulf %166, %170 : vector<8x128xf32>
    %172 = arith.mulf %165, %169 : vector<8x128xf32>
    %173 = arith.addf %171, %172 : vector<8x128xf32>
    %174 = math.tanh %173 : vector<8x128xf32>
    %175 = arith.mulf %167, %174 : vector<8x128xf32>
    %c0_87 = arith.constant 0 : index
    %c0_88 = arith.constant 0 : index
    %176 = vector.load %arg13[%c0_87, %c0_88] : memref<8x128xf32, #tpu.memory_space<vmem>>, vector<8x128xf32>
    tpu.vector_store %arg13[%c0_87, %c0_88], %173 {strides = array<i32>} : memref<8x128xf32, #tpu.memory_space<vmem>>, vector<8x128xf32>,
    %c0_89 = arith.constant 0 : index
    %c0_90 = arith.constant 0 : index
    %177 = vector.load %arg12[%c0_89, %c0_90] : memref<8x128xf32, #tpu.memory_space<vmem>>, vector<8x128xf32>
    tpu.vector_store %arg12[%c0_89, %c0_90], %175 {strides = array<i32>} : memref<8x128xf32, #tpu.memory_space<vmem>>, vector<8x128xf32>,
    %178 = arith.index_cast %153 : i32 to index
    %c0_91 = arith.constant 0 : index
    %179 = vector.load %arg10[%178, %c0_91] : memref<64x128xf32, #tpu.memory_space<vmem>>, vector<8x128xf32>
    tpu.vector_store %arg10[%178, %c0_91], %175 {strides = array<i32>} : memref<64x128xf32, #tpu.memory_space<vmem>>, vector<8x128xf32>,
    %c6_i32 = arith.constant 6 : i32
    %c8_i32_92 = arith.constant 8 : i32
    %180 = arith.muli %c6_i32, %c8_i32_92 : i32
    %181 = tpu.assume_multiple %180, 8 : i32
    %182 = arith.index_cast %181 : i32 to index
    %c0_93 = arith.constant 0 : index
    %183 = vector.load %arg11[%182, %c0_93] : memref<64x512xf32, #tpu.memory_space<vmem>>, vector<8x512xf32>
    %c0_94 = arith.constant 0 : index
    %c0_95 = arith.constant 0 : index
    %184 = vector.load %arg12[%c0_94, %c0_95] : memref<8x128xf32, #tpu.memory_space<vmem>>, vector<8x128xf32>
    %cst_96 = arith.constant dense<0.000000e+00> : vector<8x512xf32>
    %185 = tpu.matmul %184, %1, %cst_96 {dimension_numbers = #tpu.dot_dimension_numbers<[1], [0], [0], [1], [0, 0, 1, 1], [], []>} : vector<8x128xf32>, vector<128x512xf32>, vector<8x512xf32> -> vector<8x512xf32>
    %186 = arith.addf %183, %185 : vector<8x512xf32>
    %187 = vector.extract_strided_slice %186 {offsets = [0, 0], sizes = [8, 384], strides = [1, 1]} : vector<8x512xf32> to vector<8x384xf32>
    %188 = arith.negf %187 : vector<8x384xf32>
    %189 = math.exp %188 : vector<8x384xf32>
    %cst_97 = arith.constant 1.000000e+00 : f32
    %190 = vector.broadcast %cst_97 : f32 to vector<8x384xf32>
    %191 = arith.addf %190, %189 : vector<8x384xf32>
    %192 = arith.divf %190, %191 : vector<8x384xf32>
    %193 = vector.extract_strided_slice %192 {offsets = [0, 0], sizes = [8, 128], strides = [1, 1]} : vector<8x384xf32> to vector<8x128xf32>
    %194 = vector.extract_strided_slice %192 {offsets = [0, 128], sizes = [8, 128], strides = [1, 1]} : vector<8x384xf32> to vector<8x128xf32>
    %195 = vector.extract_strided_slice %192 {offsets = [0, 256], sizes = [8, 128], strides = [1, 1]} : vector<8x384xf32> to vector<8x128xf32>
    %196 = vector.extract_strided_slice %186 {offsets = [0, 384], sizes = [8, 128], strides = [1, 1]} : vector<8x512xf32> to vector<8x128xf32>
    %197 = math.tanh %196 : vector<8x128xf32>
    %c0_98 = arith.constant 0 : index
    %c0_99 = arith.constant 0 : index
    %198 = vector.load %arg13[%c0_98, %c0_99] : memref<8x128xf32, #tpu.memory_space<vmem>>, vector<8x128xf32>
    %199 = arith.mulf %194, %198 : vector<8x128xf32>
    %200 = arith.mulf %193, %197 : vector<8x128xf32>
    %201 = arith.addf %199, %200 : vector<8x128xf32>
    %202 = math.tanh %201 : vector<8x128xf32>
    %203 = arith.mulf %195, %202 : vector<8x128xf32>
    %c0_100 = arith.constant 0 : index
    %c0_101 = arith.constant 0 : index
    %204 = vector.load %arg13[%c0_100, %c0_101] : memref<8x128xf32, #tpu.memory_space<vmem>>, vector<8x128xf32>
    tpu.vector_store %arg13[%c0_100, %c0_101], %201 {strides = array<i32>} : memref<8x128xf32, #tpu.memory_space<vmem>>, vector<8x128xf32>,
    %c0_102 = arith.constant 0 : index
    %c0_103 = arith.constant 0 : index
    %205 = vector.load %arg12[%c0_102, %c0_103] : memref<8x128xf32, #tpu.memory_space<vmem>>, vector<8x128xf32>
    tpu.vector_store %arg12[%c0_102, %c0_103], %203 {strides = array<i32>} : memref<8x128xf32, #tpu.memory_space<vmem>>, vector<8x128xf32>,
    %206 = arith.index_cast %181 : i32 to index
    %c0_104 = arith.constant 0 : index
    %207 = vector.load %arg10[%206, %c0_104] : memref<64x128xf32, #tpu.memory_space<vmem>>, vector<8x128xf32>
    tpu.vector_store %arg10[%206, %c0_104], %203 {strides = array<i32>} : memref<64x128xf32, #tpu.memory_space<vmem>>, vector<8x128xf32>,
    %c7_i32 = arith.constant 7 : i32
    %c8_i32_105 = arith.constant 8 : i32
    %208 = arith.muli %c7_i32, %c8_i32_105 : i32
    %209 = tpu.assume_multiple %208, 8 : i32
    %210 = arith.index_cast %209 : i32 to index
    %c0_106 = arith.constant 0 : index
    %211 = vector.load %arg11[%210, %c0_106] : memref<64x512xf32, #tpu.memory_space<vmem>>, vector<8x512xf32>
    %c0_107 = arith.constant 0 : index
    %c0_108 = arith.constant 0 : index
    %212 = vector.load %arg12[%c0_107, %c0_108] : memref<8x128xf32, #tpu.memory_space<vmem>>, vector<8x128xf32>
    %cst_109 = arith.constant dense<0.000000e+00> : vector<8x512xf32>
    %213 = tpu.matmul %212, %1, %cst_109 {dimension_numbers = #tpu.dot_dimension_numbers<[1], [0], [0], [1], [0, 0, 1, 1], [], []>} : vector<8x128xf32>, vector<128x512xf32>, vector<8x512xf32> -> vector<8x512xf32>
    %214 = arith.addf %211, %213 : vector<8x512xf32>
    %215 = vector.extract_strided_slice %214 {offsets = [0, 0], sizes = [8, 384], strides = [1, 1]} : vector<8x512xf32> to vector<8x384xf32>
    %216 = arith.negf %215 : vector<8x384xf32>
    %217 = math.exp %216 : vector<8x384xf32>
    %cst_110 = arith.constant 1.000000e+00 : f32
    %218 = vector.broadcast %cst_110 : f32 to vector<8x384xf32>
    %219 = arith.addf %218, %217 : vector<8x384xf32>
    %220 = arith.divf %218, %219 : vector<8x384xf32>
    %221 = vector.extract_strided_slice %220 {offsets = [0, 0], sizes = [8, 128], strides = [1, 1]} : vector<8x384xf32> to vector<8x128xf32>
    %222 = vector.extract_strided_slice %220 {offsets = [0, 128], sizes = [8, 128], strides = [1, 1]} : vector<8x384xf32> to vector<8x128xf32>
    %223 = vector.extract_strided_slice %220 {offsets = [0, 256], sizes = [8, 128], strides = [1, 1]} : vector<8x384xf32> to vector<8x128xf32>
    %224 = vector.extract_strided_slice %214 {offsets = [0, 384], sizes = [8, 128], strides = [1, 1]} : vector<8x512xf32> to vector<8x128xf32>
    %225 = math.tanh %224 : vector<8x128xf32>
    %c0_111 = arith.constant 0 : index
    %c0_112 = arith.constant 0 : index
    %226 = vector.load %arg13[%c0_111, %c0_112] : memref<8x128xf32, #tpu.memory_space<vmem>>, vector<8x128xf32>
    %227 = arith.mulf %222, %226 : vector<8x128xf32>
    %228 = arith.mulf %221, %225 : vector<8x128xf32>
    %229 = arith.addf %227, %228 : vector<8x128xf32>
    %230 = math.tanh %229 : vector<8x128xf32>
    %231 = arith.mulf %223, %230 : vector<8x128xf32>
    %c0_113 = arith.constant 0 : index
    %c0_114 = arith.constant 0 : index
    %232 = vector.load %arg13[%c0_113, %c0_114] : memref<8x128xf32, #tpu.memory_space<vmem>>, vector<8x128xf32>
    tpu.vector_store %arg13[%c0_113, %c0_114], %229 {strides = array<i32>} : memref<8x128xf32, #tpu.memory_space<vmem>>, vector<8x128xf32>,
    %c0_115 = arith.constant 0 : index
    %c0_116 = arith.constant 0 : index
    %233 = vector.load %arg12[%c0_115, %c0_116] : memref<8x128xf32, #tpu.memory_space<vmem>>, vector<8x128xf32>
    tpu.vector_store %arg12[%c0_115, %c0_116], %231 {strides = array<i32>} : memref<8x128xf32, #tpu.memory_space<vmem>>, vector<8x128xf32>,
    %234 = arith.index_cast %209 : i32 to index
    %c0_117 = arith.constant 0 : index
    %235 = vector.load %arg10[%234, %c0_117] : memref<64x128xf32, #tpu.memory_space<vmem>>, vector<8x128xf32>
    tpu.vector_store %arg10[%234, %c0_117], %231 {strides = array<i32>} : memref<64x128xf32, #tpu.memory_space<vmem>>, vector<8x128xf32>,
    %c8_i32_118 = arith.constant 8 : i32
    %c0_119 = arith.constant 0 : index
    %c0_120 = arith.constant 0 : index
    %236 = vector.load %arg4[%c0_119, %c0_120] : memref<128x512xf32, #tpu.memory_space<vmem>>, vector<128x512xf32>
    %c0_121 = arith.constant 0 : index
    %c0_122 = arith.constant 0 : index
    %237 = vector.load %arg5[%c0_121, %c0_122] : memref<128x512xf32, #tpu.memory_space<vmem>>, vector<128x512xf32>
    %c0_123 = arith.constant 0 : index
    %c0_124 = arith.constant 0 : index
    %238 = vector.load %arg6[%c0_123, %c0_124] : memref<1x512xf32, #tpu.memory_space<vmem>>, vector<1x512xf32>
    %c0_125 = arith.constant 0 : index
    %c0_126 = arith.constant 0 : index
    %239 = vector.load %arg10[%c0_125, %c0_126] : memref<64x128xf32, #tpu.memory_space<vmem>>, vector<64x128xf32>
    %cst_127 = arith.constant dense<0.000000e+00> : vector<64x512xf32>
    %240 = tpu.matmul %239, %236, %cst_127 {dimension_numbers = #tpu.dot_dimension_numbers<[1], [0], [0], [1], [0, 0, 1, 1], [], []>} : vector<64x128xf32>, vector<128x512xf32>, vector<64x512xf32> -> vector<64x512xf32>
    %241 = vector.broadcast %238 : vector<1x512xf32> to vector<64x512xf32>
    %242 = arith.addf %240, %241 : vector<64x512xf32>
    %c0_128 = arith.constant 0 : index
    %c0_129 = arith.constant 0 : index
    %243 = vector.load %arg11[%c0_128, %c0_129] : memref<64x512xf32, #tpu.memory_space<vmem>>, vector<64x512xf32>
    tpu.vector_store %arg11[%c0_128, %c0_129], %242 {strides = array<i32>} : memref<64x512xf32, #tpu.memory_space<vmem>>, vector<64x512xf32>,
    %cst_130 = arith.constant 0.000000e+00 : f32
    %244 = vector.broadcast %cst_130 : f32 to vector<8x128xf32>
    %c0_131 = arith.constant 0 : index
    %c0_132 = arith.constant 0 : index
    %245 = vector.load %arg12[%c0_131, %c0_132] : memref<8x128xf32, #tpu.memory_space<vmem>>, vector<8x128xf32>
    tpu.vector_store %arg12[%c0_131, %c0_132], %244 {strides = array<i32>} : memref<8x128xf32, #tpu.memory_space<vmem>>, vector<8x128xf32>,
    %cst_133 = arith.constant 0.000000e+00 : f32
    %246 = vector.broadcast %cst_133 : f32 to vector<8x128xf32>
    %c0_134 = arith.constant 0 : index
    %c0_135 = arith.constant 0 : index
    %247 = vector.load %arg13[%c0_134, %c0_135] : memref<8x128xf32, #tpu.memory_space<vmem>>, vector<8x128xf32>
    tpu.vector_store %arg13[%c0_134, %c0_135], %246 {strides = array<i32>} : memref<8x128xf32, #tpu.memory_space<vmem>>, vector<8x128xf32>,
    %c0_i32_136 = arith.constant 0 : i32
    %c8_i32_137 = arith.constant 8 : i32
    %248 = arith.muli %c0_i32_136, %c8_i32_137 : i32
    %249 = tpu.assume_multiple %248, 8 : i32
    %250 = arith.index_cast %249 : i32 to index
    %c0_138 = arith.constant 0 : index
    %251 = vector.load %arg11[%250, %c0_138] : memref<64x512xf32, #tpu.memory_space<vmem>>, vector<8x512xf32>
    %c0_139 = arith.constant 0 : index
    %c0_140 = arith.constant 0 : index
    %252 = vector.load %arg12[%c0_139, %c0_140] : memref<8x128xf32, #tpu.memory_space<vmem>>, vector<8x128xf32>
    %cst_141 = arith.constant dense<0.000000e+00> : vector<8x512xf32>
    %253 = tpu.matmul %252, %237, %cst_141 {dimension_numbers = #tpu.dot_dimension_numbers<[1], [0], [0], [1], [0, 0, 1, 1], [], []>} : vector<8x128xf32>, vector<128x512xf32>, vector<8x512xf32> -> vector<8x512xf32>
    %254 = arith.addf %251, %253 : vector<8x512xf32>
    %255 = vector.extract_strided_slice %254 {offsets = [0, 0], sizes = [8, 384], strides = [1, 1]} : vector<8x512xf32> to vector<8x384xf32>
    %256 = arith.negf %255 : vector<8x384xf32>
    %257 = math.exp %256 : vector<8x384xf32>
    %cst_142 = arith.constant 1.000000e+00 : f32
    %258 = vector.broadcast %cst_142 : f32 to vector<8x384xf32>
    %259 = arith.addf %258, %257 : vector<8x384xf32>
    %260 = arith.divf %258, %259 : vector<8x384xf32>
    %261 = vector.extract_strided_slice %260 {offsets = [0, 0], sizes = [8, 128], strides = [1, 1]} : vector<8x384xf32> to vector<8x128xf32>
    %262 = vector.extract_strided_slice %260 {offsets = [0, 128], sizes = [8, 128], strides = [1, 1]} : vector<8x384xf32> to vector<8x128xf32>
    %263 = vector.extract_strided_slice %260 {offsets = [0, 256], sizes = [8, 128], strides = [1, 1]} : vector<8x384xf32> to vector<8x128xf32>
    %264 = vector.extract_strided_slice %254 {offsets = [0, 384], sizes = [8, 128], strides = [1, 1]} : vector<8x512xf32> to vector<8x128xf32>
    %265 = math.tanh %264 : vector<8x128xf32>
    %c0_143 = arith.constant 0 : index
    %c0_144 = arith.constant 0 : index
    %266 = vector.load %arg13[%c0_143, %c0_144] : memref<8x128xf32, #tpu.memory_space<vmem>>, vector<8x128xf32>
    %267 = arith.mulf %262, %266 : vector<8x128xf32>
    %268 = arith.mulf %261, %265 : vector<8x128xf32>
    %269 = arith.addf %267, %268 : vector<8x128xf32>
    %270 = math.tanh %269 : vector<8x128xf32>
    %271 = arith.mulf %263, %270 : vector<8x128xf32>
    %c0_145 = arith.constant 0 : index
    %c0_146 = arith.constant 0 : index
    %272 = vector.load %arg13[%c0_145, %c0_146] : memref<8x128xf32, #tpu.memory_space<vmem>>, vector<8x128xf32>
    tpu.vector_store %arg13[%c0_145, %c0_146], %269 {strides = array<i32>} : memref<8x128xf32, #tpu.memory_space<vmem>>, vector<8x128xf32>,
    %c0_147 = arith.constant 0 : index
    %c0_148 = arith.constant 0 : index
    %273 = vector.load %arg12[%c0_147, %c0_148] : memref<8x128xf32, #tpu.memory_space<vmem>>, vector<8x128xf32>
    tpu.vector_store %arg12[%c0_147, %c0_148], %271 {strides = array<i32>} : memref<8x128xf32, #tpu.memory_space<vmem>>, vector<8x128xf32>,
    %c1_i32_149 = arith.constant 1 : i32
    %c8_i32_150 = arith.constant 8 : i32
    %274 = arith.muli %c1_i32_149, %c8_i32_150 : i32
    %275 = tpu.assume_multiple %274, 8 : i32
    %276 = arith.index_cast %275 : i32 to index
    %c0_151 = arith.constant 0 : index
    %277 = vector.load %arg11[%276, %c0_151] : memref<64x512xf32, #tpu.memory_space<vmem>>, vector<8x512xf32>
    %c0_152 = arith.constant 0 : index
    %c0_153 = arith.constant 0 : index
    %278 = vector.load %arg12[%c0_152, %c0_153] : memref<8x128xf32, #tpu.memory_space<vmem>>, vector<8x128xf32>
    %cst_154 = arith.constant dense<0.000000e+00> : vector<8x512xf32>
    %279 = tpu.matmul %278, %237, %cst_154 {dimension_numbers = #tpu.dot_dimension_numbers<[1], [0], [0], [1], [0, 0, 1, 1], [], []>} : vector<8x128xf32>, vector<128x512xf32>, vector<8x512xf32> -> vector<8x512xf32>
    %280 = arith.addf %277, %279 : vector<8x512xf32>
    %281 = vector.extract_strided_slice %280 {offsets = [0, 0], sizes = [8, 384], strides = [1, 1]} : vector<8x512xf32> to vector<8x384xf32>
    %282 = arith.negf %281 : vector<8x384xf32>
    %283 = math.exp %282 : vector<8x384xf32>
    %cst_155 = arith.constant 1.000000e+00 : f32
    %284 = vector.broadcast %cst_155 : f32 to vector<8x384xf32>
    %285 = arith.addf %284, %283 : vector<8x384xf32>
    %286 = arith.divf %284, %285 : vector<8x384xf32>
    %287 = vector.extract_strided_slice %286 {offsets = [0, 0], sizes = [8, 128], strides = [1, 1]} : vector<8x384xf32> to vector<8x128xf32>
    %288 = vector.extract_strided_slice %286 {offsets = [0, 128], sizes = [8, 128], strides = [1, 1]} : vector<8x384xf32> to vector<8x128xf32>
    %289 = vector.extract_strided_slice %286 {offsets = [0, 256], sizes = [8, 128], strides = [1, 1]} : vector<8x384xf32> to vector<8x128xf32>
    %290 = vector.extract_strided_slice %280 {offsets = [0, 384], sizes = [8, 128], strides = [1, 1]} : vector<8x512xf32> to vector<8x128xf32>
    %291 = math.tanh %290 : vector<8x128xf32>
    %c0_156 = arith.constant 0 : index
    %c0_157 = arith.constant 0 : index
    %292 = vector.load %arg13[%c0_156, %c0_157] : memref<8x128xf32, #tpu.memory_space<vmem>>, vector<8x128xf32>
    %293 = arith.mulf %288, %292 : vector<8x128xf32>
    %294 = arith.mulf %287, %291 : vector<8x128xf32>
    %295 = arith.addf %293, %294 : vector<8x128xf32>
    %296 = math.tanh %295 : vector<8x128xf32>
    %297 = arith.mulf %289, %296 : vector<8x128xf32>
    %c0_158 = arith.constant 0 : index
    %c0_159 = arith.constant 0 : index
    %298 = vector.load %arg13[%c0_158, %c0_159] : memref<8x128xf32, #tpu.memory_space<vmem>>, vector<8x128xf32>
    tpu.vector_store %arg13[%c0_158, %c0_159], %295 {strides = array<i32>} : memref<8x128xf32, #tpu.memory_space<vmem>>, vector<8x128xf32>,
    %c0_160 = arith.constant 0 : index
    %c0_161 = arith.constant 0 : index
    %299 = vector.load %arg12[%c0_160, %c0_161] : memref<8x128xf32, #tpu.memory_space<vmem>>, vector<8x128xf32>
    tpu.vector_store %arg12[%c0_160, %c0_161], %297 {strides = array<i32>} : memref<8x128xf32, #tpu.memory_space<vmem>>, vector<8x128xf32>,
    %c2_i32_162 = arith.constant 2 : i32
    %c8_i32_163 = arith.constant 8 : i32
    %300 = arith.muli %c2_i32_162, %c8_i32_163 : i32
    %301 = tpu.assume_multiple %300, 8 : i32
    %302 = arith.index_cast %301 : i32 to index
    %c0_164 = arith.constant 0 : index
    %303 = vector.load %arg11[%302, %c0_164] : memref<64x512xf32, #tpu.memory_space<vmem>>, vector<8x512xf32>
    %c0_165 = arith.constant 0 : index
    %c0_166 = arith.constant 0 : index
    %304 = vector.load %arg12[%c0_165, %c0_166] : memref<8x128xf32, #tpu.memory_space<vmem>>, vector<8x128xf32>
    %cst_167 = arith.constant dense<0.000000e+00> : vector<8x512xf32>
    %305 = tpu.matmul %304, %237, %cst_167 {dimension_numbers = #tpu.dot_dimension_numbers<[1], [0], [0], [1], [0, 0, 1, 1], [], []>} : vector<8x128xf32>, vector<128x512xf32>, vector<8x512xf32> -> vector<8x512xf32>
    %306 = arith.addf %303, %305 : vector<8x512xf32>
    %307 = vector.extract_strided_slice %306 {offsets = [0, 0], sizes = [8, 384], strides = [1, 1]} : vector<8x512xf32> to vector<8x384xf32>
    %308 = arith.negf %307 : vector<8x384xf32>
    %309 = math.exp %308 : vector<8x384xf32>
    %cst_168 = arith.constant 1.000000e+00 : f32
    %310 = vector.broadcast %cst_168 : f32 to vector<8x384xf32>
    %311 = arith.addf %310, %309 : vector<8x384xf32>
    %312 = arith.divf %310, %311 : vector<8x384xf32>
    %313 = vector.extract_strided_slice %312 {offsets = [0, 0], sizes = [8, 128], strides = [1, 1]} : vector<8x384xf32> to vector<8x128xf32>
    %314 = vector.extract_strided_slice %312 {offsets = [0, 128], sizes = [8, 128], strides = [1, 1]} : vector<8x384xf32> to vector<8x128xf32>
    %315 = vector.extract_strided_slice %312 {offsets = [0, 256], sizes = [8, 128], strides = [1, 1]} : vector<8x384xf32> to vector<8x128xf32>
    %316 = vector.extract_strided_slice %306 {offsets = [0, 384], sizes = [8, 128], strides = [1, 1]} : vector<8x512xf32> to vector<8x128xf32>
    %317 = math.tanh %316 : vector<8x128xf32>
    %c0_169 = arith.constant 0 : index
    %c0_170 = arith.constant 0 : index
    %318 = vector.load %arg13[%c0_169, %c0_170] : memref<8x128xf32, #tpu.memory_space<vmem>>, vector<8x128xf32>
    %319 = arith.mulf %314, %318 : vector<8x128xf32>
    %320 = arith.mulf %313, %317 : vector<8x128xf32>
    %321 = arith.addf %319, %320 : vector<8x128xf32>
    %322 = math.tanh %321 : vector<8x128xf32>
    %323 = arith.mulf %315, %322 : vector<8x128xf32>
    %c0_171 = arith.constant 0 : index
    %c0_172 = arith.constant 0 : index
    %324 = vector.load %arg13[%c0_171, %c0_172] : memref<8x128xf32, #tpu.memory_space<vmem>>, vector<8x128xf32>
    tpu.vector_store %arg13[%c0_171, %c0_172], %321 {strides = array<i32>} : memref<8x128xf32, #tpu.memory_space<vmem>>, vector<8x128xf32>,
    %c0_173 = arith.constant 0 : index
    %c0_174 = arith.constant 0 : index
    %325 = vector.load %arg12[%c0_173, %c0_174] : memref<8x128xf32, #tpu.memory_space<vmem>>, vector<8x128xf32>
    tpu.vector_store %arg12[%c0_173, %c0_174], %323 {strides = array<i32>} : memref<8x128xf32, #tpu.memory_space<vmem>>, vector<8x128xf32>,
    %c3_i32_175 = arith.constant 3 : i32
    %c8_i32_176 = arith.constant 8 : i32
    %326 = arith.muli %c3_i32_175, %c8_i32_176 : i32
    %327 = tpu.assume_multiple %326, 8 : i32
    %328 = arith.index_cast %327 : i32 to index
    %c0_177 = arith.constant 0 : index
    %329 = vector.load %arg11[%328, %c0_177] : memref<64x512xf32, #tpu.memory_space<vmem>>, vector<8x512xf32>
    %c0_178 = arith.constant 0 : index
    %c0_179 = arith.constant 0 : index
    %330 = vector.load %arg12[%c0_178, %c0_179] : memref<8x128xf32, #tpu.memory_space<vmem>>, vector<8x128xf32>
    %cst_180 = arith.constant dense<0.000000e+00> : vector<8x512xf32>
    %331 = tpu.matmul %330, %237, %cst_180 {dimension_numbers = #tpu.dot_dimension_numbers<[1], [0], [0], [1], [0, 0, 1, 1], [], []>} : vector<8x128xf32>, vector<128x512xf32>, vector<8x512xf32> -> vector<8x512xf32>
    %332 = arith.addf %329, %331 : vector<8x512xf32>
    %333 = vector.extract_strided_slice %332 {offsets = [0, 0], sizes = [8, 384], strides = [1, 1]} : vector<8x512xf32> to vector<8x384xf32>
    %334 = arith.negf %333 : vector<8x384xf32>
    %335 = math.exp %334 : vector<8x384xf32>
    %cst_181 = arith.constant 1.000000e+00 : f32
    %336 = vector.broadcast %cst_181 : f32 to vector<8x384xf32>
    %337 = arith.addf %336, %335 : vector<8x384xf32>
    %338 = arith.divf %336, %337 : vector<8x384xf32>
    %339 = vector.extract_strided_slice %338 {offsets = [0, 0], sizes = [8, 128], strides = [1, 1]} : vector<8x384xf32> to vector<8x128xf32>
    %340 = vector.extract_strided_slice %338 {offsets = [0, 128], sizes = [8, 128], strides = [1, 1]} : vector<8x384xf32> to vector<8x128xf32>
    %341 = vector.extract_strided_slice %338 {offsets = [0, 256], sizes = [8, 128], strides = [1, 1]} : vector<8x384xf32> to vector<8x128xf32>
    %342 = vector.extract_strided_slice %332 {offsets = [0, 384], sizes = [8, 128], strides = [1, 1]} : vector<8x512xf32> to vector<8x128xf32>
    %343 = math.tanh %342 : vector<8x128xf32>
    %c0_182 = arith.constant 0 : index
    %c0_183 = arith.constant 0 : index
    %344 = vector.load %arg13[%c0_182, %c0_183] : memref<8x128xf32, #tpu.memory_space<vmem>>, vector<8x128xf32>
    %345 = arith.mulf %340, %344 : vector<8x128xf32>
    %346 = arith.mulf %339, %343 : vector<8x128xf32>
    %347 = arith.addf %345, %346 : vector<8x128xf32>
    %348 = math.tanh %347 : vector<8x128xf32>
    %349 = arith.mulf %341, %348 : vector<8x128xf32>
    %c0_184 = arith.constant 0 : index
    %c0_185 = arith.constant 0 : index
    %350 = vector.load %arg13[%c0_184, %c0_185] : memref<8x128xf32, #tpu.memory_space<vmem>>, vector<8x128xf32>
    tpu.vector_store %arg13[%c0_184, %c0_185], %347 {strides = array<i32>} : memref<8x128xf32, #tpu.memory_space<vmem>>, vector<8x128xf32>,
    %c0_186 = arith.constant 0 : index
    %c0_187 = arith.constant 0 : index
    %351 = vector.load %arg12[%c0_186, %c0_187] : memref<8x128xf32, #tpu.memory_space<vmem>>, vector<8x128xf32>
    tpu.vector_store %arg12[%c0_186, %c0_187], %349 {strides = array<i32>} : memref<8x128xf32, #tpu.memory_space<vmem>>, vector<8x128xf32>,
    %c4_i32_188 = arith.constant 4 : i32
    %c8_i32_189 = arith.constant 8 : i32
    %352 = arith.muli %c4_i32_188, %c8_i32_189 : i32
    %353 = tpu.assume_multiple %352, 8 : i32
    %354 = arith.index_cast %353 : i32 to index
    %c0_190 = arith.constant 0 : index
    %355 = vector.load %arg11[%354, %c0_190] : memref<64x512xf32, #tpu.memory_space<vmem>>, vector<8x512xf32>
    %c0_191 = arith.constant 0 : index
    %c0_192 = arith.constant 0 : index
    %356 = vector.load %arg12[%c0_191, %c0_192] : memref<8x128xf32, #tpu.memory_space<vmem>>, vector<8x128xf32>
    %cst_193 = arith.constant dense<0.000000e+00> : vector<8x512xf32>
    %357 = tpu.matmul %356, %237, %cst_193 {dimension_numbers = #tpu.dot_dimension_numbers<[1], [0], [0], [1], [0, 0, 1, 1], [], []>} : vector<8x128xf32>, vector<128x512xf32>, vector<8x512xf32> -> vector<8x512xf32>
    %358 = arith.addf %355, %357 : vector<8x512xf32>
    %359 = vector.extract_strided_slice %358 {offsets = [0, 0], sizes = [8, 384], strides = [1, 1]} : vector<8x512xf32> to vector<8x384xf32>
    %360 = arith.negf %359 : vector<8x384xf32>
    %361 = math.exp %360 : vector<8x384xf32>
    %cst_194 = arith.constant 1.000000e+00 : f32
    %362 = vector.broadcast %cst_194 : f32 to vector<8x384xf32>
    %363 = arith.addf %362, %361 : vector<8x384xf32>
    %364 = arith.divf %362, %363 : vector<8x384xf32>
    %365 = vector.extract_strided_slice %364 {offsets = [0, 0], sizes = [8, 128], strides = [1, 1]} : vector<8x384xf32> to vector<8x128xf32>
    %366 = vector.extract_strided_slice %364 {offsets = [0, 128], sizes = [8, 128], strides = [1, 1]} : vector<8x384xf32> to vector<8x128xf32>
    %367 = vector.extract_strided_slice %364 {offsets = [0, 256], sizes = [8, 128], strides = [1, 1]} : vector<8x384xf32> to vector<8x128xf32>
    %368 = vector.extract_strided_slice %358 {offsets = [0, 384], sizes = [8, 128], strides = [1, 1]} : vector<8x512xf32> to vector<8x128xf32>
    %369 = math.tanh %368 : vector<8x128xf32>
    %c0_195 = arith.constant 0 : index
    %c0_196 = arith.constant 0 : index
    %370 = vector.load %arg13[%c0_195, %c0_196] : memref<8x128xf32, #tpu.memory_space<vmem>>, vector<8x128xf32>
    %371 = arith.mulf %366, %370 : vector<8x128xf32>
    %372 = arith.mulf %365, %369 : vector<8x128xf32>
    %373 = arith.addf %371, %372 : vector<8x128xf32>
    %374 = math.tanh %373 : vector<8x128xf32>
    %375 = arith.mulf %367, %374 : vector<8x128xf32>
    %c0_197 = arith.constant 0 : index
    %c0_198 = arith.constant 0 : index
    %376 = vector.load %arg13[%c0_197, %c0_198] : memref<8x128xf32, #tpu.memory_space<vmem>>, vector<8x128xf32>
    tpu.vector_store %arg13[%c0_197, %c0_198], %373 {strides = array<i32>} : memref<8x128xf32, #tpu.memory_space<vmem>>, vector<8x128xf32>,
    %c0_199 = arith.constant 0 : index
    %c0_200 = arith.constant 0 : index
    %377 = vector.load %arg12[%c0_199, %c0_200] : memref<8x128xf32, #tpu.memory_space<vmem>>, vector<8x128xf32>
    tpu.vector_store %arg12[%c0_199, %c0_200], %375 {strides = array<i32>} : memref<8x128xf32, #tpu.memory_space<vmem>>, vector<8x128xf32>,
    %c5_i32_201 = arith.constant 5 : i32
    %c8_i32_202 = arith.constant 8 : i32
    %378 = arith.muli %c5_i32_201, %c8_i32_202 : i32
    %379 = tpu.assume_multiple %378, 8 : i32
    %380 = arith.index_cast %379 : i32 to index
    %c0_203 = arith.constant 0 : index
    %381 = vector.load %arg11[%380, %c0_203] : memref<64x512xf32, #tpu.memory_space<vmem>>, vector<8x512xf32>
    %c0_204 = arith.constant 0 : index
    %c0_205 = arith.constant 0 : index
    %382 = vector.load %arg12[%c0_204, %c0_205] : memref<8x128xf32, #tpu.memory_space<vmem>>, vector<8x128xf32>
    %cst_206 = arith.constant dense<0.000000e+00> : vector<8x512xf32>
    %383 = tpu.matmul %382, %237, %cst_206 {dimension_numbers = #tpu.dot_dimension_numbers<[1], [0], [0], [1], [0, 0, 1, 1], [], []>} : vector<8x128xf32>, vector<128x512xf32>, vector<8x512xf32> -> vector<8x512xf32>
    %384 = arith.addf %381, %383 : vector<8x512xf32>
    %385 = vector.extract_strided_slice %384 {offsets = [0, 0], sizes = [8, 384], strides = [1, 1]} : vector<8x512xf32> to vector<8x384xf32>
    %386 = arith.negf %385 : vector<8x384xf32>
    %387 = math.exp %386 : vector<8x384xf32>
    %cst_207 = arith.constant 1.000000e+00 : f32
    %388 = vector.broadcast %cst_207 : f32 to vector<8x384xf32>
    %389 = arith.addf %388, %387 : vector<8x384xf32>
    %390 = arith.divf %388, %389 : vector<8x384xf32>
    %391 = vector.extract_strided_slice %390 {offsets = [0, 0], sizes = [8, 128], strides = [1, 1]} : vector<8x384xf32> to vector<8x128xf32>
    %392 = vector.extract_strided_slice %390 {offsets = [0, 128], sizes = [8, 128], strides = [1, 1]} : vector<8x384xf32> to vector<8x128xf32>
    %393 = vector.extract_strided_slice %390 {offsets = [0, 256], sizes = [8, 128], strides = [1, 1]} : vector<8x384xf32> to vector<8x128xf32>
    %394 = vector.extract_strided_slice %384 {offsets = [0, 384], sizes = [8, 128], strides = [1, 1]} : vector<8x512xf32> to vector<8x128xf32>
    %395 = math.tanh %394 : vector<8x128xf32>
    %c0_208 = arith.constant 0 : index
    %c0_209 = arith.constant 0 : index
    %396 = vector.load %arg13[%c0_208, %c0_209] : memref<8x128xf32, #tpu.memory_space<vmem>>, vector<8x128xf32>
    %397 = arith.mulf %392, %396 : vector<8x128xf32>
    %398 = arith.mulf %391, %395 : vector<8x128xf32>
    %399 = arith.addf %397, %398 : vector<8x128xf32>
    %400 = math.tanh %399 : vector<8x128xf32>
    %401 = arith.mulf %393, %400 : vector<8x128xf32>
    %c0_210 = arith.constant 0 : index
    %c0_211 = arith.constant 0 : index
    %402 = vector.load %arg13[%c0_210, %c0_211] : memref<8x128xf32, #tpu.memory_space<vmem>>, vector<8x128xf32>
    tpu.vector_store %arg13[%c0_210, %c0_211], %399 {strides = array<i32>} : memref<8x128xf32, #tpu.memory_space<vmem>>, vector<8x128xf32>,
    %c0_212 = arith.constant 0 : index
    %c0_213 = arith.constant 0 : index
    %403 = vector.load %arg12[%c0_212, %c0_213] : memref<8x128xf32, #tpu.memory_space<vmem>>, vector<8x128xf32>
    tpu.vector_store %arg12[%c0_212, %c0_213], %401 {strides = array<i32>} : memref<8x128xf32, #tpu.memory_space<vmem>>, vector<8x128xf32>,
    %c6_i32_214 = arith.constant 6 : i32
    %c8_i32_215 = arith.constant 8 : i32
    %404 = arith.muli %c6_i32_214, %c8_i32_215 : i32
    %405 = tpu.assume_multiple %404, 8 : i32
    %406 = arith.index_cast %405 : i32 to index
    %c0_216 = arith.constant 0 : index
    %407 = vector.load %arg11[%406, %c0_216] : memref<64x512xf32, #tpu.memory_space<vmem>>, vector<8x512xf32>
    %c0_217 = arith.constant 0 : index
    %c0_218 = arith.constant 0 : index
    %408 = vector.load %arg12[%c0_217, %c0_218] : memref<8x128xf32, #tpu.memory_space<vmem>>, vector<8x128xf32>
    %cst_219 = arith.constant dense<0.000000e+00> : vector<8x512xf32>
    %409 = tpu.matmul %408, %237, %cst_219 {dimension_numbers = #tpu.dot_dimension_numbers<[1], [0], [0], [1], [0, 0, 1, 1], [], []>} : vector<8x128xf32>, vector<128x512xf32>, vector<8x512xf32> -> vector<8x512xf32>
    %410 = arith.addf %407, %409 : vector<8x512xf32>
    %411 = vector.extract_strided_slice %410 {offsets = [0, 0], sizes = [8, 384], strides = [1, 1]} : vector<8x512xf32> to vector<8x384xf32>
    %412 = arith.negf %411 : vector<8x384xf32>
    %413 = math.exp %412 : vector<8x384xf32>
    %cst_220 = arith.constant 1.000000e+00 : f32
    %414 = vector.broadcast %cst_220 : f32 to vector<8x384xf32>
    %415 = arith.addf %414, %413 : vector<8x384xf32>
    %416 = arith.divf %414, %415 : vector<8x384xf32>
    %417 = vector.extract_strided_slice %416 {offsets = [0, 0], sizes = [8, 128], strides = [1, 1]} : vector<8x384xf32> to vector<8x128xf32>
    %418 = vector.extract_strided_slice %416 {offsets = [0, 128], sizes = [8, 128], strides = [1, 1]} : vector<8x384xf32> to vector<8x128xf32>
    %419 = vector.extract_strided_slice %416 {offsets = [0, 256], sizes = [8, 128], strides = [1, 1]} : vector<8x384xf32> to vector<8x128xf32>
    %420 = vector.extract_strided_slice %410 {offsets = [0, 384], sizes = [8, 128], strides = [1, 1]} : vector<8x512xf32> to vector<8x128xf32>
    %421 = math.tanh %420 : vector<8x128xf32>
    %c0_221 = arith.constant 0 : index
    %c0_222 = arith.constant 0 : index
    %422 = vector.load %arg13[%c0_221, %c0_222] : memref<8x128xf32, #tpu.memory_space<vmem>>, vector<8x128xf32>
    %423 = arith.mulf %418, %422 : vector<8x128xf32>
    %424 = arith.mulf %417, %421 : vector<8x128xf32>
    %425 = arith.addf %423, %424 : vector<8x128xf32>
    %426 = math.tanh %425 : vector<8x128xf32>
    %427 = arith.mulf %419, %426 : vector<8x128xf32>
    %c0_223 = arith.constant 0 : index
    %c0_224 = arith.constant 0 : index
    %428 = vector.load %arg13[%c0_223, %c0_224] : memref<8x128xf32, #tpu.memory_space<vmem>>, vector<8x128xf32>
    tpu.vector_store %arg13[%c0_223, %c0_224], %425 {strides = array<i32>} : memref<8x128xf32, #tpu.memory_space<vmem>>, vector<8x128xf32>,
    %c0_225 = arith.constant 0 : index
    %c0_226 = arith.constant 0 : index
    %429 = vector.load %arg12[%c0_225, %c0_226] : memref<8x128xf32, #tpu.memory_space<vmem>>, vector<8x128xf32>
    tpu.vector_store %arg12[%c0_225, %c0_226], %427 {strides = array<i32>} : memref<8x128xf32, #tpu.memory_space<vmem>>, vector<8x128xf32>,
    %c7_i32_227 = arith.constant 7 : i32
    %c8_i32_228 = arith.constant 8 : i32
    %430 = arith.muli %c7_i32_227, %c8_i32_228 : i32
    %431 = tpu.assume_multiple %430, 8 : i32
    %432 = arith.index_cast %431 : i32 to index
    %c0_229 = arith.constant 0 : index
    %433 = vector.load %arg11[%432, %c0_229] : memref<64x512xf32, #tpu.memory_space<vmem>>, vector<8x512xf32>
    %c0_230 = arith.constant 0 : index
    %c0_231 = arith.constant 0 : index
    %434 = vector.load %arg12[%c0_230, %c0_231] : memref<8x128xf32, #tpu.memory_space<vmem>>, vector<8x128xf32>
    %cst_232 = arith.constant dense<0.000000e+00> : vector<8x512xf32>
    %435 = tpu.matmul %434, %237, %cst_232 {dimension_numbers = #tpu.dot_dimension_numbers<[1], [0], [0], [1], [0, 0, 1, 1], [], []>} : vector<8x128xf32>, vector<128x512xf32>, vector<8x512xf32> -> vector<8x512xf32>
    %436 = arith.addf %433, %435 : vector<8x512xf32>
    %437 = vector.extract_strided_slice %436 {offsets = [0, 0], sizes = [8, 384], strides = [1, 1]} : vector<8x512xf32> to vector<8x384xf32>
    %438 = arith.negf %437 : vector<8x384xf32>
    %439 = math.exp %438 : vector<8x384xf32>
    %cst_233 = arith.constant 1.000000e+00 : f32
    %440 = vector.broadcast %cst_233 : f32 to vector<8x384xf32>
    %441 = arith.addf %440, %439 : vector<8x384xf32>
    %442 = arith.divf %440, %441 : vector<8x384xf32>
    %443 = vector.extract_strided_slice %442 {offsets = [0, 0], sizes = [8, 128], strides = [1, 1]} : vector<8x384xf32> to vector<8x128xf32>
    %444 = vector.extract_strided_slice %442 {offsets = [0, 128], sizes = [8, 128], strides = [1, 1]} : vector<8x384xf32> to vector<8x128xf32>
    %445 = vector.extract_strided_slice %442 {offsets = [0, 256], sizes = [8, 128], strides = [1, 1]} : vector<8x384xf32> to vector<8x128xf32>
    %446 = vector.extract_strided_slice %436 {offsets = [0, 384], sizes = [8, 128], strides = [1, 1]} : vector<8x512xf32> to vector<8x128xf32>
    %447 = math.tanh %446 : vector<8x128xf32>
    %c0_234 = arith.constant 0 : index
    %c0_235 = arith.constant 0 : index
    %448 = vector.load %arg13[%c0_234, %c0_235] : memref<8x128xf32, #tpu.memory_space<vmem>>, vector<8x128xf32>
    %449 = arith.mulf %444, %448 : vector<8x128xf32>
    %450 = arith.mulf %443, %447 : vector<8x128xf32>
    %451 = arith.addf %449, %450 : vector<8x128xf32>
    %452 = math.tanh %451 : vector<8x128xf32>
    %453 = arith.mulf %445, %452 : vector<8x128xf32>
    %c0_236 = arith.constant 0 : index
    %c0_237 = arith.constant 0 : index
    %454 = vector.load %arg13[%c0_236, %c0_237] : memref<8x128xf32, #tpu.memory_space<vmem>>, vector<8x128xf32>
    tpu.vector_store %arg13[%c0_236, %c0_237], %451 {strides = array<i32>} : memref<8x128xf32, #tpu.memory_space<vmem>>, vector<8x128xf32>,
    %c0_238 = arith.constant 0 : index
    %c0_239 = arith.constant 0 : index
    %455 = vector.load %arg12[%c0_238, %c0_239] : memref<8x128xf32, #tpu.memory_space<vmem>>, vector<8x128xf32>
    tpu.vector_store %arg12[%c0_238, %c0_239], %453 {strides = array<i32>} : memref<8x128xf32, #tpu.memory_space<vmem>>, vector<8x128xf32>,
    %c8_i32_240 = arith.constant 8 : i32
    %c0_241 = arith.constant 0 : index
    %c0_242 = arith.constant 0 : index
    %456 = vector.load %arg12[%c0_241, %c0_242] : memref<8x128xf32, #tpu.memory_space<vmem>>, vector<8x128xf32>
    %c0_243 = arith.constant 0 : index
    %c0_244 = arith.constant 0 : index
    %457 = vector.load %arg7[%c0_243, %c0_244] : memref<128x128xf32, #tpu.memory_space<vmem>>, vector<128x128xf32>
    %cst_245 = arith.constant dense<0.000000e+00> : vector<8x128xf32>
    %458 = tpu.matmul %456, %457, %cst_245 {dimension_numbers = #tpu.dot_dimension_numbers<[1], [0], [0], [1], [0, 0, 1, 1], [], []>} : vector<8x128xf32>, vector<128x128xf32>, vector<8x128xf32> -> vector<8x128xf32>
    %c0_246 = arith.constant 0 : index
    %c0_247 = arith.constant 0 : index
    %459 = vector.load %arg8[%c0_246, %c0_247] : memref<1x128xf32, #tpu.memory_space<vmem>>, vector<1x128xf32>
    %460 = vector.broadcast %459 : vector<1x128xf32> to vector<8x128xf32>
    %461 = arith.addf %458, %460 : vector<8x128xf32>
    %c0_248 = arith.constant 0 : index
    %c0_249 = arith.constant 0 : index
    %462 = vector.load %arg9[%c0_248, %c0_249] : memref<8x128xf32, #tpu.memory_space<vmem>>, vector<8x128xf32>
    tpu.vector_store %arg9[%c0_248, %c0_249], %461 {strides = array<i32>} : memref<8x128xf32, #tpu.memory_space<vmem>>, vector<8x128xf32>,
    return
  }
}

</mosaic_0001>

<llo_original>
// kernel: lstm_forward.1
$region0: #{lstm_forward.1}
  #allocation0 [shape = 'u32[]', space=smem, size = 0x4, offset = 0x4, fixed_abs, tag = 'smem constant byte address 0x4 - core index']
  #allocation1 [shape = 'u32[144,128]{1,0:T(1,128)}', space=vmem, size = 0x12000, scoped, tag = 'internal scratch']
  #allocation2 [shape = 'f32[64,128]{1,0:T(8,128)}', space=vmem, size = 0x8000, scoped, tag = 'scratch operand']
  #allocation3 [shape = 'f32[64,512]{1,0:T(8,128)}', space=vmem, size = 0x20000, scoped, tag = 'scratch operand']
  #allocation4 [shape = 'f32[8,128]{1,0:T(8,128)}', space=vmem, size = 0x1000, scoped, tag = 'scratch operand']
  #allocation5 [shape = 'f32[8,128]{1,0:T(8,128)}', space=vmem, size = 0x1000, scoped, tag = 'scratch operand']
  %s0 = inlined_call_operand.vmem [shape: f32[64,16], index: 0, kind: input, shape index: {}]
  %s1 = inlined_call_operand.vmem [shape: f32[16,512], index: 1, kind: input, shape index: {}]
  %s2 = inlined_call_operand.hbm [shape: f32[128,512], index: 2, kind: input, shape index: {}]
  %s3 = inlined_call_operand.vmem [shape: f32[1,512], index: 3, kind: input, shape index: {}]
  %s4 = inlined_call_operand.hbm [shape: f32[128,512], index: 4, kind: input, shape index: {}]
  %s5 = inlined_call_operand.hbm [shape: f32[128,512], index: 5, kind: input, shape index: {}]
  %s6 = inlined_call_operand.vmem [shape: f32[1,512], index: 6, kind: input, shape index: {}]
  %s7 = inlined_call_operand.hbm [shape: f32[128,128], index: 7, kind: input, shape index: {}]
  %s8 = inlined_call_operand.vmem [shape: f32[1,128], index: 8, kind: input, shape index: {}]
  %s9 = inlined_call_operand.vmem [shape: f32[8,128], index: 9, kind: output, shape index: {}]
  %s10 = sld [smem:[#allocation0]]
  $region62: #{lstm_forward.1} parent=0
    _
  %s12 = ssub.s32 1, %s10
  %s13 = scalar_select 0, %s12, %s10
  $region1: #{lstm_forward.1} parent=0
    #allocation6 [shape = 'u8[262144]{0}', space=vmem, size = 0x40000, scoped, tag = 'input window, operand 2, single buffered']
    #allocation7 [shape = 's32[1]{0}', space=sflag, size = 0x4, scoped, tag = 'scoped memory for lstm_forward.1']
    #allocation8 [shape = 'u8[262144]{0}', space=vmem, size = 0x40000, scoped, tag = 'input window, operand 4, single buffered']
    #allocation9 [shape = 's32[1]{0}', space=sflag, size = 0x4, scoped, tag = 'scoped memory for lstm_forward.1']
    #allocation10 [shape = 'u8[262144]{0}', space=vmem, size = 0x40000, scoped, tag = 'input window, operand 5, single buffered']
    #allocation11 [shape = 'u8[65536]{0}', space=vmem, size = 0x10000, scoped, tag = 'input window, operand 7, single buffered']
    #allocation12 [shape = 's32[1]{0}', space=sflag, size = 0x4, scoped, tag = 'scoped memory for lstm_forward.1']
    %14 = vsyncpa [#allocation7], 0
    %15 = vsyncpa [#allocation9], 0
    %16 = vsyncpa [#allocation12], 0
    // Predicated region
    $region2: #{lstm_forward.1} parent=1 // pred_check
      _
    $region3: #{lstm_forward.1} parent=1 // pred_check_branch
      %18 = sbr.rel (0) target = $region5
    $region4: #{lstm_forward.1} parent=1 // pred_region
      _
    $region5: #{lstm_forward.1} parent=1 // pred_fallthru
      _
    // Predicated region
    $region6: #{lstm_forward.1} parent=1 // pred_check
      _
    $region7: #{lstm_forward.1} parent=1 // pred_check_branch
      %20 = sbr.rel (0) target = $region9
    $region8: #{lstm_forward.1} parent=1 // pred_region
      _
    $region9: #{lstm_forward.1} parent=1 // pred_fallthru
      _
    // Predicated region
    $region10: #{lstm_forward.1} parent=1 // pred_check
      _
    $region11: #{lstm_forward.1} parent=1 // pred_check_branch
      %22 = sbr.rel (0) target = $region13
    $region12: #{lstm_forward.1} parent=1 // pred_region
      %s24 = ssub.s32 8192, 8192
      %25 = vsyncadd [#allocation7], %s24
      %s26 = sshll.u32 [#allocation6], 4
      %s27 = int_to_ptr.vmem [resolvable:$true] %s26
      %32 = dma.hbm_to_vmem [thread:$0]  %s2, 8192, %s27, [#allocation7], 512, 512, 32
    $region13: #{lstm_forward.1} parent=1 // pred_fallthru
      _
    // Predicated region
    $region14: #{lstm_forward.1} parent=1 // pred_check
      _
    $region15: #{lstm_forward.1} parent=1 // pred_check_branch
      %34 = sbr.rel (0) target = $region17
    $region16: #{lstm_forward.1} parent=1 // pred_region
      _
    $region17: #{lstm_forward.1} parent=1 // pred_fallthru
      _
    // Predicated region
    $region18: #{lstm_forward.1} parent=1 // pred_check
      _
    $region19: #{lstm_forward.1} parent=1 // pred_check_branch
      %36 = sbr.rel (0) target = $region21
    $region20: #{lstm_forward.1} parent=1 // pred_region
      %s38 = ssub.s32 8192, 8192
      %39 = vsyncadd [#allocation9], %s38
      %s40 = sshll.u32 [#allocation8], 4
      %s41 = int_to_ptr.vmem [resolvable:$true] %s40
      %46 = dma.hbm_to_vmem [thread:$0]  %s4, 8192, %s41, [#allocation9], 512, 512, 32
    $region21: #{lstm_forward.1} parent=1 // pred_fallthru
      _
    // Predicated region
    $region22: #{lstm_forward.1} parent=1 // pred_check
      _
    $region23: #{lstm_forward.1} parent=1 // pred_check_branch
      %48 = sbr.rel (0) target = $region25
    $region24: #{lstm_forward.1} parent=1 // pred_region
      %s50 = ssub.s32 8192, 8192
      %51 = vsyncadd [#allocation9], %s50
      %s52 = sshll.u32 [#allocation10], 4
      %s53 = int_to_ptr.vmem [resolvable:$true] %s52
      %58 = dma.hbm_to_vmem [thread:$0]  %s5, 8192, %s53, [#allocation9], 512, 512, 32
    $region25: #{lstm_forward.1} parent=1 // pred_fallthru
      _
    // Predicated region
    $region26: #{lstm_forward.1} parent=1 // pred_check
      _
    $region27: #{lstm_forward.1} parent=1 // pred_check_branch
      %60 = sbr.rel (0) target = $region29
    $region28: #{lstm_forward.1} parent=1 // pred_region
      _
    $region29: #{lstm_forward.1} parent=1 // pred_fallthru
      _
    // Predicated region
    $region30: #{lstm_forward.1} parent=1 // pred_check
      _
    $region31: #{lstm_forward.1} parent=1 // pred_check_branch
      %62 = sbr.rel (0) target = $region33
    $region32: #{lstm_forward.1} parent=1 // pred_region
      %s64 = ssub.s32 2048, 2048
      %65 = vsyncadd [#allocation12], %s64
      %s66 = sshll.u32 [#allocation11], 4
      %s67 = int_to_ptr.vmem [resolvable:$true] %s66
      %72 = dma.hbm_to_vmem [thread:$0]  %s7, 2048, %s67, [#allocation12], 128, 128, 8
    $region33: #{lstm_forward.1} parent=1 // pred_fallthru
      _
    // Predicated region
    $region34: #{lstm_forward.1} parent=1 // pred_check
      _
    $region35: #{lstm_forward.1} parent=1 // pred_check_branch
      %74 = sbr.rel (0) target = $region37
    $region36: #{lstm_forward.1} parent=1 // pred_region
      _
    $region37: #{lstm_forward.1} parent=1 // pred_fallthru
      _
    // Predicated region
    $region38: #{lstm_forward.1} parent=1 // pred_check
      _
    $region39: #{lstm_forward.1} parent=1 // pred_check_branch
      %76 = sbr.rel (0) target = $region41
    $region40: #{lstm_forward.1} parent=1 // pred_region
      %77 = dma.done [#allocation7], 8192
    $region41: #{lstm_forward.1} parent=1 // pred_fallthru
      _
    // Predicated region
    $region42: #{lstm_forward.1} parent=1 // pred_check
      _
    $region43: #{lstm_forward.1} parent=1 // pred_check_branch
      %79 = sbr.rel (0) target = $region45
    $region44: #{lstm_forward.1} parent=1 // pred_region
      %80 = dma.done [#allocation9], 8192
    $region45: #{lstm_forward.1} parent=1 // pred_fallthru
      _
    // Predicated region
    $region46: #{lstm_forward.1} parent=1 // pred_check
      _
    $region47: #{lstm_forward.1} parent=1 // pred_check_branch
      %82 = sbr.rel (0) target = $region49
    $region48: #{lstm_forward.1} parent=1 // pred_region
      %83 = dma.done [#allocation9], 8192
    $region49: #{lstm_forward.1} parent=1 // pred_fallthru
      _
    // Predicated region
    $region50: #{lstm_forward.1} parent=1 // pred_check
      _
    $region51: #{lstm_forward.1} parent=1 // pred_check_branch
      %85 = sbr.rel (0) target = $region53
    $region52: #{lstm_forward.1} parent=1 // pred_region
      %86 = dma.done [#allocation12], 2048
    $region53: #{lstm_forward.1} parent=1 // pred_fallthru
      _
    %v87 = vld [vmem:[%s1] sm:$0xff]
    %v88 = vld [vmem:[%s1 + $0x8] sm:$0xff]
    %v89 = vld [vmem:[%s1 + $0x10] sm:$0xff]
    %v90 = vld [vmem:[%s1 + $0x18] sm:$0xff]
    %v91 = vld [vmem:[%s1 + $0x20] sm:$0xff]
    %v92 = vld [vmem:[%s1 + $0x28] sm:$0xff]
    %v93 = vld [vmem:[%s1 + $0x30] sm:$0xff]
    %v94 = vld [vmem:[%s1 + $0x38] sm:$0xff]
    %v95 = vld [vmem:[#allocation6] sm:$0xff]
    %v96 = vld [vmem:[#allocation6 + $0x8] sm:$0xff]
    %v97 = vld [vmem:[#allocation6 + $0x10] sm:$0xff]
    %v98 = vld [vmem:[#allocation6 + $0x18] sm:$0xff]
    %v99 = vld [vmem:[#allocation6 + $0x20] sm:$0xff]
    %v100 = vld [vmem:[#allocation6 + $0x28] sm:$0xff]
    %v101 = vld [vmem:[#allocation6 + $0x30] sm:$0xff]
    %v102 = vld [vmem:[#allocation6 + $0x38] sm:$0xff]
    %v103 = vld [vmem:[#allocation6 + $0x40] sm:$0xff]
    %v104 = vld [vmem:[#allocation6 + $0x48] sm:$0xff]
    %v105 = vld [vmem:[#allocation6 + $0x50] sm:$0xff]
    %v106 = vld [vmem:[#allocation6 + $0x58] sm:$0xff]
    %v107 = vld [vmem:[#allocation6 + $0x60] sm:$0xff]
    %v108 = vld [vmem:[#allocation6 + $0x68] sm:$0xff]
    %v109 = vld [vmem:[#allocation6 + $0x70] sm:$0xff]
    %v110 = vld [vmem:[#allocation6 + $0x78] sm:$0xff]
    %v111 = vld [vmem:[#allocation6 + $0x80] sm:$0xff]
    %v112 = vld [vmem:[#allocation6 + $0x88] sm:$0xff]
    %v113 = vld [vmem:[#allocation6 + $0x90] sm:$0xff]
    %v114 = vld [vmem:[#allocation6 + $0x98] sm:$0xff]
    %v115 = vld [vmem:[#allocation6 + $0xa0] sm:$0xff]
    %v116 = vld [vmem:[#allocation6 + $0xa8] sm:$0xff]
    %v117 = vld [vmem:[#allocation6 + $0xb0] sm:$0xff]
    %v118 = vld [vmem:[#allocation6 + $0xb8] sm:$0xff]
    %v119 = vld [vmem:[#allocation6 + $0xc0] sm:$0xff]
    %v120 = vld [vmem:[#allocation6 + $0xc8] sm:$0xff]
    %v121 = vld [vmem:[#allocation6 + $0xd0] sm:$0xff]
    %v122 = vld [vmem:[#allocation6 + $0xd8] sm:$0xff]
    %v123 = vld [vmem:[#allocation6 + $0xe0] sm:$0xff]
    %v124 = vld [vmem:[#allocation6 + $0xe8] sm:$0xff]
    %v125 = vld [vmem:[#allocation6 + $0xf0] sm:$0xff]
    %v126 = vld [vmem:[#allocation6 + $0xf8] sm:$0xff]
    %v127 = vld [vmem:[#allocation6 + $0x100] sm:$0xff]
    %v128 = vld [vmem:[#allocation6 + $0x108] sm:$0xff]
    %v129 = vld [vmem:[#allocation6 + $0x110] sm:$0xff]
    %v130 = vld [vmem:[#allocation6 + $0x118] sm:$0xff]
    %v131 = vld [vmem:[#allocation6 + $0x120] sm:$0xff]
    %v132 = vld [vmem:[#allocation6 + $0x128] sm:$0xff]
    %v133 = vld [vmem:[#allocation6 + $0x130] sm:$0xff]
    %v134 = vld [vmem:[#allocation6 + $0x138] sm:$0xff]
    %v135 = vld [vmem:[#allocation6 + $0x140] sm:$0xff]
    %v136 = vld [vmem:[#allocation6 + $0x148] sm:$0xff]
    %v137 = vld [vmem:[#allocation6 + $0x150] sm:$0xff]
    %v138 = vld [vmem:[#allocation6 + $0x158] sm:$0xff]
    %v139 = vld [vmem:[#allocation6 + $0x160] sm:$0xff]
    %v140 = vld [vmem:[#allocation6 + $0x168] sm:$0xff]
    %v141 = vld [vmem:[#allocation6 + $0x170] sm:$0xff]
    %v142 = vld [vmem:[#allocation6 + $0x178] sm:$0xff]
    %v143 = vld [vmem:[#allocation6 + $0x180] sm:$0xff]
    %v144 = vld [vmem:[#allocation6 + $0x188] sm:$0xff]
    %v145 = vld [vmem:[#allocation6 + $0x190] sm:$0xff]
    %v146 = vld [vmem:[#allocation6 + $0x198] sm:$0xff]
    %v147 = vld [vmem:[#allocation6 + $0x1a0] sm:$0xff]
    %v148 = vld [vmem:[#allocation6 + $0x1a8] sm:$0xff]
    %v149 = vld [vmem:[#allocation6 + $0x1b0] sm:$0xff]
    %v150 = vld [vmem:[#allocation6 + $0x1b8] sm:$0xff]
    %v151 = vld [vmem:[#allocation6 + $0x1c0] sm:$0xff]
    %v152 = vld [vmem:[#allocation6 + $0x1c8] sm:$0xff]
    %v153 = vld [vmem:[#allocation6 + $0x1d0] sm:$0xff]
    %v154 = vld [vmem:[#allocation6 + $0x1d8] sm:$0xff]
    %v155 = vld [vmem:[#allocation6 + $0x1e0] sm:$0xff]
    %v156 = vld [vmem:[#allocation6 + $0x1e8] sm:$0xff]
    %v157 = vld [vmem:[#allocation6 + $0x1f0] sm:$0xff]
    %v158 = vld [vmem:[#allocation6 + $0x1f8] sm:$0xff]
    %v159 = vld [vmem:[%s3] sm:$0xf]
    %v160 = vld [vmem:[%s0] sm:$0xff]
    %v161 = vld [vmem:[%s0 + $0x8] sm:$0xff]
    %v162 = vld [vmem:[%s0 + $0x10] sm:$0xff]
    %v163 = vld [vmem:[%s0 + $0x18] sm:$0xff]
    %v164 = vld [vmem:[%s0 + $0x20] sm:$0xff]
    %v165 = vld [vmem:[%s0 + $0x28] sm:$0xff]
    %v166 = vld [vmem:[%s0 + $0x30] sm:$0xff]
    %v167 = vld [vmem:[%s0 + $0x38] sm:$0xff]
    %v169 = vlaneseq
    %v170 = vshrl.u32 %v169, 7
    %v171 = vsub.s32 0, %v170
    %v172 = vrot.slane %v159, %v171
    %v173 = vlaneseq
    %v174 = vshrl.u32 %v173, 7
    %v175 = vsub.s32 1, %v174
    %v176 = vrot.slane %v159, %v175
    %v177 = vlaneseq
    %v178 = vshrl.u32 %v177, 7
    %v179 = vsub.s32 2, %v178
    %v180 = vrot.slane %v159, %v179
    %v181 = vlaneseq
    %v182 = vshrl.u32 %v181, 7
    %v183 = vsub.s32 3, %v182
    %v184 = vrot.slane %v159, %v183
    %vm189 = vcmask 130048
    %v191 = vsel %vm189, %v160, 0
    %v194 = vsel %vm189, %v161, 0
    %v197 = vsel %vm189, %v162, 0
    %v200 = vsel %vm189, %v163, 0
    %v203 = vsel %vm189, %v164, 0
    %v206 = vsel %vm189, %v165, 0
    %v209 = vsel %vm189, %v166, 0
    %v212 = vsel %vm189, %v167, 0
    %214 = vmatprep.subr.mxu0 %v88
    %215 = vmatpush1.msra.mxu0 %v87
    %216 = vmatprep.subr.mxu0 %v92
    %217 = vmatpush1.msra.mxu0 %v91
    %218 = vmatprep.subr.mxu0 0.0
    %219 = vmatpush1.msra.mxu0 0.0
    %220 = vmatprep.subr.mxu0 0.0
    %221 = vmatpush1.msra.mxu0 0.0
    %222 = vmatprep.subr.mxu0 0.0
    %223 = vmatpush1.msra.mxu0 0.0
    %224 = vmatprep.subr.mxu0 0.0
    %225 = vmatpush1.msra.mxu0 0.0
    %226 = vmatprep.subr.mxu0 0.0
    %227 = vmatpush1.msra.mxu0 0.0
    %228 = vmatprep.subr.mxu0 0.0
    %229 = vmatpush1.msra.mxu0 0.0
    %230 = vmatprep.subr.mxu0 0.0
    %231 = vmatpush1.msra.mxu0 0.0
    %232 = vmatprep.subr.mxu0 0.0
    %233 = vmatpush1.msra.mxu0 0.0
    %234 = vmatprep.subr.mxu0 0.0
    %235 = vmatpush1.msra.mxu0 0.0
    %236 = vmatprep.subr.mxu0 0.0
    %237 = vmatpush1.msra.mxu0 0.0
    %238 = vmatprep.subr.mxu0 0.0
    %239 = vmatpush1.msra.mxu0 0.0
    %240 = vmatprep.subr.mxu0 0.0
    %241 = vmatpush1.msra.mxu0 0.0
    %242 = vmatprep.subr.mxu0 0.0
    %243 = vmatpush1.msra.mxu0 0.0
    %244 = vmatprep.subr.mxu0 0.0
    %245 = vmatpush1.msra.mxu0 0.0
    %246 = vmatprep.subr.mxu0 0.0
    %247 = vmatpush1.msra.mxu0 0.0
    %248 = vmatprep.subr.mxu0 0.0
    %249 = vmatpush1.msra.mxu0 0.0
    %250 = vmatprep.subr.mxu0 0.0
    %251 = vmatpush1.msra.mxu0 0.0
    %252 = vmatprep.subr.mxu0 0.0
    %253 = vmatpush1.msra.mxu0 0.0
    %254 = vmatprep.subr.mxu0 0.0
    %255 = vmatpush1.msra.mxu0 0.0
    %256 = vmatprep.subr.mxu0 0.0
    %257 = vmatpush1.msra.mxu0 0.0
    %258 = vmatprep.subr.mxu0 0.0
    %259 = vmatpush1.msra.mxu0 0.0
    %260 = vmatprep.subr.mxu0 0.0
    %261 = vmatpush1.msra.mxu0 0.0
    %262 = vmatprep.subr.mxu0 0.0
    %263 = vmatpush1.msra.mxu0 0.0
    %264 = vmatprep.subr.mxu0 0.0
    %265 = vmatpush1.msra.mxu0 0.0
    %266 = vmatprep.subr.mxu0 0.0
    %267 = vmatpush1.msra.mxu0 0.0
    %268 = vmatprep.subr.mxu0 0.0
    %269 = vmatpush1.msra.mxu0 0.0
    %270 = vmatprep.subr.mxu0 0.0
    %271 = vmatpush1.msra.mxu0 0.0
    %272 = vmatprep.subr.mxu0 0.0
    %273 = vmatpush1.msra.mxu0 0.0
    %274 = vmatprep.subr.mxu0 0.0
    %275 = vmatpush1.msra.mxu0 0.0
    %276 = vmatprep.subr.mxu0 0.0
    %277 = vmatpush1.msra.mxu0 0.0
    %278 = vmatprep.mubr.f32.mxu0 0.0
    %279 = vmatmul.mubr.f32.gmra.mrb[0].mxu0 %v191
    %v280 = vpop.f32.mrb[0].mxu0
    %v281 = vadd.f32 %v172, %v280
    %v282 = vpop.f32.mrb[0].mxu0
    %v283 = vadd.f32 %v176, %v282
    %284 = vmatprep.mubr.f32.mxu0 0.0
    %285 = vmatmul.mubr.f32.gmra.mrb[0].mxu0 %v194
    %v286 = vpop.f32.mrb[0].mxu0
    %v287 = vadd.f32 %v172, %v286
    %v288 = vpop.f32.mrb[0].mxu0
    %v289 = vadd.f32 %v176, %v288
    %290 = vmatprep.mubr.f32.mxu0 0.0
    %291 = vmatmul.mubr.f32.gmra.mrb[0].mxu0 %v197
    %v292 = vpop.f32.mrb[0].mxu0
    %v293 = vadd.f32 %v172, %v292
    %v294 = vpop.f32.mrb[0].mxu0
    %v295 = vadd.f32 %v176, %v294
    %296 = vmatprep.mubr.f32.mxu0 0.0
    %297 = vmatmul.mubr.f32.gmra.mrb[0].mxu0 %v200
    %v298 = vpop.f32.mrb[0].mxu0
    %v299 = vadd.f32 %v172, %v298
    %v300 = vpop.f32.mrb[0].mxu0
    %v301 = vadd.f32 %v176, %v300
    %302 = vmatprep.mubr.f32.mxu0 0.0
    %303 = vmatmul.mubr.f32.gmra.mrb[0].mxu0 %v203
    %v304 = vpop.f32.mrb[0].mxu0
    %v305 = vadd.f32 %v172, %v304
    %v306 = vpop.f32.mrb[0].mxu0
    %v307 = vadd.f32 %v176, %v306
    %308 = vmatprep.mubr.f32.mxu0 0.0
    %309 = vmatmul.mubr.f32.gmra.mrb[0].mxu0 %v206
    %v310 = vpop.f32.mrb[0].mxu0
    %v311 = vadd.f32 %v172, %v310
    %v312 = vpop.f32.mrb[0].mxu0
    %v313 = vadd.f32 %v176, %v312
    %314 = vmatprep.mubr.f32.mxu0 0.0
    %315 = vmatmul.mubr.f32.gmra.mrb[0].mxu0 %v209
    %v316 = vpop.f32.mrb[0].mxu0
    %v317 = vadd.f32 %v172, %v316
    %v318 = vpop.f32.mrb[0].mxu0
    %v319 = vadd.f32 %v176, %v318
    %320 = vmatprep.mubr.f32.mxu0 0.0
    %321 = vmatmul.mubr.f32.gmra.mrb[0].mxu0 %v212
    %v322 = vpop.f32.mrb[0].mxu0
    %v323 = vadd.f32 %v172, %v322
    %v324 = vpop.f32.mrb[0].mxu0
    %v325 = vadd.f32 %v176, %v324
    %326 = vdwg.mxu0
    %327 = vmatprep.subr.mxu0 %v90
    %328 = vmatpush1.msra.mxu0 %v89
    %329 = vmatprep.subr.mxu0 %v94
    %330 = vmatpush1.msra.mxu0 %v93
    %331 = vmatprep.subr.mxu0 0.0
    %332 = vmatpush1.msra.mxu0 0.0
    %333 = vmatprep.subr.mxu0 0.0
    %334 = vmatpush1.msra.mxu0 0.0
    %335 = vmatprep.subr.mxu0 0.0
    %336 = vmatpush1.msra.mxu0 0.0
    %337 = vmatprep.subr.mxu0 0.0
    %338 = vmatpush1.msra.mxu0 0.0
    %339 = vmatprep.subr.mxu0 0.0
    %340 = vmatpush1.msra.mxu0 0.0
    %341 = vmatprep.subr.mxu0 0.0
    %342 = vmatpush1.msra.mxu0 0.0
    %343 = vmatprep.subr.mxu0 0.0
    %344 = vmatpush1.msra.mxu0 0.0
    %345 = vmatprep.subr.mxu0 0.0
    %346 = vmatpush1.msra.mxu0 0.0
    %347 = vmatprep.subr.mxu0 0.0
    %348 = vmatpush1.msra.mxu0 0.0
    %349 = vmatprep.subr.mxu0 0.0
    %350 = vmatpush1.msra.mxu0 0.0
    %351 = vmatprep.subr.mxu0 0.0
    %352 = vmatpush1.msra.mxu0 0.0
    %353 = vmatprep.subr.mxu0 0.0
    %354 = vmatpush1.msra.mxu0 0.0
    %355 = vmatprep.subr.mxu0 0.0
    %356 = vmatpush1.msra.mxu0 0.0
    %357 = vmatprep.subr.mxu0 0.0
    %358 = vmatpush1.msra.mxu0 0.0
    %359 = vmatprep.subr.mxu0 0.0
    %360 = vmatpush1.msra.mxu0 0.0
    %361 = vmatprep.subr.mxu0 0.0
    %362 = vmatpush1.msra.mxu0 0.0
    %363 = vmatprep.subr.mxu0 0.0
    %364 = vmatpush1.msra.mxu0 0.0
    %365 = vmatprep.subr.mxu0 0.0
    %366 = vmatpush1.msra.mxu0 0.0
    %367 = vmatprep.subr.mxu0 0.0
    %368 = vmatpush1.msra.mxu0 0.0
    %369 = vmatprep.subr.mxu0 0.0
    %370 = vmatpush1.msra.mxu0 0.0
    %371 = vmatprep.subr.mxu0 0.0
    %372 = vmatpush1.msra.mxu0 0.0
    %373 = vmatprep.subr.mxu0 0.0
    %374 = vmatpush1.msra.mxu0 0.0
    %375 = vmatprep.subr.mxu0 0.0
    %376 = vmatpush1.msra.mxu0 0.0
    %377 = vmatprep.subr.mxu0 0.0
    %378 = vmatpush1.msra.mxu0 0.0
    %379 = vmatprep.subr.mxu0 0.0
    %380 = vmatpush1.msra.mxu0 0.0
    %381 = vmatprep.subr.mxu0 0.0
    %382 = vmatpush1.msra.mxu0 0.0
    %383 = vmatprep.subr.mxu0 0.0
    %384 = vmatpush1.msra.mxu0 0.0
    %385 = vmatprep.subr.mxu0 0.0
    %386 = vmatpush1.msra.mxu0 0.0
    %387 = vmatprep.subr.mxu0 0.0
    %388 = vmatpush1.msra.mxu0 0.0
    %389 = vmatprep.subr.mxu0 0.0
    %390 = vmatpush1.msra.mxu0 0.0
    %391 = vmatprep.mubr.f32.mxu0 0.0
    %392 = vmatmul.mubr.f32.gmra.mrb[0].mxu0 %v191
    %v393 = vpop.f32.mrb[0].mxu0
    %v394 = vadd.f32 %v180, %v393
    %v395 = vpop.f32.mrb[0].mxu0
    %v396 = vadd.f32 %v184, %v395
    %397 = vmatprep.mubr.f32.mxu0 0.0
    %398 = vmatmul.mubr.f32.gmra.mrb[0].mxu0 %v194
    %v399 = vpop.f32.mrb[0].mxu0
    %v400 = vadd.f32 %v180, %v399
    %v401 = vpop.f32.mrb[0].mxu0
    %v402 = vadd.f32 %v184, %v401
    %403 = vmatprep.mubr.f32.mxu0 0.0
    %404 = vmatmul.mubr.f32.gmra.mrb[0].mxu0 %v197
    %v405 = vpop.f32.mrb[0].mxu0
    %v406 = vadd.f32 %v180, %v405
    %v407 = vpop.f32.mrb[0].mxu0
    %v408 = vadd.f32 %v184, %v407
    %409 = vmatprep.mubr.f32.mxu0 0.0
    %410 = vmatmul.mubr.f32.gmra.mrb[0].mxu0 %v200
    %v411 = vpop.f32.mrb[0].mxu0
    %v412 = vadd.f32 %v180, %v411
    %v413 = vpop.f32.mrb[0].mxu0
    %v414 = vadd.f32 %v184, %v413
    %415 = vmatprep.mubr.f32.mxu0 0.0
    %416 = vmatmul.mubr.f32.gmra.mrb[0].mxu0 %v203
    %v417 = vpop.f32.mrb[0].mxu0
    %v418 = vadd.f32 %v180, %v417
    %v419 = vpop.f32.mrb[0].mxu0
    %v420 = vadd.f32 %v184, %v419
    %421 = vmatprep.mubr.f32.mxu0 0.0
    %422 = vmatmul.mubr.f32.gmra.mrb[0].mxu0 %v206
    %v423 = vpop.f32.mrb[0].mxu0
    %v424 = vadd.f32 %v180, %v423
    %v425 = vpop.f32.mrb[0].mxu0
    %v426 = vadd.f32 %v184, %v425
    %427 = vmatprep.mubr.f32.mxu0 0.0
    %428 = vmatmul.mubr.f32.gmra.mrb[0].mxu0 %v209
    %v429 = vpop.f32.mrb[0].mxu0
    %v430 = vadd.f32 %v180, %v429
    %v431 = vpop.f32.mrb[0].mxu0
    %v432 = vadd.f32 %v184, %v431
    %433 = vmatprep.mubr.f32.mxu0 0.0
    %434 = vmatmul.mubr.f32.gmra.mrb[0].mxu0 %v212
    %v435 = vpop.f32.mrb[0].mxu0
    %v436 = vadd.f32 %v180, %v435
    %v437 = vpop.f32.mrb[0].mxu0
    %v438 = vadd.f32 %v184, %v437
    %439 = vdwg.mxu0
    %440 = vst [vmem:[#allocation3] sm:$0xff] %v281
    %441 = vst [vmem:[#allocation3 + $0x8] sm:$0xff] %v283
    %442 = vst [vmem:[#allocation3 + $0x10] sm:$0xff] %v394
    %443 = vst [vmem:[#allocation3 + $0x18] sm:$0xff] %v396
    %444 = vst [vmem:[#allocation3 + $0x20] sm:$0xff] %v287
    %445 = vst [vmem:[#allocation3 + $0x28] sm:$0xff] %v289
    %446 = vst [vmem:[#allocation3 + $0x30] sm:$0xff] %v400
    %447 = vst [vmem:[#allocation3 + $0x38] sm:$0xff] %v402
    %448 = vst [vmem:[#allocation3 + $0x40] sm:$0xff] %v293
    %449 = vst [vmem:[#allocation3 + $0x48] sm:$0xff] %v295
    %450 = vst [vmem:[#allocation3 + $0x50] sm:$0xff] %v406
    %451 = vst [vmem:[#allocation3 + $0x58] sm:$0xff] %v408
    %452 = vst [vmem:[#allocation3 + $0x60] sm:$0xff] %v299
    %453 = vst [vmem:[#allocation3 + $0x68] sm:$0xff] %v301
    %454 = vst [vmem:[#allocation3 + $0x70] sm:$0xff] %v412
    %455 = vst [vmem:[#allocation3 + $0x78] sm:$0xff] %v414
    %456 = vst [vmem:[#allocation3 + $0x80] sm:$0xff] %v305
    %457 = vst [vmem:[#allocation3 + $0x88] sm:$0xff] %v307
    %458 = vst [vmem:[#allocation3 + $0x90] sm:$0xff] %v418
    %459 = vst [vmem:[#allocation3 + $0x98] sm:$0xff] %v420
    %460 = vst [vmem:[#allocation3 + $0xa0] sm:$0xff] %v311
    %461 = vst [vmem:[#allocation3 + $0xa8] sm:$0xff] %v313
    %462 = vst [vmem:[#allocation3 + $0xb0] sm:$0xff] %v424
    %463 = vst [vmem:[#allocation3 + $0xb8] sm:$0xff] %v426
    %464 = vst [vmem:[#allocation3 + $0xc0] sm:$0xff] %v317
    %465 = vst [vmem:[#allocation3 + $0xc8] sm:$0xff] %v319
    %466 = vst [vmem:[#allocation3 + $0xd0] sm:$0xff] %v430
    %467 = vst [vmem:[#allocation3 + $0xd8] sm:$0xff] %v432
    %468 = vst [vmem:[#allocation3 + $0xe0] sm:$0xff] %v323
    %469 = vst [vmem:[#allocation3 + $0xe8] sm:$0xff] %v325
    %470 = vst [vmem:[#allocation3 + $0xf0] sm:$0xff] %v436
    %471 = vst [vmem:[#allocation3 + $0xf8] sm:$0xff] %v438
    %472 = vst [vmem:[#allocation4] sm:$0xff] 0.0
    %473 = vst [vmem:[#allocation5] sm:$0xff] 0.0
    %s474 = smul.u32 0, 4
    %s475 = smul.addr %s474, 8
    %s476 = scalar_lea.vmem [#allocation3], %s475
    %v477 = vld [vmem:[%s476] sm:$0xff]
    %v478 = vld [vmem:[%s476 + $0x8] sm:$0xff]
    %v479 = vld [vmem:[%s476 + $0x10] sm:$0xff]
    %v480 = vld [vmem:[%s476 + $0x18] sm:$0xff]
    %v481 = vld [vmem:[#allocation4] sm:$0xff]
    %482 = vmatprep.subr.mxu0 %v96
    %483 = vmatpush1.msra.mxu0 %v95
    %484 = vmatprep.subr.mxu0 %v100
    %485 = vmatpush1.msra.mxu0 %v99
    %486 = vmatprep.subr.mxu0 %v104
    %487 = vmatpush1.msra.mxu0 %v103
    %488 = vmatprep.subr.mxu0 %v108
    %489 = vmatpush1.msra.mxu0 %v107
    %490 = vmatprep.subr.mxu0 %v112
    %491 = vmatpush1.msra.mxu0 %v111
    %492 = vmatprep.subr.mxu0 %v116
    %493 = vmatpush1.msra.mxu0 %v115
    %494 = vmatprep.subr.mxu0 %v120
    %495 = vmatpush1.msra.mxu0 %v119
    %496 = vmatprep.subr.mxu0 %v124
    %497 = vmatpush1.msra.mxu0 %v123
    %498 = vmatprep.subr.mxu0 %v128
    %499 = vmatpush1.msra.mxu0 %v127
    %500 = vmatprep.subr.mxu0 %v132
    %501 = vmatpush1.msra.mxu0 %v131
    %502 = vmatprep.subr.mxu0 %v136
    %503 = vmatpush1.msra.mxu0 %v135
    %504 = vmatprep.subr.mxu0 %v140
    %505 = vmatpush1.msra.mxu0 %v139
    %506 = vmatprep.subr.mxu0 %v144
    %507 = vmatpush1.msra.mxu0 %v143
    %508 = vmatprep.subr.mxu0 %v148
    %509 = vmatpush1.msra.mxu0 %v147
    %510 = vmatprep.subr.mxu0 %v152
    %511 = vmatpush1.msra.mxu0 %v151
    %512 = vmatprep.subr.mxu0 %v156
    %513 = vmatpush1.msra.mxu0 %v155
    %514 = vmatprep.subr.mxu0 0.0
    %515 = vmatpush1.msra.mxu0 0.0
    %516 = vmatprep.subr.mxu0 0.0
    %517 = vmatpush1.msra.mxu0 0.0
    %518 = vmatprep.subr.mxu0 0.0
    %519 = vmatpush1.msra.mxu0 0.0
    %520 = vmatprep.subr.mxu0 0.0
    %521 = vmatpush1.msra.mxu0 0.0
    %522 = vmatprep.subr.mxu0 0.0
    %523 = vmatpush1.msra.mxu0 0.0
    %524 = vmatprep.subr.mxu0 0.0
    %525 = vmatpush1.msra.mxu0 0.0
    %526 = vmatprep.subr.mxu0 0.0
    %527 = vmatpush1.msra.mxu0 0.0
    %528 = vmatprep.subr.mxu0 0.0
    %529 = vmatpush1.msra.mxu0 0.0
    %530 = vmatprep.subr.mxu0 0.0
    %531 = vmatpush1.msra.mxu0 0.0
    %532 = vmatprep.subr.mxu0 0.0
    %533 = vmatpush1.msra.mxu0 0.0
    %534 = vmatprep.subr.mxu0 0.0
    %535 = vmatpush1.msra.mxu0 0.0
    %536 = vmatprep.subr.mxu0 0.0
    %537 = vmatpush1.msra.mxu0 0.0
    %538 = vmatprep.subr.mxu0 0.0
    %539 = vmatpush1.msra.mxu0 0.0
    %540 = vmatprep.subr.mxu0 0.0
    %541 = vmatpush1.msra.mxu0 0.0
    %542 = vmatprep.subr.mxu0 0.0
    %543 = vmatpush1.msra.mxu0 0.0
    %544 = vmatprep.subr.mxu0 0.0
    %545 = vmatpush1.msra.mxu0 0.0
    %546 = vmatprep.mubr.f32.mxu0 0.0
    %547 = vmatmul.mubr.f32.gmra.mrb[0].mxu0 %v481
    %v548 = vpop.f32.mrb[0].mxu0
    %v549 = vadd.f32 0.0, %v548
    %v550 = vpop.f32.mrb[0].mxu0
    %v551 = vadd.f32 0.0, %v550
    %552 = vdwg.mxu0
    %553 = vmatprep.subr.mxu0 %v98
    %554 = vmatpush1.msra.mxu0 %v97
    %555 = vmatprep.subr.mxu0 %v102
    %556 = vmatpush1.msra.mxu0 %v101
    %557 = vmatprep.subr.mxu0 %v106
    %558 = vmatpush1.msra.mxu0 %v105
    %559 = vmatprep.subr.mxu0 %v110
    %560 = vmatpush1.msra.mxu0 %v109
    %561 = vmatprep.subr.mxu0 %v114
    %562 = vmatpush1.msra.mxu0 %v113
    %563 = vmatprep.subr.mxu0 %v118
    %564 = vmatpush1.msra.mxu0 %v117
    %565 = vmatprep.subr.mxu0 %v122
    %566 = vmatpush1.msra.mxu0 %v121
    %567 = vmatprep.subr.mxu0 %v126
    %568 = vmatpush1.msra.mxu0 %v125
    %569 = vmatprep.subr.mxu0 %v130
    %570 = vmatpush1.msra.mxu0 %v129
    %571 = vmatprep.subr.mxu0 %v134
    %572 = vmatpush1.msra.mxu0 %v133
    %573 = vmatprep.subr.mxu0 %v138
    %574 = vmatpush1.msra.mxu0 %v137
    %575 = vmatprep.subr.mxu0 %v142
    %576 = vmatpush1.msra.mxu0 %v141
    %577 = vmatprep.subr.mxu0 %v146
    %578 = vmatpush1.msra.mxu0 %v145
    %579 = vmatprep.subr.mxu0 %v150
    %580 = vmatpush1.msra.mxu0 %v149
    %581 = vmatprep.subr.mxu0 %v154
    %582 = vmatpush1.msra.mxu0 %v153
    %583 = vmatprep.subr.mxu0 %v158
    %584 = vmatpush1.msra.mxu0 %v157
    %585 = vmatprep.subr.mxu0 0.0
    %586 = vmatpush1.msra.mxu0 0.0
    %587 = vmatprep.subr.mxu0 0.0
    %588 = vmatpush1.msra.mxu0 0.0
    %589 = vmatprep.subr.mxu0 0.0
    %590 = vmatpush1.msra.mxu0 0.0
    %591 = vmatprep.subr.mxu0 0.0
    %592 = vmatpush1.msra.mxu0 0.0
    %593 = vmatprep.subr.mxu0 0.0
    %594 = vmatpush1.msra.mxu0 0.0
    %595 = vmatprep.subr.mxu0 0.0
    %596 = vmatpush1.msra.mxu0 0.0
    %597 = vmatprep.subr.mxu0 0.0
    %598 = vmatpush1.msra.mxu0 0.0
    %599 = vmatprep.subr.mxu0 0.0
    %600 = vmatpush1.msra.mxu0 0.0
    %601 = vmatprep.subr.mxu0 0.0
    %602 = vmatpush1.msra.mxu0 0.0
    %603 = vmatprep.subr.mxu0 0.0
    %604 = vmatpush1.msra.mxu0 0.0
    %605 = vmatprep.subr.mxu0 0.0
    %606 = vmatpush1.msra.mxu0 0.0
    %607 = vmatprep.subr.mxu0 0.0
    %608 = vmatpush1.msra.mxu0 0.0
    %609 = vmatprep.subr.mxu0 0.0
    %610 = vmatpush1.msra.mxu0 0.0
    %611 = vmatprep.subr.mxu0 0.0
    %612 = vmatpush1.msra.mxu0 0.0
    %613 = vmatprep.subr.mxu0 0.0
    %614 = vmatpush1.msra.mxu0 0.0
    %615 = vmatprep.subr.mxu0 0.0
    %616 = vmatpush1.msra.mxu0 0.0
    %617 = vmatprep.mubr.f32.mxu0 0.0
    %618 = vmatmul.mubr.f32.gmra.mrb[0].mxu0 %v481
    %v619 = vpop.f32.mrb[0].mxu0
    %v620 = vadd.f32 0.0, %v619
    %v621 = vpop.f32.mrb[0].mxu0
    %v622 = vadd.f32 0.0, %v621
    %623 = vdwg.mxu0
    %v624 = vadd.f32 %v477, %v549
    %v625 = vadd.f32 %v478, %v551
    %v626 = vadd.f32 %v479, %v620
    %v627 = vadd.f32 %v480, %v622
    %v628 = vxor.u32 %v624, 2147483648
    %v629 = vxor.u32 %v625, 2147483648
    %v630 = vxor.u32 %v626, 2147483648
    %v631 = vmul.f32 %v628, 1.442695
    %v632 = vpow.pop %v631
    %v633 = vmul.f32 %v629, 1.442695
    %v634 = vpow.pop %v633
    %v635 = vmul.f32 %v630, 1.442695
    %v636 = vpow.pop %v635
    %v637 = vadd.f32 %v632, 1.0
    %v638 = vadd.f32 %v634, 1.0
    %v639 = vadd.f32 %v636, 1.0
    %v640 = vrcp.pop %v637
    %v641 = vmul.f32 1.0, %v640
    %v642 = vrcp.pop %v638
    %v643 = vmul.f32 1.0, %v642
    %v644 = vrcp.pop %v639
    %v645 = vmul.f32 1.0, %v644
    %v646 = vtanh.pop %v627
    %v647 = vld [vmem:[#allocation5] sm:$0xff]
    %v648 = vmul.f32 %v643, %v647
    %v649 = vmul.f32 %v641, %v646
    %v650 = vadd.f32 %v648, %v649
    %v651 = vtanh.pop %v650
    %v652 = vmul.f32 %v645, %v651
    %653 = vst [vmem:[#allocation5] sm:$0xff] %v650
    %654 = vst [vmem:[#allocation4] sm:$0xff] %v652
    %655 = vst [vmem:[#allocation2] sm:$0xff] %v652
    %s656 = smul.u32 1, 4
    %s657 = smul.addr %s656, 8
    %s658 = scalar_lea.vmem [#allocation3], %s657
    %v659 = vld [vmem:[%s658] sm:$0xff]
    %v660 = vld [vmem:[%s658 + $0x8] sm:$0xff]
    %v661 = vld [vmem:[%s658 + $0x10] sm:$0xff]
    %v662 = vld [vmem:[%s658 + $0x18] sm:$0xff]
    %v663 = vld [vmem:[#allocation4] sm:$0xff]
    %664 = vmatprep.subr.mxu0 %v96
    %665 = vmatpush1.msra.mxu0 %v95
    %666 = vmatprep.subr.mxu0 %v100
    %667 = vmatpush1.msra.mxu0 %v99
    %668 = vmatprep.subr.mxu0 %v104
    %669 = vmatpush1.msra.mxu0 %v103
    %670 = vmatprep.subr.mxu0 %v108
    %671 = vmatpush1.msra.mxu0 %v107
    %672 = vmatprep.subr.mxu0 %v112
    %673 = vmatpush1.msra.mxu0 %v111
    %674 = vmatprep.subr.mxu0 %v116
    %675 = vmatpush1.msra.mxu0 %v115
    %676 = vmatprep.subr.mxu0 %v120
    %677 = vmatpush1.msra.mxu0 %v119
    %678 = vmatprep.subr.mxu0 %v124
    %679 = vmatpush1.msra.mxu0 %v123
    %680 = vmatprep.subr.mxu0 %v128
    %681 = vmatpush1.msra.mxu0 %v127
    %682 = vmatprep.subr.mxu0 %v132
    %683 = vmatpush1.msra.mxu0 %v131
    %684 = vmatprep.subr.mxu0 %v136
    %685 = vmatpush1.msra.mxu0 %v135
    %686 = vmatprep.subr.mxu0 %v140
    %687 = vmatpush1.msra.mxu0 %v139
    %688 = vmatprep.subr.mxu0 %v144
    %689 = vmatpush1.msra.mxu0 %v143
    %690 = vmatprep.subr.mxu0 %v148
    %691 = vmatpush1.msra.mxu0 %v147
    %692 = vmatprep.subr.mxu0 %v152
    %693 = vmatpush1.msra.mxu0 %v151
    %694 = vmatprep.subr.mxu0 %v156
    %695 = vmatpush1.msra.mxu0 %v155
    %696 = vmatprep.subr.mxu0 0.0
    %697 = vmatpush1.msra.mxu0 0.0
    %698 = vmatprep.subr.mxu0 0.0
    %699 = vmatpush1.msra.mxu0 0.0
    %700 = vmatprep.subr.mxu0 0.0
    %701 = vmatpush1.msra.mxu0 0.0
    %702 = vmatprep.subr.mxu0 0.0
    %703 = vmatpush1.msra.mxu0 0.0
    %704 = vmatprep.subr.mxu0 0.0
    %705 = vmatpush1.msra.mxu0 0.0
    %706 = vmatprep.subr.mxu0 0.0
    %707 = vmatpush1.msra.mxu0 0.0
    %708 = vmatprep.subr.mxu0 0.0
    %709 = vmatpush1.msra.mxu0 0.0
    %710 = vmatprep.subr.mxu0 0.0
    %711 = vmatpush1.msra.mxu0 0.0
    %712 = vmatprep.subr.mxu0 0.0
    %713 = vmatpush1.msra.mxu0 0.0
    %714 = vmatprep.subr.mxu0 0.0
    %715 = vmatpush1.msra.mxu0 0.0
    %716 = vmatprep.subr.mxu0 0.0
    %717 = vmatpush1.msra.mxu0 0.0
    %718 = vmatprep.subr.mxu0 0.0
    %719 = vmatpush1.msra.mxu0 0.0
    %720 = vmatprep.subr.mxu0 0.0
    %721 = vmatpush1.msra.mxu0 0.0
    %722 = vmatprep.subr.mxu0 0.0
    %723 = vmatpush1.msra.mxu0 0.0
    %724 = vmatprep.subr.mxu0 0.0
    %725 = vmatpush1.msra.mxu0 0.0
    %726 = vmatprep.subr.mxu0 0.0
    %727 = vmatpush1.msra.mxu0 0.0
    %728 = vmatprep.mubr.f32.mxu0 0.0
    %729 = vmatmul.mubr.f32.gmra.mrb[0].mxu0 %v663
    %v730 = vpop.f32.mrb[0].mxu0
    %v731 = vadd.f32 0.0, %v730
    %v732 = vpop.f32.mrb[0].mxu0
    %v733 = vadd.f32 0.0, %v732
    %734 = vdwg.mxu0
    %735 = vmatprep.subr.mxu0 %v98
    %736 = vmatpush1.msra.mxu0 %v97
    %737 = vmatprep.subr.mxu0 %v102
    %738 = vmatpush1.msra.mxu0 %v101
    %739 = vmatprep.subr.mxu0 %v106
    %740 = vmatpush1.msra.mxu0 %v105
    %741 = vmatprep.subr.mxu0 %v110
    %742 = vmatpush1.msra.mxu0 %v109
    %743 = vmatprep.subr.mxu0 %v114
    %744 = vmatpush1.msra.mxu0 %v113
    %745 = vmatprep.subr.mxu0 %v118
    %746 = vmatpush1.msra.mxu0 %v117
    %747 = vmatprep.subr.mxu0 %v122
    %748 = vmatpush1.msra.mxu0 %v121
    %749 = vmatprep.subr.mxu0 %v126
    %750 = vmatpush1.msra.mxu0 %v125
    %751 = vmatprep.subr.mxu0 %v130
    %752 = vmatpush1.msra.mxu0 %v129
    %753 = vmatprep.subr.mxu0 %v134
    %754 = vmatpush1.msra.mxu0 %v133
    %755 = vmatprep.subr.mxu0 %v138
    %756 = vmatpush1.msra.mxu0 %v137
    %757 = vmatprep.subr.mxu0 %v142
    %758 = vmatpush1.msra.mxu0 %v141
    %759 = vmatprep.subr.mxu0 %v146
    %760 = vmatpush1.msra.mxu0 %v145
    %761 = vmatprep.subr.mxu0 %v150
    %762 = vmatpush1.msra.mxu0 %v149
    %763 = vmatprep.subr.mxu0 %v154
    %764 = vmatpush1.msra.mxu0 %v153
    %765 = vmatprep.subr.mxu0 %v158
    %766 = vmatpush1.msra.mxu0 %v157
    %767 = vmatprep.subr.mxu0 0.0
    %768 = vmatpush1.msra.mxu0 0.0
    %769 = vmatprep.subr.mxu0 0.0
    %770 = vmatpush1.msra.mxu0 0.0
    %771 = vmatprep.subr.mxu0 0.0
    %772 = vmatpush1.msra.mxu0 0.0
    %773 = vmatprep.subr.mxu0 0.0
    %774 = vmatpush1.msra.mxu0 0.0
    %775 = vmatprep.subr.mxu0 0.0
    %776 = vmatpush1.msra.mxu0 0.0
    %777 = vmatprep.subr.mxu0 0.0
    %778 = vmatpush1.msra.mxu0 0.0
    %779 = vmatprep.subr.mxu0 0.0
    %780 = vmatpush1.msra.mxu0 0.0
    %781 = vmatprep.subr.mxu0 0.0
    %782 = vmatpush1.msra.mxu0 0.0
    %783 = vmatprep.subr.mxu0 0.0
    %784 = vmatpush1.msra.mxu0 0.0
    %785 = vmatprep.subr.mxu0 0.0
    %786 = vmatpush1.msra.mxu0 0.0
    %787 = vmatprep.subr.mxu0 0.0
    %788 = vmatpush1.msra.mxu0 0.0
    %789 = vmatprep.subr.mxu0 0.0
    %790 = vmatpush1.msra.mxu0 0.0
    %791 = vmatprep.subr.mxu0 0.0
    %792 = vmatpush1.msra.mxu0 0.0
    %793 = vmatprep.subr.mxu0 0.0
    %794 = vmatpush1.msra.mxu0 0.0
    %795 = vmatprep.subr.mxu0 0.0
    %796 = vmatpush1.msra.mxu0 0.0
    %797 = vmatprep.subr.mxu0 0.0
    %798 = vmatpush1.msra.mxu0 0.0
    %799 = vmatprep.mubr.f32.mxu0 0.0
    %800 = vmatmul.mubr.f32.gmra.mrb[0].mxu0 %v663
    %v801 = vpop.f32.mrb[0].mxu0
    %v802 = vadd.f32 0.0, %v801
    %v803 = vpop.f32.mrb[0].mxu0
    %v804 = vadd.f32 0.0, %v803
    %805 = vdwg.mxu0
    %v806 = vadd.f32 %v659, %v731
    %v807 = vadd.f32 %v660, %v733
    %v808 = vadd.f32 %v661, %v802
    %v809 = vadd.f32 %v662, %v804
    %v810 = vxor.u32 %v806, 2147483648
    %v811 = vxor.u32 %v807, 2147483648
    %v812 = vxor.u32 %v808, 2147483648
    %v813 = vmul.f32 %v810, 1.442695
    %v814 = vpow.pop %v813
    %v815 = vmul.f32 %v811, 1.442695
    %v816 = vpow.pop %v815
    %v817 = vmul.f32 %v812, 1.442695
    %v818 = vpow.pop %v817
    %v819 = vadd.f32 %v814, 1.0
    %v820 = vadd.f32 %v816, 1.0
    %v821 = vadd.f32 %v818, 1.0
    %v822 = vrcp.pop %v819
    %v823 = vmul.f32 1.0, %v822
    %v824 = vrcp.pop %v820
    %v825 = vmul.f32 1.0, %v824
    %v826 = vrcp.pop %v821
    %v827 = vmul.f32 1.0, %v826
    %v828 = vtanh.pop %v809
    %v829 = vld [vmem:[#allocation5] sm:$0xff]
    %v830 = vmul.f32 %v825, %v829
    %v831 = vmul.f32 %v823, %v828
    %v832 = vadd.f32 %v830, %v831
    %v833 = vtanh.pop %v832
    %v834 = vmul.f32 %v827, %v833
    %835 = vst [vmem:[#allocation5] sm:$0xff] %v832
    %836 = vst [vmem:[#allocation4] sm:$0xff] %v834
    %s837 = scalar_lea.vmem [#allocation2], 8
    %838 = vst [vmem:[%s837] sm:$0xff] %v834
    %s839 = smul.u32 2, 4
    %s840 = smul.addr %s839, 8
    %s841 = scalar_lea.vmem [#allocation3], %s840
    %v842 = vld [vmem:[%s841] sm:$0xff]
    %v843 = vld [vmem:[%s841 + $0x8] sm:$0xff]
    %v844 = vld [vmem:[%s841 + $0x10] sm:$0xff]
    %v845 = vld [vmem:[%s841 + $0x18] sm:$0xff]
    %v846 = vld [vmem:[#allocation4] sm:$0xff]
    %847 = vmatprep.subr.mxu0 %v96
    %848 = vmatpush1.msra.mxu0 %v95
    %849 = vmatprep.subr.mxu0 %v100
    %850 = vmatpush1.msra.mxu0 %v99
    %851 = vmatprep.subr.mxu0 %v104
    %852 = vmatpush1.msra.mxu0 %v103
    %853 = vmatprep.subr.mxu0 %v108
    %854 = vmatpush1.msra.mxu0 %v107
    %855 = vmatprep.subr.mxu0 %v112
    %856 = vmatpush1.msra.mxu0 %v111
    %857 = vmatprep.subr.mxu0 %v116
    %858 = vmatpush1.msra.mxu0 %v115
    %859 = vmatprep.subr.mxu0 %v120
    %860 = vmatpush1.msra.mxu0 %v119
    %861 = vmatprep.subr.mxu0 %v124
    %862 = vmatpush1.msra.mxu0 %v123
    %863 = vmatprep.subr.mxu0 %v128
    %864 = vmatpush1.msra.mxu0 %v127
    %865 = vmatprep.subr.mxu0 %v132
    %866 = vmatpush1.msra.mxu0 %v131
    %867 = vmatprep.subr.mxu0 %v136
    %868 = vmatpush1.msra.mxu0 %v135
    %869 = vmatprep.subr.mxu0 %v140
    %870 = vmatpush1.msra.mxu0 %v139
    %871 = vmatprep.subr.mxu0 %v144
    %872 = vmatpush1.msra.mxu0 %v143
    %873 = vmatprep.subr.mxu0 %v148
    %874 = vmatpush1.msra.mxu0 %v147
    %875 = vmatprep.subr.mxu0 %v152
    %876 = vmatpush1.msra.mxu0 %v151
    %877 = vmatprep.subr.mxu0 %v156
    %878 = vmatpush1.msra.mxu0 %v155
    %879 = vmatprep.subr.mxu0 0.0
    %880 = vmatpush1.msra.mxu0 0.0
    %881 = vmatprep.subr.mxu0 0.0
    %882 = vmatpush1.msra.mxu0 0.0
    %883 = vmatprep.subr.mxu0 0.0
    %884 = vmatpush1.msra.mxu0 0.0
    %885 = vmatprep.subr.mxu0 0.0
    %886 = vmatpush1.msra.mxu0 0.0
    %887 = vmatprep.subr.mxu0 0.0
    %888 = vmatpush1.msra.mxu0 0.0
    %889 = vmatprep.subr.mxu0 0.0
    %890 = vmatpush1.msra.mxu0 0.0
    %891 = vmatprep.subr.mxu0 0.0
    %892 = vmatpush1.msra.mxu0 0.0
    %893 = vmatprep.subr.mxu0 0.0
    %894 = vmatpush1.msra.mxu0 0.0
    %895 = vmatprep.subr.mxu0 0.0
    %896 = vmatpush1.msra.mxu0 0.0
    %897 = vmatprep.subr.mxu0 0.0
    %898 = vmatpush1.msra.mxu0 0.0
    %899 = vmatprep.subr.mxu0 0.0
    %900 = vmatpush1.msra.mxu0 0.0
    %901 = vmatprep.subr.mxu0 0.0
    %902 = vmatpush1.msra.mxu0 0.0
    %903 = vmatprep.subr.mxu0 0.0
    %904 = vmatpush1.msra.mxu0 0.0
    %905 = vmatprep.subr.mxu0 0.0
    %906 = vmatpush1.msra.mxu0 0.0
    %907 = vmatprep.subr.mxu0 0.0
    %908 = vmatpush1.msra.mxu0 0.0
    %909 = vmatprep.subr.mxu0 0.0
    %910 = vmatpush1.msra.mxu0 0.0
    %911 = vmatprep.mubr.f32.mxu0 0.0
    %912 = vmatmul.mubr.f32.gmra.mrb[0].mxu0 %v846
    %v913 = vpop.f32.mrb[0].mxu0
    %v914 = vadd.f32 0.0, %v913
    %v915 = vpop.f32.mrb[0].mxu0
    %v916 = vadd.f32 0.0, %v915
    %917 = vdwg.mxu0
    %918 = vmatprep.subr.mxu0 %v98
    %919 = vmatpush1.msra.mxu0 %v97
    %920 = vmatprep.subr.mxu0 %v102
    %921 = vmatpush1.msra.mxu0 %v101
    %922 = vmatprep.subr.mxu0 %v106
    %923 = vmatpush1.msra.mxu0 %v105
    %924 = vmatprep.subr.mxu0 %v110
    %925 = vmatpush1.msra.mxu0 %v109
    %926 = vmatprep.subr.mxu0 %v114
    %927 = vmatpush1.msra.mxu0 %v113
    %928 = vmatprep.subr.mxu0 %v118
    %929 = vmatpush1.msra.mxu0 %v117
    %930 = vmatprep.subr.mxu0 %v122
    %931 = vmatpush1.msra.mxu0 %v121
    %932 = vmatprep.subr.mxu0 %v126
    %933 = vmatpush1.msra.mxu0 %v125
    %934 = vmatprep.subr.mxu0 %v130
    %935 = vmatpush1.msra.mxu0 %v129
    %936 = vmatprep.subr.mxu0 %v134
    %937 = vmatpush1.msra.mxu0 %v133
    %938 = vmatprep.subr.mxu0 %v138
    %939 = vmatpush1.msra.mxu0 %v137
    %940 = vmatprep.subr.mxu0 %v142
    %941 = vmatpush1.msra.mxu0 %v141
    %942 = vmatprep.subr.mxu0 %v146
    %943 = vmatpush1.msra.mxu0 %v145
    %944 = vmatprep.subr.mxu0 %v150
    %945 = vmatpush1.msra.mxu0 %v149
    %946 = vmatprep.subr.mxu0 %v154
    %947 = vmatpush1.msra.mxu0 %v153
    %948 = vmatprep.subr.mxu0 %v158
    %949 = vmatpush1.msra.mxu0 %v157
    %950 = vmatprep.subr.mxu0 0.0
    %951 = vmatpush1.msra.mxu0 0.0
    %952 = vmatprep.subr.mxu0 0.0
    %953 = vmatpush1.msra.mxu0 0.0
    %954 = vmatprep.subr.mxu0 0.0
    %955 = vmatpush1.msra.mxu0 0.0
    %956 = vmatprep.subr.mxu0 0.0
    %957 = vmatpush1.msra.mxu0 0.0
    %958 = vmatprep.subr.mxu0 0.0
    %959 = vmatpush1.msra.mxu0 0.0
    %960 = vmatprep.subr.mxu0 0.0
    %961 = vmatpush1.msra.mxu0 0.0
    %962 = vmatprep.subr.mxu0 0.0
    %963 = vmatpush1.msra.mxu0 0.0
    %964 = vmatprep.subr.mxu0 0.0
    %965 = vmatpush1.msra.mxu0 0.0
    %966 = vmatprep.subr.mxu0 0.0
    %967 = vmatpush1.msra.mxu0 0.0
    %968 = vmatprep.subr.mxu0 0.0
    %969 = vmatpush1.msra.mxu0 0.0
    %970 = vmatprep.subr.mxu0 0.0
    %971 = vmatpush1.msra.mxu0 0.0
    %972 = vmatprep.subr.mxu0 0.0
    %973 = vmatpush1.msra.mxu0 0.0
    %974 = vmatprep.subr.mxu0 0.0
    %975 = vmatpush1.msra.mxu0 0.0
    %976 = vmatprep.subr.mxu0 0.0
    %977 = vmatpush1.msra.mxu0 0.0
    %978 = vmatprep.subr.mxu0 0.0
    %979 = vmatpush1.msra.mxu0 0.0
    %980 = vmatprep.subr.mxu0 0.0
    %981 = vmatpush1.msra.mxu0 0.0
    %982 = vmatprep.mubr.f32.mxu0 0.0
    %983 = vmatmul.mubr.f32.gmra.mrb[0].mxu0 %v846
    %v984 = vpop.f32.mrb[0].mxu0
    %v985 = vadd.f32 0.0, %v984
    %v986 = vpop.f32.mrb[0].mxu0
    %v987 = vadd.f32 0.0, %v986
    %988 = vdwg.mxu0
    %v989 = vadd.f32 %v842, %v914
    %v990 = vadd.f32 %v843, %v916
    %v991 = vadd.f32 %v844, %v985
    %v992 = vadd.f32 %v845, %v987
    %v993 = vxor.u32 %v989, 2147483648
    %v994 = vxor.u32 %v990, 2147483648
    %v995 = vxor.u32 %v991, 2147483648
    %v996 = vmul.f32 %v993, 1.442695
    %v997 = vpow.pop %v996
    %v998 = vmul.f32 %v994, 1.442695
    %v999 = vpow.pop %v998
    %v1000 = vmul.f32 %v995, 1.442695
    %v1001 = vpow.pop %v1000
    %v1002 = vadd.f32 %v997, 1.0
    %v1003 = vadd.f32 %v999, 1.0
    %v1004 = vadd.f32 %v1001, 1.0
    %v1005 = vrcp.pop %v1002
    %v1006 = vmul.f32 1.0, %v1005
    %v1007 = vrcp.pop %v1003
    %v1008 = vmul.f32 1.0, %v1007
    %v1009 = vrcp.pop %v1004
    %v1010 = vmul.f32 1.0, %v1009
    %v1011 = vtanh.pop %v992
    %v1012 = vld [vmem:[#allocation5] sm:$0xff]
    %v1013 = vmul.f32 %v1008, %v1012
    %v1014 = vmul.f32 %v1006, %v1011
    %v1015 = vadd.f32 %v1013, %v1014
    %v1016 = vtanh.pop %v1015
    %v1017 = vmul.f32 %v1010, %v1016
    %1018 = vst [vmem:[#allocation5] sm:$0xff] %v1015
    %1019 = vst [vmem:[#allocation4] sm:$0xff] %v1017
    %s1020 = scalar_lea.vmem [#allocation2], 16
    %1021 = vst [vmem:[%s1020] sm:$0xff] %v1017
    %s1022 = smul.u32 3, 4
    %s1023 = smul.addr %s1022, 8
    %s1024 = scalar_lea.vmem [#allocation3], %s1023
    %v1025 = vld [vmem:[%s1024] sm:$0xff]
    %v1026 = vld [vmem:[%s1024 + $0x8] sm:$0xff]
    %v1027 = vld [vmem:[%s1024 + $0x10] sm:$0xff]
    %v1028 = vld [vmem:[%s1024 + $0x18] sm:$0xff]
    %v1029 = vld [vmem:[#allocation4] sm:$0xff]
    %1030 = vmatprep.subr.mxu0 %v96
    %1031 = vmatpush1.msra.mxu0 %v95
    %1032 = vmatprep.subr.mxu0 %v100
    %1033 = vmatpush1.msra.mxu0 %v99
    %1034 = vmatprep.subr.mxu0 %v104
    %1035 = vmatpush1.msra.mxu0 %v103
    %1036 = vmatprep.subr.mxu0 %v108
    %1037 = vmatpush1.msra.mxu0 %v107
    %1038 = vmatprep.subr.mxu0 %v112
    %1039 = vmatpush1.msra.mxu0 %v111
    %1040 = vmatprep.subr.mxu0 %v116
    %1041 = vmatpush1.msra.mxu0 %v115
    %1042 = vmatprep.subr.mxu0 %v120
    %1043 = vmatpush1.msra.mxu0 %v119
    %1044 = vmatprep.subr.mxu0 %v124
    %1045 = vmatpush1.msra.mxu0 %v123
    %1046 = vmatprep.subr.mxu0 %v128
    %1047 = vmatpush1.msra.mxu0 %v127
    %1048 = vmatprep.subr.mxu0 %v132
    %1049 = vmatpush1.msra.mxu0 %v131
    %1050 = vmatprep.subr.mxu0 %v136
    %1051 = vmatpush1.msra.mxu0 %v135
    %1052 = vmatprep.subr.mxu0 %v140
    %1053 = vmatpush1.msra.mxu0 %v139
    %1054 = vmatprep.subr.mxu0 %v144
    %1055 = vmatpush1.msra.mxu0 %v143
    %1056 = vmatprep.subr.mxu0 %v148
    %1057 = vmatpush1.msra.mxu0 %v147
    %1058 = vmatprep.subr.mxu0 %v152
    %1059 = vmatpush1.msra.mxu0 %v151
    %1060 = vmatprep.subr.mxu0 %v156
    %1061 = vmatpush1.msra.mxu0 %v155
    %1062 = vmatprep.subr.mxu0 0.0
    %1063 = vmatpush1.msra.mxu0 0.0
    %1064 = vmatprep.subr.mxu0 0.0
    %1065 = vmatpush1.msra.mxu0 0.0
    %1066 = vmatprep.subr.mxu0 0.0
    %1067 = vmatpush1.msra.mxu0 0.0
    %1068 = vmatprep.subr.mxu0 0.0
    %1069 = vmatpush1.msra.mxu0 0.0
    %1070 = vmatprep.subr.mxu0 0.0
    %1071 = vmatpush1.msra.mxu0 0.0
    %1072 = vmatprep.subr.mxu0 0.0
    %1073 = vmatpush1.msra.mxu0 0.0
    %1074 = vmatprep.subr.mxu0 0.0
    %1075 = vmatpush1.msra.mxu0 0.0
    %1076 = vmatprep.subr.mxu0 0.0
    %1077 = vmatpush1.msra.mxu0 0.0
    %1078 = vmatprep.subr.mxu0 0.0
    %1079 = vmatpush1.msra.mxu0 0.0
    %1080 = vmatprep.subr.mxu0 0.0
    %1081 = vmatpush1.msra.mxu0 0.0
    %1082 = vmatprep.subr.mxu0 0.0
    %1083 = vmatpush1.msra.mxu0 0.0
    %1084 = vmatprep.subr.mxu0 0.0
    %1085 = vmatpush1.msra.mxu0 0.0
    %1086 = vmatprep.subr.mxu0 0.0
    %1087 = vmatpush1.msra.mxu0 0.0
    %1088 = vmatprep.subr.mxu0 0.0
    %1089 = vmatpush1.msra.mxu0 0.0
    %1090 = vmatprep.subr.mxu0 0.0
    %1091 = vmatpush1.msra.mxu0 0.0
    %1092 = vmatprep.subr.mxu0 0.0
    %1093 = vmatpush1.msra.mxu0 0.0
    %1094 = vmatprep.mubr.f32.mxu0 0.0
    %1095 = vmatmul.mubr.f32.gmra.mrb[0].mxu0 %v1029
    %v1096 = vpop.f32.mrb[0].mxu0
    %v1097 = vadd.f32 0.0, %v1096
    %v1098 = vpop.f32.mrb[0].mxu0
    %v1099 = vadd.f32 0.0, %v1098
    %1100 = vdwg.mxu0
    %1101 = vmatprep.subr.mxu0 %v98
    %1102 = vmatpush1.msra.mxu0 %v97
    %1103 = vmatprep.subr.mxu0 %v102
    %1104 = vmatpush1.msra.mxu0 %v101
    %1105 = vmatprep.subr.mxu0 %v106
    %1106 = vmatpush1.msra.mxu0 %v105
    %1107 = vmatprep.subr.mxu0 %v110
    %1108 = vmatpush1.msra.mxu0 %v109
    %1109 = vmatprep.subr.mxu0 %v114
    %1110 = vmatpush1.msra.mxu0 %v113
    %1111 = vmatprep.subr.mxu0 %v118
    %1112 = vmatpush1.msra.mxu0 %v117
    %1113 = vmatprep.subr.mxu0 %v122
    %1114 = vmatpush1.msra.mxu0 %v121
    %1115 = vmatprep.subr.mxu0 %v126
    %1116 = vmatpush1.msra.mxu0 %v125
    %1117 = vmatprep.subr.mxu0 %v130
    %1118 = vmatpush1.msra.mxu0 %v129
    %1119 = vmatprep.subr.mxu0 %v134
    %1120 = vmatpush1.msra.mxu0 %v133
    %1121 = vmatprep.subr.mxu0 %v138
    %1122 = vmatpush1.msra.mxu0 %v137
    %1123 = vmatprep.subr.mxu0 %v142
    %1124 = vmatpush1.msra.mxu0 %v141
    %1125 = vmatprep.subr.mxu0 %v146
    %1126 = vmatpush1.msra.mxu0 %v145
    %1127 = vmatprep.subr.mxu0 %v150
    %1128 = vmatpush1.msra.mxu0 %v149
    %1129 = vmatprep.subr.mxu0 %v154
    %1130 = vmatpush1.msra.mxu0 %v153
    %1131 = vmatprep.subr.mxu0 %v158
    %1132 = vmatpush1.msra.mxu0 %v157
    %1133 = vmatprep.subr.mxu0 0.0
    %1134 = vmatpush1.msra.mxu0 0.0
    %1135 = vmatprep.subr.mxu0 0.0
    %1136 = vmatpush1.msra.mxu0 0.0
    %1137 = vmatprep.subr.mxu0 0.0
    %1138 = vmatpush1.msra.mxu0 0.0
    %1139 = vmatprep.subr.mxu0 0.0
    %1140 = vmatpush1.msra.mxu0 0.0
    %1141 = vmatprep.subr.mxu0 0.0
    %1142 = vmatpush1.msra.mxu0 0.0
    %1143 = vmatprep.subr.mxu0 0.0
    %1144 = vmatpush1.msra.mxu0 0.0
    %1145 = vmatprep.subr.mxu0 0.0
    %1146 = vmatpush1.msra.mxu0 0.0
    %1147 = vmatprep.subr.mxu0 0.0
    %1148 = vmatpush1.msra.mxu0 0.0
    %1149 = vmatprep.subr.mxu0 0.0
    %1150 = vmatpush1.msra.mxu0 0.0
    %1151 = vmatprep.subr.mxu0 0.0
    %1152 = vmatpush1.msra.mxu0 0.0
    %1153 = vmatprep.subr.mxu0 0.0
    %1154 = vmatpush1.msra.mxu0 0.0
    %1155 = vmatprep.subr.mxu0 0.0
    %1156 = vmatpush1.msra.mxu0 0.0
    %1157 = vmatprep.subr.mxu0 0.0
    %1158 = vmatpush1.msra.mxu0 0.0
    %1159 = vmatprep.subr.mxu0 0.0
    %1160 = vmatpush1.msra.mxu0 0.0
    %1161 = vmatprep.subr.mxu0 0.0
    %1162 = vmatpush1.msra.mxu0 0.0
    %1163 = vmatprep.subr.mxu0 0.0
    %1164 = vmatpush1.msra.mxu0 0.0
    %1165 = vmatprep.mubr.f32.mxu0 0.0
    %1166 = vmatmul.mubr.f32.gmra.mrb[0].mxu0 %v1029
    %v1167 = vpop.f32.mrb[0].mxu0
    %v1168 = vadd.f32 0.0, %v1167
    %v1169 = vpop.f32.mrb[0].mxu0
    %v1170 = vadd.f32 0.0, %v1169
    %1171 = vdwg.mxu0
    %v1172 = vadd.f32 %v1025, %v1097
    %v1173 = vadd.f32 %v1026, %v1099
    %v1174 = vadd.f32 %v1027, %v1168
    %v1175 = vadd.f32 %v1028, %v1170
    %v1176 = vxor.u32 %v1172, 2147483648
    %v1177 = vxor.u32 %v1173, 2147483648
    %v1178 = vxor.u32 %v1174, 2147483648
    %v1179 = vmul.f32 %v1176, 1.442695
    %v1180 = vpow.pop %v1179
    %v1181 = vmul.f32 %v1177, 1.442695
    %v1182 = vpow.pop %v1181
    %v1183 = vmul.f32 %v1178, 1.442695
    %v1184 = vpow.pop %v1183
    %v1185 = vadd.f32 %v1180, 1.0
    %v1186 = vadd.f32 %v1182, 1.0
    %v1187 = vadd.f32 %v1184, 1.0
    %v1188 = vrcp.pop %v1185
    %v1189 = vmul.f32 1.0, %v1188
    %v1190 = vrcp.pop %v1186
    %v1191 = vmul.f32 1.0, %v1190
    %v1192 = vrcp.pop %v1187
    %v1193 = vmul.f32 1.0, %v1192
    %v1194 = vtanh.pop %v1175
    %v1195 = vld [vmem:[#allocation5] sm:$0xff]
    %v1196 = vmul.f32 %v1191, %v1195
    %v1197 = vmul.f32 %v1189, %v1194
    %v1198 = vadd.f32 %v1196, %v1197
    %v1199 = vtanh.pop %v1198
    %v1200 = vmul.f32 %v1193, %v1199
    %1201 = vst [vmem:[#allocation5] sm:$0xff] %v1198
    %1202 = vst [vmem:[#allocation4] sm:$0xff] %v1200
    %s1203 = scalar_lea.vmem [#allocation2], 24
    %1204 = vst [vmem:[%s1203] sm:$0xff] %v1200
    %s1205 = smul.u32 4, 4
    %s1206 = smul.addr %s1205, 8
    %s1207 = scalar_lea.vmem [#allocation3], %s1206
    %v1208 = vld [vmem:[%s1207] sm:$0xff]
    %v1209 = vld [vmem:[%s1207 + $0x8] sm:$0xff]
    %v1210 = vld [vmem:[%s1207 + $0x10] sm:$0xff]
    %v1211 = vld [vmem:[%s1207 + $0x18] sm:$0xff]
    %v1212 = vld [vmem:[#allocation4] sm:$0xff]
    %1213 = vmatprep.subr.mxu0 %v96
    %1214 = vmatpush1.msra.mxu0 %v95
    %1215 = vmatprep.subr.mxu0 %v100
    %1216 = vmatpush1.msra.mxu0 %v99
    %1217 = vmatprep.subr.mxu0 %v104
    %1218 = vmatpush1.msra.mxu0 %v103
    %1219 = vmatprep.subr.mxu0 %v108
    %1220 = vmatpush1.msra.mxu0 %v107
    %1221 = vmatprep.subr.mxu0 %v112
    %1222 = vmatpush1.msra.mxu0 %v111
    %1223 = vmatprep.subr.mxu0 %v116
    %1224 = vmatpush1.msra.mxu0 %v115
    %1225 = vmatprep.subr.mxu0 %v120
    %1226 = vmatpush1.msra.mxu0 %v119
    %1227 = vmatprep.subr.mxu0 %v124
    %1228 = vmatpush1.msra.mxu0 %v123
    %1229 = vmatprep.subr.mxu0 %v128
    %1230 = vmatpush1.msra.mxu0 %v127
    %1231 = vmatprep.subr.mxu0 %v132
    %1232 = vmatpush1.msra.mxu0 %v131
    %1233 = vmatprep.subr.mxu0 %v136
    %1234 = vmatpush1.msra.mxu0 %v135
    %1235 = vmatprep.subr.mxu0 %v140
    %1236 = vmatpush1.msra.mxu0 %v139
    %1237 = vmatprep.subr.mxu0 %v144
    %1238 = vmatpush1.msra.mxu0 %v143
    %1239 = vmatprep.subr.mxu0 %v148
    %1240 = vmatpush1.msra.mxu0 %v147
    %1241 = vmatprep.subr.mxu0 %v152
    %1242 = vmatpush1.msra.mxu0 %v151
    %1243 = vmatprep.subr.mxu0 %v156
    %1244 = vmatpush1.msra.mxu0 %v155
    %1245 = vmatprep.subr.mxu0 0.0
    %1246 = vmatpush1.msra.mxu0 0.0
    %1247 = vmatprep.subr.mxu0 0.0
    %1248 = vmatpush1.msra.mxu0 0.0
    %1249 = vmatprep.subr.mxu0 0.0
    %1250 = vmatpush1.msra.mxu0 0.0
    %1251 = vmatprep.subr.mxu0 0.0
    %1252 = vmatpush1.msra.mxu0 0.0
    %1253 = vmatprep.subr.mxu0 0.0
    %1254 = vmatpush1.msra.mxu0 0.0
    %1255 = vmatprep.subr.mxu0 0.0
    %1256 = vmatpush1.msra.mxu0 0.0
    %1257 = vmatprep.subr.mxu0 0.0
    %1258 = vmatpush1.msra.mxu0 0.0
    %1259 = vmatprep.subr.mxu0 0.0
    %1260 = vmatpush1.msra.mxu0 0.0
    %1261 = vmatprep.subr.mxu0 0.0
    %1262 = vmatpush1.msra.mxu0 0.0
    %1263 = vmatprep.subr.mxu0 0.0
    %1264 = vmatpush1.msra.mxu0 0.0
    %1265 = vmatprep.subr.mxu0 0.0
    %1266 = vmatpush1.msra.mxu0 0.0
    %1267 = vmatprep.subr.mxu0 0.0
    %1268 = vmatpush1.msra.mxu0 0.0
    %1269 = vmatprep.subr.mxu0 0.0
    %1270 = vmatpush1.msra.mxu0 0.0
    %1271 = vmatprep.subr.mxu0 0.0
    %1272 = vmatpush1.msra.mxu0 0.0
    %1273 = vmatprep.subr.mxu0 0.0
    %1274 = vmatpush1.msra.mxu0 0.0
    %1275 = vmatprep.subr.mxu0 0.0
    %1276 = vmatpush1.msra.mxu0 0.0
    %1277 = vmatprep.mubr.f32.mxu0 0.0
    %1278 = vmatmul.mubr.f32.gmra.mrb[0].mxu0 %v1212
    %v1279 = vpop.f32.mrb[0].mxu0
    %v1280 = vadd.f32 0.0, %v1279
    %v1281 = vpop.f32.mrb[0].mxu0
    %v1282 = vadd.f32 0.0, %v1281
    %1283 = vdwg.mxu0
    %1284 = vmatprep.subr.mxu0 %v98
    %1285 = vmatpush1.msra.mxu0 %v97
    %1286 = vmatprep.subr.mxu0 %v102
    %1287 = vmatpush1.msra.mxu0 %v101
    %1288 = vmatprep.subr.mxu0 %v106
    %1289 = vmatpush1.msra.mxu0 %v105
    %1290 = vmatprep.subr.mxu0 %v110
    %1291 = vmatpush1.msra.mxu0 %v109
    %1292 = vmatprep.subr.mxu0 %v114
    %1293 = vmatpush1.msra.mxu0 %v113
    %1294 = vmatprep.subr.mxu0 %v118
    %1295 = vmatpush1.msra.mxu0 %v117
    %1296 = vmatprep.subr.mxu0 %v122
    %1297 = vmatpush1.msra.mxu0 %v121
    %1298 = vmatprep.subr.mxu0 %v126
    %1299 = vmatpush1.msra.mxu0 %v125
    %1300 = vmatprep.subr.mxu0 %v130
    %1301 = vmatpush1.msra.mxu0 %v129
    %1302 = vmatprep.subr.mxu0 %v134
    %1303 = vmatpush1.msra.mxu0 %v133
    %1304 = vmatprep.subr.mxu0 %v138
    %1305 = vmatpush1.msra.mxu0 %v137
    %1306 = vmatprep.subr.mxu0 %v142
    %1307 = vmatpush1.msra.mxu0 %v141
    %1308 = vmatprep.subr.mxu0 %v146
    %1309 = vmatpush1.msra.mxu0 %v145
    %1310 = vmatprep.subr.mxu0 %v150
    %1311 = vmatpush1.msra.mxu0 %v149
    %1312 = vmatprep.subr.mxu0 %v154
    %1313 = vmatpush1.msra.mxu0 %v153
    %1314 = vmatprep.subr.mxu0 %v158
    %1315 = vmatpush1.msra.mxu0 %v157
    %1316 = vmatprep.subr.mxu0 0.0
    %1317 = vmatpush1.msra.mxu0 0.0
    %1318 = vmatprep.subr.mxu0 0.0
    %1319 = vmatpush1.msra.mxu0 0.0
    %1320 = vmatprep.subr.mxu0 0.0
    %1321 = vmatpush1.msra.mxu0 0.0
    %1322 = vmatprep.subr.mxu0 0.0
    %1323 = vmatpush1.msra.mxu0 0.0
    %1324 = vmatprep.subr.mxu0 0.0
    %1325 = vmatpush1.msra.mxu0 0.0
    %1326 = vmatprep.subr.mxu0 0.0
    %1327 = vmatpush1.msra.mxu0 0.0
    %1328 = vmatprep.subr.mxu0 0.0
    %1329 = vmatpush1.msra.mxu0 0.0
    %1330 = vmatprep.subr.mxu0 0.0
    %1331 = vmatpush1.msra.mxu0 0.0
    %1332 = vmatprep.subr.mxu0 0.0
    %1333 = vmatpush1.msra.mxu0 0.0
    %1334 = vmatprep.subr.mxu0 0.0
    %1335 = vmatpush1.msra.mxu0 0.0
    %1336 = vmatprep.subr.mxu0 0.0
    %1337 = vmatpush1.msra.mxu0 0.0
    %1338 = vmatprep.subr.mxu0 0.0
    %1339 = vmatpush1.msra.mxu0 0.0
    %1340 = vmatprep.subr.mxu0 0.0
    %1341 = vmatpush1.msra.mxu0 0.0
    %1342 = vmatprep.subr.mxu0 0.0
    %1343 = vmatpush1.msra.mxu0 0.0
    %1344 = vmatprep.subr.mxu0 0.0
    %1345 = vmatpush1.msra.mxu0 0.0
    %1346 = vmatprep.subr.mxu0 0.0
    %1347 = vmatpush1.msra.mxu0 0.0
    %1348 = vmatprep.mubr.f32.mxu0 0.0
    %1349 = vmatmul.mubr.f32.gmra.mrb[0].mxu0 %v1212
    %v1350 = vpop.f32.mrb[0].mxu0
    %v1351 = vadd.f32 0.0, %v1350
    %v1352 = vpop.f32.mrb[0].mxu0
    %v1353 = vadd.f32 0.0, %v1352
    %1354 = vdwg.mxu0
    %v1355 = vadd.f32 %v1208, %v1280
    %v1356 = vadd.f32 %v1209, %v1282
    %v1357 = vadd.f32 %v1210, %v1351
    %v1358 = vadd.f32 %v1211, %v1353
    %v1359 = vxor.u32 %v1355, 2147483648
    %v1360 = vxor.u32 %v1356, 2147483648
    %v1361 = vxor.u32 %v1357, 2147483648
    %v1362 = vmul.f32 %v1359, 1.442695
    %v1363 = vpow.pop %v1362
    %v1364 = vmul.f32 %v1360, 1.442695
    %v1365 = vpow.pop %v1364
    %v1366 = vmul.f32 %v1361, 1.442695
    %v1367 = vpow.pop %v1366
    %v1368 = vadd.f32 %v1363, 1.0
    %v1369 = vadd.f32 %v1365, 1.0
    %v1370 = vadd.f32 %v1367, 1.0
    %v1371 = vrcp.pop %v1368
    %v1372 = vmul.f32 1.0, %v1371
    %v1373 = vrcp.pop %v1369
    %v1374 = vmul.f32 1.0, %v1373
    %v1375 = vrcp.pop %v1370
    %v1376 = vmul.f32 1.0, %v1375
    %v1377 = vtanh.pop %v1358
    %v1378 = vld [vmem:[#allocation5] sm:$0xff]
    %v1379 = vmul.f32 %v1374, %v1378
    %v1380 = vmul.f32 %v1372, %v1377
    %v1381 = vadd.f32 %v1379, %v1380
    %v1382 = vtanh.pop %v1381
    %v1383 = vmul.f32 %v1376, %v1382
    %1384 = vst [vmem:[#allocation5] sm:$0xff] %v1381
    %1385 = vst [vmem:[#allocation4] sm:$0xff] %v1383
    %s1386 = scalar_lea.vmem [#allocation2], 32
    %1387 = vst [vmem:[%s1386] sm:$0xff] %v1383
    %s1388 = smul.u32 5, 4
    %s1389 = smul.addr %s1388, 8
    %s1390 = scalar_lea.vmem [#allocation3], %s1389
    %v1391 = vld [vmem:[%s1390] sm:$0xff]
    %v1392 = vld [vmem:[%s1390 + $0x8] sm:$0xff]
    %v1393 = vld [vmem:[%s1390 + $0x10] sm:$0xff]
    %v1394 = vld [vmem:[%s1390 + $0x18] sm:$0xff]
    %v1395 = vld [vmem:[#allocation4] sm:$0xff]
    %1396 = vmatprep.subr.mxu0 %v96
    %1397 = vmatpush1.msra.mxu0 %v95
    %1398 = vmatprep.subr.mxu0 %v100
    %1399 = vmatpush1.msra.mxu0 %v99
    %1400 = vmatprep.subr.mxu0 %v104
    %1401 = vmatpush1.msra.mxu0 %v103
    %1402 = vmatprep.subr.mxu0 %v108
    %1403 = vmatpush1.msra.mxu0 %v107
    %1404 = vmatprep.subr.mxu0 %v112
    %1405 = vmatpush1.msra.mxu0 %v111
    %1406 = vmatprep.subr.mxu0 %v116
    %1407 = vmatpush1.msra.mxu0 %v115
    %1408 = vmatprep.subr.mxu0 %v120
    %1409 = vmatpush1.msra.mxu0 %v119
    %1410 = vmatprep.subr.mxu0 %v124
    %1411 = vmatpush1.msra.mxu0 %v123
    %1412 = vmatprep.subr.mxu0 %v128
    %1413 = vmatpush1.msra.mxu0 %v127
    %1414 = vmatprep.subr.mxu0 %v132
    %1415 = vmatpush1.msra.mxu0 %v131
    %1416 = vmatprep.subr.mxu0 %v136
    %1417 = vmatpush1.msra.mxu0 %v135
    %1418 = vmatprep.subr.mxu0 %v140
    %1419 = vmatpush1.msra.mxu0 %v139
    %1420 = vmatprep.subr.mxu0 %v144
    %1421 = vmatpush1.msra.mxu0 %v143
    %1422 = vmatprep.subr.mxu0 %v148
    %1423 = vmatpush1.msra.mxu0 %v147
    %1424 = vmatprep.subr.mxu0 %v152
    %1425 = vmatpush1.msra.mxu0 %v151
    %1426 = vmatprep.subr.mxu0 %v156
    %1427 = vmatpush1.msra.mxu0 %v155
    %1428 = vmatprep.subr.mxu0 0.0
    %1429 = vmatpush1.msra.mxu0 0.0
    %1430 = vmatprep.subr.mxu0 0.0
    %1431 = vmatpush1.msra.mxu0 0.0
    %1432 = vmatprep.subr.mxu0 0.0
    %1433 = vmatpush1.msra.mxu0 0.0
    %1434 = vmatprep.subr.mxu0 0.0
    %1435 = vmatpush1.msra.mxu0 0.0
    %1436 = vmatprep.subr.mxu0 0.0
    %1437 = vmatpush1.msra.mxu0 0.0
    %1438 = vmatprep.subr.mxu0 0.0
    %1439 = vmatpush1.msra.mxu0 0.0
    %1440 = vmatprep.subr.mxu0 0.0
    %1441 = vmatpush1.msra.mxu0 0.0
    %1442 = vmatprep.subr.mxu0 0.0
    %1443 = vmatpush1.msra.mxu0 0.0
    %1444 = vmatprep.subr.mxu0 0.0
    %1445 = vmatpush1.msra.mxu0 0.0
    %1446 = vmatprep.subr.mxu0 0.0
    %1447 = vmatpush1.msra.mxu0 0.0
    %1448 = vmatprep.subr.mxu0 0.0
    %1449 = vmatpush1.msra.mxu0 0.0
    %1450 = vmatprep.subr.mxu0 0.0
    %1451 = vmatpush1.msra.mxu0 0.0
    %1452 = vmatprep.subr.mxu0 0.0
    %1453 = vmatpush1.msra.mxu0 0.0
    %1454 = vmatprep.subr.mxu0 0.0
    %1455 = vmatpush1.msra.mxu0 0.0
    %1456 = vmatprep.subr.mxu0 0.0
    %1457 = vmatpush1.msra.mxu0 0.0
    %1458 = vmatprep.subr.mxu0 0.0
    %1459 = vmatpush1.msra.mxu0 0.0
    %1460 = vmatprep.mubr.f32.mxu0 0.0
    %1461 = vmatmul.mubr.f32.gmra.mrb[0].mxu0 %v1395
    %v1462 = vpop.f32.mrb[0].mxu0
    %v1463 = vadd.f32 0.0, %v1462
    %v1464 = vpop.f32.mrb[0].mxu0
    %v1465 = vadd.f32 0.0, %v1464
    %1466 = vdwg.mxu0
    %1467 = vmatprep.subr.mxu0 %v98
    %1468 = vmatpush1.msra.mxu0 %v97
    %1469 = vmatprep.subr.mxu0 %v102
    %1470 = vmatpush1.msra.mxu0 %v101
    %1471 = vmatprep.subr.mxu0 %v106
    %1472 = vmatpush1.msra.mxu0 %v105
    %1473 = vmatprep.subr.mxu0 %v110
    %1474 = vmatpush1.msra.mxu0 %v109
    %1475 = vmatprep.subr.mxu0 %v114
    %1476 = vmatpush1.msra.mxu0 %v113
    %1477 = vmatprep.subr.mxu0 %v118
    %1478 = vmatpush1.msra.mxu0 %v117
    %1479 = vmatprep.subr.mxu0 %v122
    %1480 = vmatpush1.msra.mxu0 %v121
    %1481 = vmatprep.subr.mxu0 %v126
    %1482 = vmatpush1.msra.mxu0 %v125
    %1483 = vmatprep.subr.mxu0 %v130
    %1484 = vmatpush1.msra.mxu0 %v129
    %1485 = vmatprep.subr.mxu0 %v134
    %1486 = vmatpush1.msra.mxu0 %v133
    %1487 = vmatprep.subr.mxu0 %v138
    %1488 = vmatpush1.msra.mxu0 %v137
    %1489 = vmatprep.subr.mxu0 %v142
    %1490 = vmatpush1.msra.mxu0 %v141
    %1491 = vmatprep.subr.mxu0 %v146
    %1492 = vmatpush1.msra.mxu0 %v145
    %1493 = vmatprep.subr.mxu0 %v150
    %1494 = vmatpush1.msra.mxu0 %v149
    %1495 = vmatprep.subr.mxu0 %v154
    %1496 = vmatpush1.msra.mxu0 %v153
    %1497 = vmatprep.subr.mxu0 %v158
    %1498 = vmatpush1.msra.mxu0 %v157
    %1499 = vmatprep.subr.mxu0 0.0
    %1500 = vmatpush1.msra.mxu0 0.0
    %1501 = vmatprep.subr.mxu0 0.0
    %1502 = vmatpush1.msra.mxu0 0.0
    %1503 = vmatprep.subr.mxu0 0.0
    %1504 = vmatpush1.msra.mxu0 0.0
    %1505 = vmatprep.subr.mxu0 0.0
    %1506 = vmatpush1.msra.mxu0 0.0
    %1507 = vmatprep.subr.mxu0 0.0
    %1508 = vmatpush1.msra.mxu0 0.0
    %1509 = vmatprep.subr.mxu0 0.0
    %1510 = vmatpush1.msra.mxu0 0.0
    %1511 = vmatprep.subr.mxu0 0.0
    %1512 = vmatpush1.msra.mxu0 0.0
    %1513 = vmatprep.subr.mxu0 0.0
    %1514 = vmatpush1.msra.mxu0 0.0
    %1515 = vmatprep.subr.mxu0 0.0
    %1516 = vmatpush1.msra.mxu0 0.0
    %1517 = vmatprep.subr.mxu0 0.0
    %1518 = vmatpush1.msra.mxu0 0.0
    %1519 = vmatprep.subr.mxu0 0.0
    %1520 = vmatpush1.msra.mxu0 0.0
    %1521 = vmatprep.subr.mxu0 0.0
    %1522 = vmatpush1.msra.mxu0 0.0
    %1523 = vmatprep.subr.mxu0 0.0
    %1524 = vmatpush1.msra.mxu0 0.0
    %1525 = vmatprep.subr.mxu0 0.0
    %1526 = vmatpush1.msra.mxu0 0.0
    %1527 = vmatprep.subr.mxu0 0.0
    %1528 = vmatpush1.msra.mxu0 0.0
    %1529 = vmatprep.subr.mxu0 0.0
    %1530 = vmatpush1.msra.mxu0 0.0
    %1531 = vmatprep.mubr.f32.mxu0 0.0
    %1532 = vmatmul.mubr.f32.gmra.mrb[0].mxu0 %v1395
    %v1533 = vpop.f32.mrb[0].mxu0
    %v1534 = vadd.f32 0.0, %v1533
    %v1535 = vpop.f32.mrb[0].mxu0
    %v1536 = vadd.f32 0.0, %v1535
    %1537 = vdwg.mxu0
    %v1538 = vadd.f32 %v1391, %v1463
    %v1539 = vadd.f32 %v1392, %v1465
    %v1540 = vadd.f32 %v1393, %v1534
    %v1541 = vadd.f32 %v1394, %v1536
    %v1542 = vxor.u32 %v1538, 2147483648
    %v1543 = vxor.u32 %v1539, 2147483648
    %v1544 = vxor.u32 %v1540, 2147483648
    %v1545 = vmul.f32 %v1542, 1.442695
    %v1546 = vpow.pop %v1545
    %v1547 = vmul.f32 %v1543, 1.442695
    %v1548 = vpow.pop %v1547
    %v1549 = vmul.f32 %v1544, 1.442695
    %v1550 = vpow.pop %v1549
    %v1551 = vadd.f32 %v1546, 1.0
    %v1552 = vadd.f32 %v1548, 1.0
    %v1553 = vadd.f32 %v1550, 1.0
    %v1554 = vrcp.pop %v1551
    %v1555 = vmul.f32 1.0, %v1554
    %v1556 = vrcp.pop %v1552
    %v1557 = vmul.f32 1.0, %v1556
    %v1558 = vrcp.pop %v1553
    %v1559 = vmul.f32 1.0, %v1558
    %v1560 = vtanh.pop %v1541
    %v1561 = vld [vmem:[#allocation5] sm:$0xff]
    %v1562 = vmul.f32 %v1557, %v1561
    %v1563 = vmul.f32 %v1555, %v1560
    %v1564 = vadd.f32 %v1562, %v1563
    %v1565 = vtanh.pop %v1564
    %v1566 = vmul.f32 %v1559, %v1565
    %1567 = vst [vmem:[#allocation5] sm:$0xff] %v1564
    %1568 = vst [vmem:[#allocation4] sm:$0xff] %v1566
    %s1569 = scalar_lea.vmem [#allocation2], 40
    %1570 = vst [vmem:[%s1569] sm:$0xff] %v1566
    %s1571 = smul.u32 6, 4
    %s1572 = smul.addr %s1571, 8
    %s1573 = scalar_lea.vmem [#allocation3], %s1572
    %v1574 = vld [vmem:[%s1573] sm:$0xff]
    %v1575 = vld [vmem:[%s1573 + $0x8] sm:$0xff]
    %v1576 = vld [vmem:[%s1573 + $0x10] sm:$0xff]
    %v1577 = vld [vmem:[%s1573 + $0x18] sm:$0xff]
    %v1578 = vld [vmem:[#allocation4] sm:$0xff]
    %1579 = vmatprep.subr.mxu0 %v96
    %1580 = vmatpush1.msra.mxu0 %v95
    %1581 = vmatprep.subr.mxu0 %v100
    %1582 = vmatpush1.msra.mxu0 %v99
    %1583 = vmatprep.subr.mxu0 %v104
    %1584 = vmatpush1.msra.mxu0 %v103
    %1585 = vmatprep.subr.mxu0 %v108
    %1586 = vmatpush1.msra.mxu0 %v107
    %1587 = vmatprep.subr.mxu0 %v112
    %1588 = vmatpush1.msra.mxu0 %v111
    %1589 = vmatprep.subr.mxu0 %v116
    %1590 = vmatpush1.msra.mxu0 %v115
    %1591 = vmatprep.subr.mxu0 %v120
    %1592 = vmatpush1.msra.mxu0 %v119
    %1593 = vmatprep.subr.mxu0 %v124
    %1594 = vmatpush1.msra.mxu0 %v123
    %1595 = vmatprep.subr.mxu0 %v128
    %1596 = vmatpush1.msra.mxu0 %v127
    %1597 = vmatprep.subr.mxu0 %v132
    %1598 = vmatpush1.msra.mxu0 %v131
    %1599 = vmatprep.subr.mxu0 %v136
    %1600 = vmatpush1.msra.mxu0 %v135
    %1601 = vmatprep.subr.mxu0 %v140
    %1602 = vmatpush1.msra.mxu0 %v139
    %1603 = vmatprep.subr.mxu0 %v144
    %1604 = vmatpush1.msra.mxu0 %v143
    %1605 = vmatprep.subr.mxu0 %v148
    %1606 = vmatpush1.msra.mxu0 %v147
    %1607 = vmatprep.subr.mxu0 %v152
    %1608 = vmatpush1.msra.mxu0 %v151
    %1609 = vmatprep.subr.mxu0 %v156
    %1610 = vmatpush1.msra.mxu0 %v155
    %1611 = vmatprep.subr.mxu0 0.0
    %1612 = vmatpush1.msra.mxu0 0.0
    %1613 = vmatprep.subr.mxu0 0.0
    %1614 = vmatpush1.msra.mxu0 0.0
    %1615 = vmatprep.subr.mxu0 0.0
    %1616 = vmatpush1.msra.mxu0 0.0
    %1617 = vmatprep.subr.mxu0 0.0
    %1618 = vmatpush1.msra.mxu0 0.0
    %1619 = vmatprep.subr.mxu0 0.0
    %1620 = vmatpush1.msra.mxu0 0.0
    %1621 = vmatprep.subr.mxu0 0.0
    %1622 = vmatpush1.msra.mxu0 0.0
    %1623 = vmatprep.subr.mxu0 0.0
    %1624 = vmatpush1.msra.mxu0 0.0
    %1625 = vmatprep.subr.mxu0 0.0
    %1626 = vmatpush1.msra.mxu0 0.0
    %1627 = vmatprep.subr.mxu0 0.0
    %1628 = vmatpush1.msra.mxu0 0.0
    %1629 = vmatprep.subr.mxu0 0.0
    %1630 = vmatpush1.msra.mxu0 0.0
    %1631 = vmatprep.subr.mxu0 0.0
    %1632 = vmatpush1.msra.mxu0 0.0
    %1633 = vmatprep.subr.mxu0 0.0
    %1634 = vmatpush1.msra.mxu0 0.0
    %1635 = vmatprep.subr.mxu0 0.0
    %1636 = vmatpush1.msra.mxu0 0.0
    %1637 = vmatprep.subr.mxu0 0.0
    %1638 = vmatpush1.msra.mxu0 0.0
    %1639 = vmatprep.subr.mxu0 0.0
    %1640 = vmatpush1.msra.mxu0 0.0
    %1641 = vmatprep.subr.mxu0 0.0
    %1642 = vmatpush1.msra.mxu0 0.0
    %1643 = vmatprep.mubr.f32.mxu0 0.0
    %1644 = vmatmul.mubr.f32.gmra.mrb[0].mxu0 %v1578
    %v1645 = vpop.f32.mrb[0].mxu0
    %v1646 = vadd.f32 0.0, %v1645
    %v1647 = vpop.f32.mrb[0].mxu0
    %v1648 = vadd.f32 0.0, %v1647
    %1649 = vdwg.mxu0
    %1650 = vmatprep.subr.mxu0 %v98
    %1651 = vmatpush1.msra.mxu0 %v97
    %1652 = vmatprep.subr.mxu0 %v102
    %1653 = vmatpush1.msra.mxu0 %v101
    %1654 = vmatprep.subr.mxu0 %v106
    %1655 = vmatpush1.msra.mxu0 %v105
    %1656 = vmatprep.subr.mxu0 %v110
    %1657 = vmatpush1.msra.mxu0 %v109
    %1658 = vmatprep.subr.mxu0 %v114
    %1659 = vmatpush1.msra.mxu0 %v113
    %1660 = vmatprep.subr.mxu0 %v118
    %1661 = vmatpush1.msra.mxu0 %v117
    %1662 = vmatprep.subr.mxu0 %v122
    %1663 = vmatpush1.msra.mxu0 %v121
    %1664 = vmatprep.subr.mxu0 %v126
    %1665 = vmatpush1.msra.mxu0 %v125
    %1666 = vmatprep.subr.mxu0 %v130
    %1667 = vmatpush1.msra.mxu0 %v129
    %1668 = vmatprep.subr.mxu0 %v134
    %1669 = vmatpush1.msra.mxu0 %v133
    %1670 = vmatprep.subr.mxu0 %v138
    %1671 = vmatpush1.msra.mxu0 %v137
    %1672 = vmatprep.subr.mxu0 %v142
    %1673 = vmatpush1.msra.mxu0 %v141
    %1674 = vmatprep.subr.mxu0 %v146
    %1675 = vmatpush1.msra.mxu0 %v145
    %1676 = vmatprep.subr.mxu0 %v150
    %1677 = vmatpush1.msra.mxu0 %v149
    %1678 = vmatprep.subr.mxu0 %v154
    %1679 = vmatpush1.msra.mxu0 %v153
    %1680 = vmatprep.subr.mxu0 %v158
    %1681 = vmatpush1.msra.mxu0 %v157
    %1682 = vmatprep.subr.mxu0 0.0
    %1683 = vmatpush1.msra.mxu0 0.0
    %1684 = vmatprep.subr.mxu0 0.0
    %1685 = vmatpush1.msra.mxu0 0.0
    %1686 = vmatprep.subr.mxu0 0.0
    %1687 = vmatpush1.msra.mxu0 0.0
    %1688 = vmatprep.subr.mxu0 0.0
    %1689 = vmatpush1.msra.mxu0 0.0
    %1690 = vmatprep.subr.mxu0 0.0
    %1691 = vmatpush1.msra.mxu0 0.0
    %1692 = vmatprep.subr.mxu0 0.0
    %1693 = vmatpush1.msra.mxu0 0.0
    %1694 = vmatprep.subr.mxu0 0.0
    %1695 = vmatpush1.msra.mxu0 0.0
    %1696 = vmatprep.subr.mxu0 0.0
    %1697 = vmatpush1.msra.mxu0 0.0
    %1698 = vmatprep.subr.mxu0 0.0
    %1699 = vmatpush1.msra.mxu0 0.0
    %1700 = vmatprep.subr.mxu0 0.0
    %1701 = vmatpush1.msra.mxu0 0.0
    %1702 = vmatprep.subr.mxu0 0.0
    %1703 = vmatpush1.msra.mxu0 0.0
    %1704 = vmatprep.subr.mxu0 0.0
    %1705 = vmatpush1.msra.mxu0 0.0
    %1706 = vmatprep.subr.mxu0 0.0
    %1707 = vmatpush1.msra.mxu0 0.0
    %1708 = vmatprep.subr.mxu0 0.0
    %1709 = vmatpush1.msra.mxu0 0.0
    %1710 = vmatprep.subr.mxu0 0.0
    %1711 = vmatpush1.msra.mxu0 0.0
    %1712 = vmatprep.subr.mxu0 0.0
    %1713 = vmatpush1.msra.mxu0 0.0
    %1714 = vmatprep.mubr.f32.mxu0 0.0
    %1715 = vmatmul.mubr.f32.gmra.mrb[0].mxu0 %v1578
    %v1716 = vpop.f32.mrb[0].mxu0
    %v1717 = vadd.f32 0.0, %v1716
    %v1718 = vpop.f32.mrb[0].mxu0
    %v1719 = vadd.f32 0.0, %v1718
    %1720 = vdwg.mxu0
    %v1721 = vadd.f32 %v1574, %v1646
    %v1722 = vadd.f32 %v1575, %v1648
    %v1723 = vadd.f32 %v1576, %v1717
    %v1724 = vadd.f32 %v1577, %v1719
    %v1725 = vxor.u32 %v1721, 2147483648
    %v1726 = vxor.u32 %v1722, 2147483648
    %v1727 = vxor.u32 %v1723, 2147483648
    %v1728 = vmul.f32 %v1725, 1.442695
    %v1729 = vpow.pop %v1728
    %v1730 = vmul.f32 %v1726, 1.442695
    %v1731 = vpow.pop %v1730
    %v1732 = vmul.f32 %v1727, 1.442695
    %v1733 = vpow.pop %v1732
    %v1734 = vadd.f32 %v1729, 1.0
    %v1735 = vadd.f32 %v1731, 1.0
    %v1736 = vadd.f32 %v1733, 1.0
    %v1737 = vrcp.pop %v1734
    %v1738 = vmul.f32 1.0, %v1737
    %v1739 = vrcp.pop %v1735
    %v1740 = vmul.f32 1.0, %v1739
    %v1741 = vrcp.pop %v1736
    %v1742 = vmul.f32 1.0, %v1741
    %v1743 = vtanh.pop %v1724
    %v1744 = vld [vmem:[#allocation5] sm:$0xff]
    %v1745 = vmul.f32 %v1740, %v1744
    %v1746 = vmul.f32 %v1738, %v1743
    %v1747 = vadd.f32 %v1745, %v1746
    %v1748 = vtanh.pop %v1747
    %v1749 = vmul.f32 %v1742, %v1748
    %1750 = vst [vmem:[#allocation5] sm:$0xff] %v1747
    %1751 = vst [vmem:[#allocation4] sm:$0xff] %v1749
    %s1752 = scalar_lea.vmem [#allocation2], 48
    %1753 = vst [vmem:[%s1752] sm:$0xff] %v1749
    %s1754 = smul.u32 7, 4
    %s1755 = smul.addr %s1754, 8
    %s1756 = scalar_lea.vmem [#allocation3], %s1755
    %v1757 = vld [vmem:[%s1756] sm:$0xff]
    %v1758 = vld [vmem:[%s1756 + $0x8] sm:$0xff]
    %v1759 = vld [vmem:[%s1756 + $0x10] sm:$0xff]
    %v1760 = vld [vmem:[%s1756 + $0x18] sm:$0xff]
    %v1761 = vld [vmem:[#allocation4] sm:$0xff]
    %1762 = vmatprep.subr.mxu0 %v96
    %1763 = vmatpush1.msra.mxu0 %v95
    %1764 = vmatprep.subr.mxu0 %v100
    %1765 = vmatpush1.msra.mxu0 %v99
    %1766 = vmatprep.subr.mxu0 %v104
    %1767 = vmatpush1.msra.mxu0 %v103
    %1768 = vmatprep.subr.mxu0 %v108
    %1769 = vmatpush1.msra.mxu0 %v107
    %1770 = vmatprep.subr.mxu0 %v112
    %1771 = vmatpush1.msra.mxu0 %v111
    %1772 = vmatprep.subr.mxu0 %v116
    %1773 = vmatpush1.msra.mxu0 %v115
    %1774 = vmatprep.subr.mxu0 %v120
    %1775 = vmatpush1.msra.mxu0 %v119
    %1776 = vmatprep.subr.mxu0 %v124
    %1777 = vmatpush1.msra.mxu0 %v123
    %1778 = vmatprep.subr.mxu0 %v128
    %1779 = vmatpush1.msra.mxu0 %v127
    %1780 = vmatprep.subr.mxu0 %v132
    %1781 = vmatpush1.msra.mxu0 %v131
    %1782 = vmatprep.subr.mxu0 %v136
    %1783 = vmatpush1.msra.mxu0 %v135
    %1784 = vmatprep.subr.mxu0 %v140
    %1785 = vmatpush1.msra.mxu0 %v139
    %1786 = vmatprep.subr.mxu0 %v144
    %1787 = vmatpush1.msra.mxu0 %v143
    %1788 = vmatprep.subr.mxu0 %v148
    %1789 = vmatpush1.msra.mxu0 %v147
    %1790 = vmatprep.subr.mxu0 %v152
    %1791 = vmatpush1.msra.mxu0 %v151
    %1792 = vmatprep.subr.mxu0 %v156
    %1793 = vmatpush1.msra.mxu0 %v155
    %1794 = vmatprep.subr.mxu0 0.0
    %1795 = vmatpush1.msra.mxu0 0.0
    %1796 = vmatprep.subr.mxu0 0.0
    %1797 = vmatpush1.msra.mxu0 0.0
    %1798 = vmatprep.subr.mxu0 0.0
    %1799 = vmatpush1.msra.mxu0 0.0
    %1800 = vmatprep.subr.mxu0 0.0
    %1801 = vmatpush1.msra.mxu0 0.0
    %1802 = vmatprep.subr.mxu0 0.0
    %1803 = vmatpush1.msra.mxu0 0.0
    %1804 = vmatprep.subr.mxu0 0.0
    %1805 = vmatpush1.msra.mxu0 0.0
    %1806 = vmatprep.subr.mxu0 0.0
    %1807 = vmatpush1.msra.mxu0 0.0
    %1808 = vmatprep.subr.mxu0 0.0
    %1809 = vmatpush1.msra.mxu0 0.0
    %1810 = vmatprep.subr.mxu0 0.0
    %1811 = vmatpush1.msra.mxu0 0.0
    %1812 = vmatprep.subr.mxu0 0.0
    %1813 = vmatpush1.msra.mxu0 0.0
    %1814 = vmatprep.subr.mxu0 0.0
    %1815 = vmatpush1.msra.mxu0 0.0
    %1816 = vmatprep.subr.mxu0 0.0
    %1817 = vmatpush1.msra.mxu0 0.0
    %1818 = vmatprep.subr.mxu0 0.0
    %1819 = vmatpush1.msra.mxu0 0.0
    %1820 = vmatprep.subr.mxu0 0.0
    %1821 = vmatpush1.msra.mxu0 0.0
    %1822 = vmatprep.subr.mxu0 0.0
    %1823 = vmatpush1.msra.mxu0 0.0
    %1824 = vmatprep.subr.mxu0 0.0
    %1825 = vmatpush1.msra.mxu0 0.0
    %1826 = vmatprep.mubr.f32.mxu0 0.0
    %1827 = vmatmul.mubr.f32.gmra.mrb[0].mxu0 %v1761
    %v1828 = vpop.f32.mrb[0].mxu0
    %v1829 = vadd.f32 0.0, %v1828
    %v1830 = vpop.f32.mrb[0].mxu0
    %v1831 = vadd.f32 0.0, %v1830
    %1832 = vdwg.mxu0
    %1833 = vmatprep.subr.mxu0 %v98
    %1834 = vmatpush1.msra.mxu0 %v97
    %1835 = vmatprep.subr.mxu0 %v102
    %1836 = vmatpush1.msra.mxu0 %v101
    %1837 = vmatprep.subr.mxu0 %v106
    %1838 = vmatpush1.msra.mxu0 %v105
    %1839 = vmatprep.subr.mxu0 %v110
    %1840 = vmatpush1.msra.mxu0 %v109
    %1841 = vmatprep.subr.mxu0 %v114
    %1842 = vmatpush1.msra.mxu0 %v113
    %1843 = vmatprep.subr.mxu0 %v118
    %1844 = vmatpush1.msra.mxu0 %v117
    %1845 = vmatprep.subr.mxu0 %v122
    %1846 = vmatpush1.msra.mxu0 %v121
    %1847 = vmatprep.subr.mxu0 %v126
    %1848 = vmatpush1.msra.mxu0 %v125
    %1849 = vmatprep.subr.mxu0 %v130
    %1850 = vmatpush1.msra.mxu0 %v129
    %1851 = vmatprep.subr.mxu0 %v134
    %1852 = vmatpush1.msra.mxu0 %v133
    %1853 = vmatprep.subr.mxu0 %v138
    %1854 = vmatpush1.msra.mxu0 %v137
    %1855 = vmatprep.subr.mxu0 %v142
    %1856 = vmatpush1.msra.mxu0 %v141
    %1857 = vmatprep.subr.mxu0 %v146
    %1858 = vmatpush1.msra.mxu0 %v145
    %1859 = vmatprep.subr.mxu0 %v150
    %1860 = vmatpush1.msra.mxu0 %v149
    %1861 = vmatprep.subr.mxu0 %v154
    %1862 = vmatpush1.msra.mxu0 %v153
    %1863 = vmatprep.subr.mxu0 %v158
    %1864 = vmatpush1.msra.mxu0 %v157
    %1865 = vmatprep.subr.mxu0 0.0
    %1866 = vmatpush1.msra.mxu0 0.0
    %1867 = vmatprep.subr.mxu0 0.0
    %1868 = vmatpush1.msra.mxu0 0.0
    %1869 = vmatprep.subr.mxu0 0.0
    %1870 = vmatpush1.msra.mxu0 0.0
    %1871 = vmatprep.subr.mxu0 0.0
    %1872 = vmatpush1.msra.mxu0 0.0
    %1873 = vmatprep.subr.mxu0 0.0
    %1874 = vmatpush1.msra.mxu0 0.0
    %1875 = vmatprep.subr.mxu0 0.0
    %1876 = vmatpush1.msra.mxu0 0.0
    %1877 = vmatprep.subr.mxu0 0.0
    %1878 = vmatpush1.msra.mxu0 0.0
    %1879 = vmatprep.subr.mxu0 0.0
    %1880 = vmatpush1.msra.mxu0 0.0
    %1881 = vmatprep.subr.mxu0 0.0
    %1882 = vmatpush1.msra.mxu0 0.0
    %1883 = vmatprep.subr.mxu0 0.0
    %1884 = vmatpush1.msra.mxu0 0.0
    %1885 = vmatprep.subr.mxu0 0.0
    %1886 = vmatpush1.msra.mxu0 0.0
    %1887 = vmatprep.subr.mxu0 0.0
    %1888 = vmatpush1.msra.mxu0 0.0
    %1889 = vmatprep.subr.mxu0 0.0
    %1890 = vmatpush1.msra.mxu0 0.0
    %1891 = vmatprep.subr.mxu0 0.0
    %1892 = vmatpush1.msra.mxu0 0.0
    %1893 = vmatprep.subr.mxu0 0.0
    %1894 = vmatpush1.msra.mxu0 0.0
    %1895 = vmatprep.subr.mxu0 0.0
    %1896 = vmatpush1.msra.mxu0 0.0
    %1897 = vmatprep.mubr.f32.mxu0 0.0
    %1898 = vmatmul.mubr.f32.gmra.mrb[0].mxu0 %v1761
    %v1899 = vpop.f32.mrb[0].mxu0
    %v1900 = vadd.f32 0.0, %v1899
    %v1901 = vpop.f32.mrb[0].mxu0
    %v1902 = vadd.f32 0.0, %v1901
    %1903 = vdwg.mxu0
    %v1904 = vadd.f32 %v1757, %v1829
    %v1905 = vadd.f32 %v1758, %v1831
    %v1906 = vadd.f32 %v1759, %v1900
    %v1907 = vadd.f32 %v1760, %v1902
    %v1908 = vxor.u32 %v1904, 2147483648
    %v1909 = vxor.u32 %v1905, 2147483648
    %v1910 = vxor.u32 %v1906, 2147483648
    %v1911 = vmul.f32 %v1908, 1.442695
    %v1912 = vpow.pop %v1911
    %v1913 = vmul.f32 %v1909, 1.442695
    %v1914 = vpow.pop %v1913
    %v1915 = vmul.f32 %v1910, 1.442695
    %v1916 = vpow.pop %v1915
    %v1917 = vadd.f32 %v1912, 1.0
    %v1918 = vadd.f32 %v1914, 1.0
    %v1919 = vadd.f32 %v1916, 1.0
    %v1920 = vrcp.pop %v1917
    %v1921 = vmul.f32 1.0, %v1920
    %v1922 = vrcp.pop %v1918
    %v1923 = vmul.f32 1.0, %v1922
    %v1924 = vrcp.pop %v1919
    %v1925 = vmul.f32 1.0, %v1924
    %v1926 = vtanh.pop %v1907
    %v1927 = vld [vmem:[#allocation5] sm:$0xff]
    %v1928 = vmul.f32 %v1923, %v1927
    %v1929 = vmul.f32 %v1921, %v1926
    %v1930 = vadd.f32 %v1928, %v1929
    %v1931 = vtanh.pop %v1930
    %v1932 = vmul.f32 %v1925, %v1931
    %1933 = vst [vmem:[#allocation5] sm:$0xff] %v1930
    %1934 = vst [vmem:[#allocation4] sm:$0xff] %v1932
    %s1935 = scalar_lea.vmem [#allocation2], 56
    %1936 = vst [vmem:[%s1935] sm:$0xff] %v1932
    %v1937 = vld [vmem:[#allocation8] sm:$0xff]
    %v1938 = vld [vmem:[#allocation8 + $0x8] sm:$0xff]
    %v1939 = vld [vmem:[#allocation8 + $0x10] sm:$0xff]
    %v1940 = vld [vmem:[#allocation8 + $0x18] sm:$0xff]
    %v1941 = vld [vmem:[#allocation8 + $0x20] sm:$0xff]
    %v1942 = vld [vmem:[#allocation8 + $0x28] sm:$0xff]
    %v1943 = vld [vmem:[#allocation8 + $0x30] sm:$0xff]
    %v1944 = vld [vmem:[#allocation8 + $0x38] sm:$0xff]
    %v1945 = vld [vmem:[#allocation8 + $0x40] sm:$0xff]
    %v1946 = vld [vmem:[#allocation8 + $0x48] sm:$0xff]
    %v1947 = vld [vmem:[#allocation8 + $0x50] sm:$0xff]
    %v1948 = vld [vmem:[#allocation8 + $0x58] sm:$0xff]
    %v1949 = vld [vmem:[#allocation8 + $0x60] sm:$0xff]
    %v1950 = vld [vmem:[#allocation8 + $0x68] sm:$0xff]
    %v1951 = vld [vmem:[#allocation8 + $0x70] sm:$0xff]
    %v1952 = vld [vmem:[#allocation8 + $0x78] sm:$0xff]
    %v1953 = vld [vmem:[#allocation8 + $0x80] sm:$0xff]
    %v1954 = vld [vmem:[#allocation8 + $0x88] sm:$0xff]
    %v1955 = vld [vmem:[#allocation8 + $0x90] sm:$0xff]
    %v1956 = vld [vmem:[#allocation8 + $0x98] sm:$0xff]
    %v1957 = vld [vmem:[#allocation8 + $0xa0] sm:$0xff]
    %v1958 = vld [vmem:[#allocation8 + $0xa8] sm:$0xff]
    %v1959 = vld [vmem:[#allocation8 + $0xb0] sm:$0xff]
    %v1960 = vld [vmem:[#allocation8 + $0xb8] sm:$0xff]
    %v1961 = vld [vmem:[#allocation8 + $0xc0] sm:$0xff]
    %v1962 = vld [vmem:[#allocation8 + $0xc8] sm:$0xff]
    %v1963 = vld [vmem:[#allocation8 + $0xd0] sm:$0xff]
    %v1964 = vld [vmem:[#allocation8 + $0xd8] sm:$0xff]
    %v1965 = vld [vmem:[#allocation8 + $0xe0] sm:$0xff]
    %v1966 = vld [vmem:[#allocation8 + $0xe8] sm:$0xff]
    %v1967 = vld [vmem:[#allocation8 + $0xf0] sm:$0xff]
    %v1968 = vld [vmem:[#allocation8 + $0xf8] sm:$0xff]
    %v1969 = vld [vmem:[#allocation8 + $0x100] sm:$0xff]
    %v1970 = vld [vmem:[#allocation8 + $0x108] sm:$0xff]
    %v1971 = vld [vmem:[#allocation8 + $0x110] sm:$0xff]
    %v1972 = vld [vmem:[#allocation8 + $0x118] sm:$0xff]
    %v1973 = vld [vmem:[#allocation8 + $0x120] sm:$0xff]
    %v1974 = vld [vmem:[#allocation8 + $0x128] sm:$0xff]
    %v1975 = vld [vmem:[#allocation8 + $0x130] sm:$0xff]
    %v1976 = vld [vmem:[#allocation8 + $0x138] sm:$0xff]
    %v1977 = vld [vmem:[#allocation8 + $0x140] sm:$0xff]
    %v1978 = vld [vmem:[#allocation8 + $0x148] sm:$0xff]
    %v1979 = vld [vmem:[#allocation8 + $0x150] sm:$0xff]
    %v1980 = vld [vmem:[#allocation8 + $0x158] sm:$0xff]
    %v1981 = vld [vmem:[#allocation8 + $0x160] sm:$0xff]
    %v1982 = vld [vmem:[#allocation8 + $0x168] sm:$0xff]
    %v1983 = vld [vmem:[#allocation8 + $0x170] sm:$0xff]
    %v1984 = vld [vmem:[#allocation8 + $0x178] sm:$0xff]
    %v1985 = vld [vmem:[#allocation8 + $0x180] sm:$0xff]
    %v1986 = vld [vmem:[#allocation8 + $0x188] sm:$0xff]
    %v1987 = vld [vmem:[#allocation8 + $0x190] sm:$0xff]
    %v1988 = vld [vmem:[#allocation8 + $0x198] sm:$0xff]
    %v1989 = vld [vmem:[#allocation8 + $0x1a0] sm:$0xff]
    %v1990 = vld [vmem:[#allocation8 + $0x1a8] sm:$0xff]
    %v1991 = vld [vmem:[#allocation8 + $0x1b0] sm:$0xff]
    %v1992 = vld [vmem:[#allocation8 + $0x1b8] sm:$0xff]
    %v1993 = vld [vmem:[#allocation8 + $0x1c0] sm:$0xff]
    %v1994 = vld [vmem:[#allocation8 + $0x1c8] sm:$0xff]
    %v1995 = vld [vmem:[#allocation8 + $0x1d0] sm:$0xff]
    %v1996 = vld [vmem:[#allocation8 + $0x1d8] sm:$0xff]
    %v1997 = vld [vmem:[#allocation8 + $0x1e0] sm:$0xff]
    %v1998 = vld [vmem:[#allocation8 + $0x1e8] sm:$0xff]
    %v1999 = vld [vmem:[#allocation8 + $0x1f0] sm:$0xff]
    %v2000 = vld [vmem:[#allocation8 + $0x1f8] sm:$0xff]
    %v2001 = vld [vmem:[#allocation10] sm:$0xff]
    %v2002 = vld [vmem:[#allocation10 + $0x8] sm:$0xff]
    %v2003 = vld [vmem:[#allocation10 + $0x10] sm:$0xff]
    %v2004 = vld [vmem:[#allocation10 + $0x18] sm:$0xff]
    %v2005 = vld [vmem:[#allocation10 + $0x20] sm:$0xff]
    %v2006 = vld [vmem:[#allocation10 + $0x28] sm:$0xff]
    %v2007 = vld [vmem:[#allocation10 + $0x30] sm:$0xff]
    %v2008 = vld [vmem:[#allocation10 + $0x38] sm:$0xff]
    %v2009 = vld [vmem:[#allocation10 + $0x40] sm:$0xff]
    %v2010 = vld [vmem:[#allocation10 + $0x48] sm:$0xff]
    %v2011 = vld [vmem:[#allocation10 + $0x50] sm:$0xff]
    %v2012 = vld [vmem:[#allocation10 + $0x58] sm:$0xff]
    %v2013 = vld [vmem:[#allocation10 + $0x60] sm:$0xff]
    %v2014 = vld [vmem:[#allocation10 + $0x68] sm:$0xff]
    %v2015 = vld [vmem:[#allocation10 + $0x70] sm:$0xff]
    %v2016 = vld [vmem:[#allocation10 + $0x78] sm:$0xff]
    %v2017 = vld [vmem:[#allocation10 + $0x80] sm:$0xff]
    %v2018 = vld [vmem:[#allocation10 + $0x88] sm:$0xff]
    %v2019 = vld [vmem:[#allocation10 + $0x90] sm:$0xff]
    %v2020 = vld [vmem:[#allocation10 + $0x98] sm:$0xff]
    %v2021 = vld [vmem:[#allocation10 + $0xa0] sm:$0xff]
    %v2022 = vld [vmem:[#allocation10 + $0xa8] sm:$0xff]
    %v2023 = vld [vmem:[#allocation10 + $0xb0] sm:$0xff]
    %v2024 = vld [vmem:[#allocation10 + $0xb8] sm:$0xff]
    %v2025 = vld [vmem:[#allocation10 + $0xc0] sm:$0xff]
    %v2026 = vld [vmem:[#allocation10 + $0xc8] sm:$0xff]
    %v2027 = vld [vmem:[#allocation10 + $0xd0] sm:$0xff]
    %v2028 = vld [vmem:[#allocation10 + $0xd8] sm:$0xff]
    %v2029 = vld [vmem:[#allocation10 + $0xe0] sm:$0xff]
    %v2030 = vld [vmem:[#allocation10 + $0xe8] sm:$0xff]
    %v2031 = vld [vmem:[#allocation10 + $0xf0] sm:$0xff]
    %v2032 = vld [vmem:[#allocation10 + $0xf8] sm:$0xff]
    %v2033 = vld [vmem:[#allocation10 + $0x100] sm:$0xff]
    %v2034 = vld [vmem:[#allocation10 + $0x108] sm:$0xff]
    %v2035 = vld [vmem:[#allocation10 + $0x110] sm:$0xff]
    %v2036 = vld [vmem:[#allocation10 + $0x118] sm:$0xff]
    %v2037 = vld [vmem:[#allocation10 + $0x120] sm:$0xff]
    %v2038 = vld [vmem:[#allocation10 + $0x128] sm:$0xff]
    %v2039 = vld [vmem:[#allocation10 + $0x130] sm:$0xff]
    %v2040 = vld [vmem:[#allocation10 + $0x138] sm:$0xff]
    %v2041 = vld [vmem:[#allocation10 + $0x140] sm:$0xff]
    %v2042 = vld [vmem:[#allocation10 + $0x148] sm:$0xff]
    %v2043 = vld [vmem:[#allocation10 + $0x150] sm:$0xff]
    %v2044 = vld [vmem:[#allocation10 + $0x158] sm:$0xff]
    %v2045 = vld [vmem:[#allocation10 + $0x160] sm:$0xff]
    %v2046 = vld [vmem:[#allocation10 + $0x168] sm:$0xff]
    %v2047 = vld [vmem:[#allocation10 + $0x170] sm:$0xff]
    %v2048 = vld [vmem:[#allocation10 + $0x178] sm:$0xff]
    %v2049 = vld [vmem:[#allocation10 + $0x180] sm:$0xff]
    %v2050 = vld [vmem:[#allocation10 + $0x188] sm:$0xff]
    %v2051 = vld [vmem:[#allocation10 + $0x190] sm:$0xff]
    %v2052 = vld [vmem:[#allocation10 + $0x198] sm:$0xff]
    %v2053 = vld [vmem:[#allocation10 + $0x1a0] sm:$0xff]
    %v2054 = vld [vmem:[#allocation10 + $0x1a8] sm:$0xff]
    %v2055 = vld [vmem:[#allocation10 + $0x1b0] sm:$0xff]
    %v2056 = vld [vmem:[#allocation10 + $0x1b8] sm:$0xff]
    %v2057 = vld [vmem:[#allocation10 + $0x1c0] sm:$0xff]
    %v2058 = vld [vmem:[#allocation10 + $0x1c8] sm:$0xff]
    %v2059 = vld [vmem:[#allocation10 + $0x1d0] sm:$0xff]
    %v2060 = vld [vmem:[#allocation10 + $0x1d8] sm:$0xff]
    %v2061 = vld [vmem:[#allocation10 + $0x1e0] sm:$0xff]
    %v2062 = vld [vmem:[#allocation10 + $0x1e8] sm:$0xff]
    %v2063 = vld [vmem:[#allocation10 + $0x1f0] sm:$0xff]
    %v2064 = vld [vmem:[#allocation10 + $0x1f8] sm:$0xff]
    %v2065 = vld [vmem:[%s6] sm:$0xf]
    %v2066 = vld [vmem:[#allocation2] sm:$0xff]
    %v2067 = vld [vmem:[#allocation2 + $0x8] sm:$0xff]
    %v2068 = vld [vmem:[#allocation2 + $0x10] sm:$0xff]
    %v2069 = vld [vmem:[#allocation2 + $0x18] sm:$0xff]
    %v2070 = vld [vmem:[#allocation2 + $0x20] sm:$0xff]
    %v2071 = vld [vmem:[#allocation2 + $0x28] sm:$0xff]
    %v2072 = vld [vmem:[#allocation2 + $0x30] sm:$0xff]
    %v2073 = vld [vmem:[#allocation2 + $0x38] sm:$0xff]
    %v2075 = vlaneseq
    %v2076 = vshrl.u32 %v2075, 7
    %v2077 = vsub.s32 0, %v2076
    %v2078 = vrot.slane %v2065, %v2077
    %v2079 = vlaneseq
    %v2080 = vshrl.u32 %v2079, 7
    %v2081 = vsub.s32 1, %v2080
    %v2082 = vrot.slane %v2065, %v2081
    %v2083 = vlaneseq
    %v2084 = vshrl.u32 %v2083, 7
    %v2085 = vsub.s32 2, %v2084
    %v2086 = vrot.slane %v2065, %v2085
    %v2087 = vlaneseq
    %v2088 = vshrl.u32 %v2087, 7
    %v2089 = vsub.s32 3, %v2088
    %v2090 = vrot.slane %v2065, %v2089
    %2095 = vmatprep.subr.mxu0 %v1938
    %2096 = vmatpush1.msra.mxu0 %v1937
    %2097 = vmatprep.subr.mxu0 %v1942
    %2098 = vmatpush1.msra.mxu0 %v1941
    %2099 = vmatprep.subr.mxu0 %v1946
    %2100 = vmatpush1.msra.mxu0 %v1945
    %2101 = vmatprep.subr.mxu0 %v1950
    %2102 = vmatpush1.msra.mxu0 %v1949
    %2103 = vmatprep.subr.mxu0 %v1954
    %2104 = vmatpush1.msra.mxu0 %v1953
    %2105 = vmatprep.subr.mxu0 %v1958
    %2106 = vmatpush1.msra.mxu0 %v1957
    %2107 = vmatprep.subr.mxu0 %v1962
    %2108 = vmatpush1.msra.mxu0 %v1961
    %2109 = vmatprep.subr.mxu0 %v1966
    %2110 = vmatpush1.msra.mxu0 %v1965
    %2111 = vmatprep.subr.mxu0 %v1970
    %2112 = vmatpush1.msra.mxu0 %v1969
    %2113 = vmatprep.subr.mxu0 %v1974
    %2114 = vmatpush1.msra.mxu0 %v1973
    %2115 = vmatprep.subr.mxu0 %v1978
    %2116 = vmatpush1.msra.mxu0 %v1977
    %2117 = vmatprep.subr.mxu0 %v1982
    %2118 = vmatpush1.msra.mxu0 %v1981
    %2119 = vmatprep.subr.mxu0 %v1986
    %2120 = vmatpush1.msra.mxu0 %v1985
    %2121 = vmatprep.subr.mxu0 %v1990
    %2122 = vmatpush1.msra.mxu0 %v1989
    %2123 = vmatprep.subr.mxu0 %v1994
    %2124 = vmatpush1.msra.mxu0 %v1993
    %2125 = vmatprep.subr.mxu0 %v1998
    %2126 = vmatpush1.msra.mxu0 %v1997
    %2127 = vmatprep.subr.mxu0 0.0
    %2128 = vmatpush1.msra.mxu0 0.0
    %2129 = vmatprep.subr.mxu0 0.0
    %2130 = vmatpush1.msra.mxu0 0.0
    %2131 = vmatprep.subr.mxu0 0.0
    %2132 = vmatpush1.msra.mxu0 0.0
    %2133 = vmatprep.subr.mxu0 0.0
    %2134 = vmatpush1.msra.mxu0 0.0
    %2135 = vmatprep.subr.mxu0 0.0
    %2136 = vmatpush1.msra.mxu0 0.0
    %2137 = vmatprep.subr.mxu0 0.0
    %2138 = vmatpush1.msra.mxu0 0.0
    %2139 = vmatprep.subr.mxu0 0.0
    %2140 = vmatpush1.msra.mxu0 0.0
    %2141 = vmatprep.subr.mxu0 0.0
    %2142 = vmatpush1.msra.mxu0 0.0
    %2143 = vmatprep.subr.mxu0 0.0
    %2144 = vmatpush1.msra.mxu0 0.0
    %2145 = vmatprep.subr.mxu0 0.0
    %2146 = vmatpush1.msra.mxu0 0.0
    %2147 = vmatprep.subr.mxu0 0.0
    %2148 = vmatpush1.msra.mxu0 0.0
    %2149 = vmatprep.subr.mxu0 0.0
    %2150 = vmatpush1.msra.mxu0 0.0
    %2151 = vmatprep.subr.mxu0 0.0
    %2152 = vmatpush1.msra.mxu0 0.0
    %2153 = vmatprep.subr.mxu0 0.0
    %2154 = vmatpush1.msra.mxu0 0.0
    %2155 = vmatprep.subr.mxu0 0.0
    %2156 = vmatpush1.msra.mxu0 0.0
    %2157 = vmatprep.subr.mxu0 0.0
    %2158 = vmatpush1.msra.mxu0 0.0
    %2159 = vmatprep.mubr.f32.mxu0 0.0
    %2160 = vmatmul.mubr.f32.gmra.mrb[0].mxu0 %v2066
    %v2161 = vpop.f32.mrb[0].mxu0
    %v2162 = vadd.f32 %v2078, %v2161
    %v2163 = vpop.f32.mrb[0].mxu0
    %v2164 = vadd.f32 %v2082, %v2163
    %2165 = vmatprep.mubr.f32.mxu0 0.0
    %2166 = vmatmul.mubr.f32.gmra.mrb[0].mxu0 %v2067
    %v2167 = vpop.f32.mrb[0].mxu0
    %v2168 = vadd.f32 %v2078, %v2167
    %v2169 = vpop.f32.mrb[0].mxu0
    %v2170 = vadd.f32 %v2082, %v2169
    %2171 = vmatprep.mubr.f32.mxu0 0.0
    %2172 = vmatmul.mubr.f32.gmra.mrb[0].mxu0 %v2068
    %v2173 = vpop.f32.mrb[0].mxu0
    %v2174 = vadd.f32 %v2078, %v2173
    %v2175 = vpop.f32.mrb[0].mxu0
    %v2176 = vadd.f32 %v2082, %v2175
    %2177 = vmatprep.mubr.f32.mxu0 0.0
    %2178 = vmatmul.mubr.f32.gmra.mrb[0].mxu0 %v2069
    %v2179 = vpop.f32.mrb[0].mxu0
    %v2180 = vadd.f32 %v2078, %v2179
    %v2181 = vpop.f32.mrb[0].mxu0
    %v2182 = vadd.f32 %v2082, %v2181
    %2183 = vmatprep.mubr.f32.mxu0 0.0
    %2184 = vmatmul.mubr.f32.gmra.mrb[0].mxu0 %v2070
    %v2185 = vpop.f32.mrb[0].mxu0
    %v2186 = vadd.f32 %v2078, %v2185
    %v2187 = vpop.f32.mrb[0].mxu0
    %v2188 = vadd.f32 %v2082, %v2187
    %2189 = vmatprep.mubr.f32.mxu0 0.0
    %2190 = vmatmul.mubr.f32.gmra.mrb[0].mxu0 %v2071
    %v2191 = vpop.f32.mrb[0].mxu0
    %v2192 = vadd.f32 %v2078, %v2191
    %v2193 = vpop.f32.mrb[0].mxu0
    %v2194 = vadd.f32 %v2082, %v2193
    %2195 = vmatprep.mubr.f32.mxu0 0.0
    %2196 = vmatmul.mubr.f32.gmra.mrb[0].mxu0 %v2072
    %v2197 = vpop.f32.mrb[0].mxu0
    %v2198 = vadd.f32 %v2078, %v2197
    %v2199 = vpop.f32.mrb[0].mxu0
    %v2200 = vadd.f32 %v2082, %v2199
    %2201 = vmatprep.mubr.f32.mxu0 0.0
    %2202 = vmatmul.mubr.f32.gmra.mrb[0].mxu0 %v2073
    %v2203 = vpop.f32.mrb[0].mxu0
    %v2204 = vadd.f32 %v2078, %v2203
    %v2205 = vpop.f32.mrb[0].mxu0
    %v2206 = vadd.f32 %v2082, %v2205
    %2207 = vdwg.mxu0
    %2208 = vmatprep.subr.mxu0 %v1940
    %2209 = vmatpush1.msra.mxu0 %v1939
    %2210 = vmatprep.subr.mxu0 %v1944
    %2211 = vmatpush1.msra.mxu0 %v1943
    %2212 = vmatprep.subr.mxu0 %v1948
    %2213 = vmatpush1.msra.mxu0 %v1947
    %2214 = vmatprep.subr.mxu0 %v1952
    %2215 = vmatpush1.msra.mxu0 %v1951
    %2216 = vmatprep.subr.mxu0 %v1956
    %2217 = vmatpush1.msra.mxu0 %v1955
    %2218 = vmatprep.subr.mxu0 %v1960
    %2219 = vmatpush1.msra.mxu0 %v1959
    %2220 = vmatprep.subr.mxu0 %v1964
    %2221 = vmatpush1.msra.mxu0 %v1963
    %2222 = vmatprep.subr.mxu0 %v1968
    %2223 = vmatpush1.msra.mxu0 %v1967
    %2224 = vmatprep.subr.mxu0 %v1972
    %2225 = vmatpush1.msra.mxu0 %v1971
    %2226 = vmatprep.subr.mxu0 %v1976
    %2227 = vmatpush1.msra.mxu0 %v1975
    %2228 = vmatprep.subr.mxu0 %v1980
    %2229 = vmatpush1.msra.mxu0 %v1979
    %2230 = vmatprep.subr.mxu0 %v1984
    %2231 = vmatpush1.msra.mxu0 %v1983
    %2232 = vmatprep.subr.mxu0 %v1988
    %2233 = vmatpush1.msra.mxu0 %v1987
    %2234 = vmatprep.subr.mxu0 %v1992
    %2235 = vmatpush1.msra.mxu0 %v1991
    %2236 = vmatprep.subr.mxu0 %v1996
    %2237 = vmatpush1.msra.mxu0 %v1995
    %2238 = vmatprep.subr.mxu0 %v2000
    %2239 = vmatpush1.msra.mxu0 %v1999
    %2240 = vmatprep.subr.mxu0 0.0
    %2241 = vmatpush1.msra.mxu0 0.0
    %2242 = vmatprep.subr.mxu0 0.0
    %2243 = vmatpush1.msra.mxu0 0.0
    %2244 = vmatprep.subr.mxu0 0.0
    %2245 = vmatpush1.msra.mxu0 0.0
    %2246 = vmatprep.subr.mxu0 0.0
    %2247 = vmatpush1.msra.mxu0 0.0
    %2248 = vmatprep.subr.mxu0 0.0
    %2249 = vmatpush1.msra.mxu0 0.0
    %2250 = vmatprep.subr.mxu0 0.0
    %2251 = vmatpush1.msra.mxu0 0.0
    %2252 = vmatprep.subr.mxu0 0.0
    %2253 = vmatpush1.msra.mxu0 0.0
    %2254 = vmatprep.subr.mxu0 0.0
    %2255 = vmatpush1.msra.mxu0 0.0
    %2256 = vmatprep.subr.mxu0 0.0
    %2257 = vmatpush1.msra.mxu0 0.0
    %2258 = vmatprep.subr.mxu0 0.0
    %2259 = vmatpush1.msra.mxu0 0.0
    %2260 = vmatprep.subr.mxu0 0.0
    %2261 = vmatpush1.msra.mxu0 0.0
    %2262 = vmatprep.subr.mxu0 0.0
    %2263 = vmatpush1.msra.mxu0 0.0
    %2264 = vmatprep.subr.mxu0 0.0
    %2265 = vmatpush1.msra.mxu0 0.0
    %2266 = vmatprep.subr.mxu0 0.0
    %2267 = vmatpush1.msra.mxu0 0.0
    %2268 = vmatprep.subr.mxu0 0.0
    %2269 = vmatpush1.msra.mxu0 0.0
    %2270 = vmatprep.subr.mxu0 0.0
    %2271 = vmatpush1.msra.mxu0 0.0
    %2272 = vmatprep.mubr.f32.mxu0 0.0
    %2273 = vmatmul.mubr.f32.gmra.mrb[0].mxu0 %v2066
    %v2274 = vpop.f32.mrb[0].mxu0
    %v2275 = vadd.f32 %v2086, %v2274
    %v2276 = vpop.f32.mrb[0].mxu0
    %v2277 = vadd.f32 %v2090, %v2276
    %2278 = vmatprep.mubr.f32.mxu0 0.0
    %2279 = vmatmul.mubr.f32.gmra.mrb[0].mxu0 %v2067
    %v2280 = vpop.f32.mrb[0].mxu0
    %v2281 = vadd.f32 %v2086, %v2280
    %v2282 = vpop.f32.mrb[0].mxu0
    %v2283 = vadd.f32 %v2090, %v2282
    %2284 = vmatprep.mubr.f32.mxu0 0.0
    %2285 = vmatmul.mubr.f32.gmra.mrb[0].mxu0 %v2068
    %v2286 = vpop.f32.mrb[0].mxu0
    %v2287 = vadd.f32 %v2086, %v2286
    %v2288 = vpop.f32.mrb[0].mxu0
    %v2289 = vadd.f32 %v2090, %v2288
    %2290 = vmatprep.mubr.f32.mxu0 0.0
    %2291 = vmatmul.mubr.f32.gmra.mrb[0].mxu0 %v2069
    %v2292 = vpop.f32.mrb[0].mxu0
    %v2293 = vadd.f32 %v2086, %v2292
    %v2294 = vpop.f32.mrb[0].mxu0
    %v2295 = vadd.f32 %v2090, %v2294
    %2296 = vmatprep.mubr.f32.mxu0 0.0
    %2297 = vmatmul.mubr.f32.gmra.mrb[0].mxu0 %v2070
    %v2298 = vpop.f32.mrb[0].mxu0
    %v2299 = vadd.f32 %v2086, %v2298
    %v2300 = vpop.f32.mrb[0].mxu0
    %v2301 = vadd.f32 %v2090, %v2300
    %2302 = vmatprep.mubr.f32.mxu0 0.0
    %2303 = vmatmul.mubr.f32.gmra.mrb[0].mxu0 %v2071
    %v2304 = vpop.f32.mrb[0].mxu0
    %v2305 = vadd.f32 %v2086, %v2304
    %v2306 = vpop.f32.mrb[0].mxu0
    %v2307 = vadd.f32 %v2090, %v2306
    %2308 = vmatprep.mubr.f32.mxu0 0.0
    %2309 = vmatmul.mubr.f32.gmra.mrb[0].mxu0 %v2072
    %v2310 = vpop.f32.mrb[0].mxu0
    %v2311 = vadd.f32 %v2086, %v2310
    %v2312 = vpop.f32.mrb[0].mxu0
    %v2313 = vadd.f32 %v2090, %v2312
    %2314 = vmatprep.mubr.f32.mxu0 0.0
    %2315 = vmatmul.mubr.f32.gmra.mrb[0].mxu0 %v2073
    %v2316 = vpop.f32.mrb[0].mxu0
    %v2317 = vadd.f32 %v2086, %v2316
    %v2318 = vpop.f32.mrb[0].mxu0
    %v2319 = vadd.f32 %v2090, %v2318
    %2320 = vdwg.mxu0
    %2321 = vst [vmem:[#allocation3] sm:$0xff] %v2162
    %2322 = vst [vmem:[#allocation3 + $0x8] sm:$0xff] %v2164
    %2323 = vst [vmem:[#allocation3 + $0x10] sm:$0xff] %v2275
    %2324 = vst [vmem:[#allocation3 + $0x18] sm:$0xff] %v2277
    %2325 = vst [vmem:[#allocation3 + $0x20] sm:$0xff] %v2168
    %2326 = vst [vmem:[#allocation3 + $0x28] sm:$0xff] %v2170
    %2327 = vst [vmem:[#allocation3 + $0x30] sm:$0xff] %v2281
    %2328 = vst [vmem:[#allocation3 + $0x38] sm:$0xff] %v2283
    %2329 = vst [vmem:[#allocation3 + $0x40] sm:$0xff] %v2174
    %2330 = vst [vmem:[#allocation3 + $0x48] sm:$0xff] %v2176
    %2331 = vst [vmem:[#allocation3 + $0x50] sm:$0xff] %v2287
    %2332 = vst [vmem:[#allocation3 + $0x58] sm:$0xff] %v2289
    %2333 = vst [vmem:[#allocation3 + $0x60] sm:$0xff] %v2180
    %2334 = vst [vmem:[#allocation3 + $0x68] sm:$0xff] %v2182
    %2335 = vst [vmem:[#allocation3 + $0x70] sm:$0xff] %v2293
    %2336 = vst [vmem:[#allocation3 + $0x78] sm:$0xff] %v2295
    %2337 = vst [vmem:[#allocation3 + $0x80] sm:$0xff] %v2186
    %2338 = vst [vmem:[#allocation3 + $0x88] sm:$0xff] %v2188
    %2339 = vst [vmem:[#allocation3 + $0x90] sm:$0xff] %v2299
    %2340 = vst [vmem:[#allocation3 + $0x98] sm:$0xff] %v2301
    %2341 = vst [vmem:[#allocation3 + $0xa0] sm:$0xff] %v2192
    %2342 = vst [vmem:[#allocation3 + $0xa8] sm:$0xff] %v2194
    %2343 = vst [vmem:[#allocation3 + $0xb0] sm:$0xff] %v2305
    %2344 = vst [vmem:[#allocation3 + $0xb8] sm:$0xff] %v2307
    %2345 = vst [vmem:[#allocation3 + $0xc0] sm:$0xff] %v2198
    %2346 = vst [vmem:[#allocation3 + $0xc8] sm:$0xff] %v2200
    %2347 = vst [vmem:[#allocation3 + $0xd0] sm:$0xff] %v2311
    %2348 = vst [vmem:[#allocation3 + $0xd8] sm:$0xff] %v2313
    %2349 = vst [vmem:[#allocation3 + $0xe0] sm:$0xff] %v2204
    %2350 = vst [vmem:[#allocation3 + $0xe8] sm:$0xff] %v2206
    %2351 = vst [vmem:[#allocation3 + $0xf0] sm:$0xff] %v2317
    %2352 = vst [vmem:[#allocation3 + $0xf8] sm:$0xff] %v2319
    %2353 = vst [vmem:[#allocation4] sm:$0xff] 0.0
    %2354 = vst [vmem:[#allocation5] sm:$0xff] 0.0
    %v2355 = vld [vmem:[%s476] sm:$0xff]
    %v2356 = vld [vmem:[%s476 + $0x8] sm:$0xff]
    %v2357 = vld [vmem:[%s476 + $0x10] sm:$0xff]
    %v2358 = vld [vmem:[%s476 + $0x18] sm:$0xff]
    %v2359 = vld [vmem:[#allocation4] sm:$0xff]
    %2360 = vmatprep.subr.mxu0 %v2002
    %2361 = vmatpush1.msra.mxu0 %v2001
    %2362 = vmatprep.subr.mxu0 %v2006
    %2363 = vmatpush1.msra.mxu0 %v2005
    %2364 = vmatprep.subr.mxu0 %v2010
    %2365 = vmatpush1.msra.mxu0 %v2009
    %2366 = vmatprep.subr.mxu0 %v2014
    %2367 = vmatpush1.msra.mxu0 %v2013
    %2368 = vmatprep.subr.mxu0 %v2018
    %2369 = vmatpush1.msra.mxu0 %v2017
    %2370 = vmatprep.subr.mxu0 %v2022
    %2371 = vmatpush1.msra.mxu0 %v2021
    %2372 = vmatprep.subr.mxu0 %v2026
    %2373 = vmatpush1.msra.mxu0 %v2025
    %2374 = vmatprep.subr.mxu0 %v2030
    %2375 = vmatpush1.msra.mxu0 %v2029
    %2376 = vmatprep.subr.mxu0 %v2034
    %2377 = vmatpush1.msra.mxu0 %v2033
    %2378 = vmatprep.subr.mxu0 %v2038
    %2379 = vmatpush1.msra.mxu0 %v2037
    %2380 = vmatprep.subr.mxu0 %v2042
    %2381 = vmatpush1.msra.mxu0 %v2041
    %2382 = vmatprep.subr.mxu0 %v2046
    %2383 = vmatpush1.msra.mxu0 %v2045
    %2384 = vmatprep.subr.mxu0 %v2050
    %2385 = vmatpush1.msra.mxu0 %v2049
    %2386 = vmatprep.subr.mxu0 %v2054
    %2387 = vmatpush1.msra.mxu0 %v2053
    %2388 = vmatprep.subr.mxu0 %v2058
    %2389 = vmatpush1.msra.mxu0 %v2057
    %2390 = vmatprep.subr.mxu0 %v2062
    %2391 = vmatpush1.msra.mxu0 %v2061
    %2392 = vmatprep.subr.mxu0 0.0
    %2393 = vmatpush1.msra.mxu0 0.0
    %2394 = vmatprep.subr.mxu0 0.0
    %2395 = vmatpush1.msra.mxu0 0.0
    %2396 = vmatprep.subr.mxu0 0.0
    %2397 = vmatpush1.msra.mxu0 0.0
    %2398 = vmatprep.subr.mxu0 0.0
    %2399 = vmatpush1.msra.mxu0 0.0
    %2400 = vmatprep.subr.mxu0 0.0
    %2401 = vmatpush1.msra.mxu0 0.0
    %2402 = vmatprep.subr.mxu0 0.0
    %2403 = vmatpush1.msra.mxu0 0.0
    %2404 = vmatprep.subr.mxu0 0.0
    %2405 = vmatpush1.msra.mxu0 0.0
    %2406 = vmatprep.subr.mxu0 0.0
    %2407 = vmatpush1.msra.mxu0 0.0
    %2408 = vmatprep.subr.mxu0 0.0
    %2409 = vmatpush1.msra.mxu0 0.0
    %2410 = vmatprep.subr.mxu0 0.0
    %2411 = vmatpush1.msra.mxu0 0.0
    %2412 = vmatprep.subr.mxu0 0.0
    %2413 = vmatpush1.msra.mxu0 0.0
    %2414 = vmatprep.subr.mxu0 0.0
    %2415 = vmatpush1.msra.mxu0 0.0
    %2416 = vmatprep.subr.mxu0 0.0
    %2417 = vmatpush1.msra.mxu0 0.0
    %2418 = vmatprep.subr.mxu0 0.0
    %2419 = vmatpush1.msra.mxu0 0.0
    %2420 = vmatprep.subr.mxu0 0.0
    %2421 = vmatpush1.msra.mxu0 0.0
    %2422 = vmatprep.subr.mxu0 0.0
    %2423 = vmatpush1.msra.mxu0 0.0
    %2424 = vmatprep.mubr.f32.mxu0 0.0
    %2425 = vmatmul.mubr.f32.gmra.mrb[0].mxu0 %v2359
    %v2426 = vpop.f32.mrb[0].mxu0
    %v2427 = vadd.f32 0.0, %v2426
    %v2428 = vpop.f32.mrb[0].mxu0
    %v2429 = vadd.f32 0.0, %v2428
    %2430 = vdwg.mxu0
    %2431 = vmatprep.subr.mxu0 %v2004
    %2432 = vmatpush1.msra.mxu0 %v2003
    %2433 = vmatprep.subr.mxu0 %v2008
    %2434 = vmatpush1.msra.mxu0 %v2007
    %2435 = vmatprep.subr.mxu0 %v2012
    %2436 = vmatpush1.msra.mxu0 %v2011
    %2437 = vmatprep.subr.mxu0 %v2016
    %2438 = vmatpush1.msra.mxu0 %v2015
    %2439 = vmatprep.subr.mxu0 %v2020
    %2440 = vmatpush1.msra.mxu0 %v2019
    %2441 = vmatprep.subr.mxu0 %v2024
    %2442 = vmatpush1.msra.mxu0 %v2023
    %2443 = vmatprep.subr.mxu0 %v2028
    %2444 = vmatpush1.msra.mxu0 %v2027
    %2445 = vmatprep.subr.mxu0 %v2032
    %2446 = vmatpush1.msra.mxu0 %v2031
    %2447 = vmatprep.subr.mxu0 %v2036
    %2448 = vmatpush1.msra.mxu0 %v2035
    %2449 = vmatprep.subr.mxu0 %v2040
    %2450 = vmatpush1.msra.mxu0 %v2039
    %2451 = vmatprep.subr.mxu0 %v2044
    %2452 = vmatpush1.msra.mxu0 %v2043
    %2453 = vmatprep.subr.mxu0 %v2048
    %2454 = vmatpush1.msra.mxu0 %v2047
    %2455 = vmatprep.subr.mxu0 %v2052
    %2456 = vmatpush1.msra.mxu0 %v2051
    %2457 = vmatprep.subr.mxu0 %v2056
    %2458 = vmatpush1.msra.mxu0 %v2055
    %2459 = vmatprep.subr.mxu0 %v2060
    %2460 = vmatpush1.msra.mxu0 %v2059
    %2461 = vmatprep.subr.mxu0 %v2064
    %2462 = vmatpush1.msra.mxu0 %v2063
    %2463 = vmatprep.subr.mxu0 0.0
    %2464 = vmatpush1.msra.mxu0 0.0
    %2465 = vmatprep.subr.mxu0 0.0
    %2466 = vmatpush1.msra.mxu0 0.0
    %2467 = vmatprep.subr.mxu0 0.0
    %2468 = vmatpush1.msra.mxu0 0.0
    %2469 = vmatprep.subr.mxu0 0.0
    %2470 = vmatpush1.msra.mxu0 0.0
    %2471 = vmatprep.subr.mxu0 0.0
    %2472 = vmatpush1.msra.mxu0 0.0
    %2473 = vmatprep.subr.mxu0 0.0
    %2474 = vmatpush1.msra.mxu0 0.0
    %2475 = vmatprep.subr.mxu0 0.0
    %2476 = vmatpush1.msra.mxu0 0.0
    %2477 = vmatprep.subr.mxu0 0.0
    %2478 = vmatpush1.msra.mxu0 0.0
    %2479 = vmatprep.subr.mxu0 0.0
    %2480 = vmatpush1.msra.mxu0 0.0
    %2481 = vmatprep.subr.mxu0 0.0
    %2482 = vmatpush1.msra.mxu0 0.0
    %2483 = vmatprep.subr.mxu0 0.0
    %2484 = vmatpush1.msra.mxu0 0.0
    %2485 = vmatprep.subr.mxu0 0.0
    %2486 = vmatpush1.msra.mxu0 0.0
    %2487 = vmatprep.subr.mxu0 0.0
    %2488 = vmatpush1.msra.mxu0 0.0
    %2489 = vmatprep.subr.mxu0 0.0
    %2490 = vmatpush1.msra.mxu0 0.0
    %2491 = vmatprep.subr.mxu0 0.0
    %2492 = vmatpush1.msra.mxu0 0.0
    %2493 = vmatprep.subr.mxu0 0.0
    %2494 = vmatpush1.msra.mxu0 0.0
    %2495 = vmatprep.mubr.f32.mxu0 0.0
    %2496 = vmatmul.mubr.f32.gmra.mrb[0].mxu0 %v2359
    %v2497 = vpop.f32.mrb[0].mxu0
    %v2498 = vadd.f32 0.0, %v2497
    %v2499 = vpop.f32.mrb[0].mxu0
    %v2500 = vadd.f32 0.0, %v2499
    %2501 = vdwg.mxu0
    %v2502 = vadd.f32 %v2355, %v2427
    %v2503 = vadd.f32 %v2356, %v2429
    %v2504 = vadd.f32 %v2357, %v2498
    %v2505 = vadd.f32 %v2358, %v2500
    %v2506 = vxor.u32 %v2502, 2147483648
    %v2507 = vxor.u32 %v2503, 2147483648
    %v2508 = vxor.u32 %v2504, 2147483648
    %v2509 = vmul.f32 %v2506, 1.442695
    %v2510 = vpow.pop %v2509
    %v2511 = vmul.f32 %v2507, 1.442695
    %v2512 = vpow.pop %v2511
    %v2513 = vmul.f32 %v2508, 1.442695
    %v2514 = vpow.pop %v2513
    %v2515 = vadd.f32 %v2510, 1.0
    %v2516 = vadd.f32 %v2512, 1.0
    %v2517 = vadd.f32 %v2514, 1.0
    %v2518 = vrcp.pop %v2515
    %v2519 = vmul.f32 1.0, %v2518
    %v2520 = vrcp.pop %v2516
    %v2521 = vmul.f32 1.0, %v2520
    %v2522 = vrcp.pop %v2517
    %v2523 = vmul.f32 1.0, %v2522
    %v2524 = vtanh.pop %v2505
    %v2525 = vld [vmem:[#allocation5] sm:$0xff]
    %v2526 = vmul.f32 %v2521, %v2525
    %v2527 = vmul.f32 %v2519, %v2524
    %v2528 = vadd.f32 %v2526, %v2527
    %v2529 = vtanh.pop %v2528
    %v2530 = vmul.f32 %v2523, %v2529
    %2531 = vst [vmem:[#allocation5] sm:$0xff] %v2528
    %2532 = vst [vmem:[#allocation4] sm:$0xff] %v2530
    %v2533 = vld [vmem:[%s658] sm:$0xff]
    %v2534 = vld [vmem:[%s658 + $0x8] sm:$0xff]
    %v2535 = vld [vmem:[%s658 + $0x10] sm:$0xff]
    %v2536 = vld [vmem:[%s658 + $0x18] sm:$0xff]
    %v2537 = vld [vmem:[#allocation4] sm:$0xff]
    %2538 = vmatprep.subr.mxu0 %v2002
    %2539 = vmatpush1.msra.mxu0 %v2001
    %2540 = vmatprep.subr.mxu0 %v2006
    %2541 = vmatpush1.msra.mxu0 %v2005
    %2542 = vmatprep.subr.mxu0 %v2010
    %2543 = vmatpush1.msra.mxu0 %v2009
    %2544 = vmatprep.subr.mxu0 %v2014
    %2545 = vmatpush1.msra.mxu0 %v2013
    %2546 = vmatprep.subr.mxu0 %v2018
    %2547 = vmatpush1.msra.mxu0 %v2017
    %2548 = vmatprep.subr.mxu0 %v2022
    %2549 = vmatpush1.msra.mxu0 %v2021
    %2550 = vmatprep.subr.mxu0 %v2026
    %2551 = vmatpush1.msra.mxu0 %v2025
    %2552 = vmatprep.subr.mxu0 %v2030
    %2553 = vmatpush1.msra.mxu0 %v2029
    %2554 = vmatprep.subr.mxu0 %v2034
    %2555 = vmatpush1.msra.mxu0 %v2033
    %2556 = vmatprep.subr.mxu0 %v2038
    %2557 = vmatpush1.msra.mxu0 %v2037
    %2558 = vmatprep.subr.mxu0 %v2042
    %2559 = vmatpush1.msra.mxu0 %v2041
    %2560 = vmatprep.subr.mxu0 %v2046
    %2561 = vmatpush1.msra.mxu0 %v2045
    %2562 = vmatprep.subr.mxu0 %v2050
    %2563 = vmatpush1.msra.mxu0 %v2049
    %2564 = vmatprep.subr.mxu0 %v2054
    %2565 = vmatpush1.msra.mxu0 %v2053
    %2566 = vmatprep.subr.mxu0 %v2058
    %2567 = vmatpush1.msra.mxu0 %v2057
    %2568 = vmatprep.subr.mxu0 %v2062
    %2569 = vmatpush1.msra.mxu0 %v2061
    %2570 = vmatprep.subr.mxu0 0.0
    %2571 = vmatpush1.msra.mxu0 0.0
    %2572 = vmatprep.subr.mxu0 0.0
    %2573 = vmatpush1.msra.mxu0 0.0
    %2574 = vmatprep.subr.mxu0 0.0
    %2575 = vmatpush1.msra.mxu0 0.0
    %2576 = vmatprep.subr.mxu0 0.0
    %2577 = vmatpush1.msra.mxu0 0.0
    %2578 = vmatprep.subr.mxu0 0.0
    %2579 = vmatpush1.msra.mxu0 0.0
    %2580 = vmatprep.subr.mxu0 0.0
    %2581 = vmatpush1.msra.mxu0 0.0
    %2582 = vmatprep.subr.mxu0 0.0
    %2583 = vmatpush1.msra.mxu0 0.0
    %2584 = vmatprep.subr.mxu0 0.0
    %2585 = vmatpush1.msra.mxu0 0.0
    %2586 = vmatprep.subr.mxu0 0.0
    %2587 = vmatpush1.msra.mxu0 0.0
    %2588 = vmatprep.subr.mxu0 0.0
    %2589 = vmatpush1.msra.mxu0 0.0
    %2590 = vmatprep.subr.mxu0 0.0
    %2591 = vmatpush1.msra.mxu0 0.0
    %2592 = vmatprep.subr.mxu0 0.0
    %2593 = vmatpush1.msra.mxu0 0.0
    %2594 = vmatprep.subr.mxu0 0.0
    %2595 = vmatpush1.msra.mxu0 0.0
    %2596 = vmatprep.subr.mxu0 0.0
    %2597 = vmatpush1.msra.mxu0 0.0
    %2598 = vmatprep.subr.mxu0 0.0
    %2599 = vmatpush1.msra.mxu0 0.0
    %2600 = vmatprep.subr.mxu0 0.0
    %2601 = vmatpush1.msra.mxu0 0.0
    %2602 = vmatprep.mubr.f32.mxu0 0.0
    %2603 = vmatmul.mubr.f32.gmra.mrb[0].mxu0 %v2537
    %v2604 = vpop.f32.mrb[0].mxu0
    %v2605 = vadd.f32 0.0, %v2604
    %v2606 = vpop.f32.mrb[0].mxu0
    %v2607 = vadd.f32 0.0, %v2606
    %2608 = vdwg.mxu0
    %2609 = vmatprep.subr.mxu0 %v2004
    %2610 = vmatpush1.msra.mxu0 %v2003
    %2611 = vmatprep.subr.mxu0 %v2008
    %2612 = vmatpush1.msra.mxu0 %v2007
    %2613 = vmatprep.subr.mxu0 %v2012
    %2614 = vmatpush1.msra.mxu0 %v2011
    %2615 = vmatprep.subr.mxu0 %v2016
    %2616 = vmatpush1.msra.mxu0 %v2015
    %2617 = vmatprep.subr.mxu0 %v2020
    %2618 = vmatpush1.msra.mxu0 %v2019
    %2619 = vmatprep.subr.mxu0 %v2024
    %2620 = vmatpush1.msra.mxu0 %v2023
    %2621 = vmatprep.subr.mxu0 %v2028
    %2622 = vmatpush1.msra.mxu0 %v2027
    %2623 = vmatprep.subr.mxu0 %v2032
    %2624 = vmatpush1.msra.mxu0 %v2031
    %2625 = vmatprep.subr.mxu0 %v2036
    %2626 = vmatpush1.msra.mxu0 %v2035
    %2627 = vmatprep.subr.mxu0 %v2040
    %2628 = vmatpush1.msra.mxu0 %v2039
    %2629 = vmatprep.subr.mxu0 %v2044
    %2630 = vmatpush1.msra.mxu0 %v2043
    %2631 = vmatprep.subr.mxu0 %v2048
    %2632 = vmatpush1.msra.mxu0 %v2047
    %2633 = vmatprep.subr.mxu0 %v2052
    %2634 = vmatpush1.msra.mxu0 %v2051
    %2635 = vmatprep.subr.mxu0 %v2056
    %2636 = vmatpush1.msra.mxu0 %v2055
    %2637 = vmatprep.subr.mxu0 %v2060
    %2638 = vmatpush1.msra.mxu0 %v2059
    %2639 = vmatprep.subr.mxu0 %v2064
    %2640 = vmatpush1.msra.mxu0 %v2063
    %2641 = vmatprep.subr.mxu0 0.0
    %2642 = vmatpush1.msra.mxu0 0.0
    %2643 = vmatprep.subr.mxu0 0.0
    %2644 = vmatpush1.msra.mxu0 0.0
    %2645 = vmatprep.subr.mxu0 0.0
    %2646 = vmatpush1.msra.mxu0 0.0
    %2647 = vmatprep.subr.mxu0 0.0
    %2648 = vmatpush1.msra.mxu0 0.0
    %2649 = vmatprep.subr.mxu0 0.0
    %2650 = vmatpush1.msra.mxu0 0.0
    %2651 = vmatprep.subr.mxu0 0.0
    %2652 = vmatpush1.msra.mxu0 0.0
    %2653 = vmatprep.subr.mxu0 0.0
    %2654 = vmatpush1.msra.mxu0 0.0
    %2655 = vmatprep.subr.mxu0 0.0
    %2656 = vmatpush1.msra.mxu0 0.0
    %2657 = vmatprep.subr.mxu0 0.0
    %2658 = vmatpush1.msra.mxu0 0.0
    %2659 = vmatprep.subr.mxu0 0.0
    %2660 = vmatpush1.msra.mxu0 0.0
    %2661 = vmatprep.subr.mxu0 0.0
    %2662 = vmatpush1.msra.mxu0 0.0
    %2663 = vmatprep.subr.mxu0 0.0
    %2664 = vmatpush1.msra.mxu0 0.0
    %2665 = vmatprep.subr.mxu0 0.0
    %2666 = vmatpush1.msra.mxu0 0.0
    %2667 = vmatprep.subr.mxu0 0.0
    %2668 = vmatpush1.msra.mxu0 0.0
    %2669 = vmatprep.subr.mxu0 0.0
    %2670 = vmatpush1.msra.mxu0 0.0
    %2671 = vmatprep.subr.mxu0 0.0
    %2672 = vmatpush1.msra.mxu0 0.0
    %2673 = vmatprep.mubr.f32.mxu0 0.0
    %2674 = vmatmul.mubr.f32.gmra.mrb[0].mxu0 %v2537
    %v2675 = vpop.f32.mrb[0].mxu0
    %v2676 = vadd.f32 0.0, %v2675
    %v2677 = vpop.f32.mrb[0].mxu0
    %v2678 = vadd.f32 0.0, %v2677
    %2679 = vdwg.mxu0
    %v2680 = vadd.f32 %v2533, %v2605
    %v2681 = vadd.f32 %v2534, %v2607
    %v2682 = vadd.f32 %v2535, %v2676
    %v2683 = vadd.f32 %v2536, %v2678
    %v2684 = vxor.u32 %v2680, 2147483648
    %v2685 = vxor.u32 %v2681, 2147483648
    %v2686 = vxor.u32 %v2682, 2147483648
    %v2687 = vmul.f32 %v2684, 1.442695
    %v2688 = vpow.pop %v2687
    %v2689 = vmul.f32 %v2685, 1.442695
    %v2690 = vpow.pop %v2689
    %v2691 = vmul.f32 %v2686, 1.442695
    %v2692 = vpow.pop %v2691
    %v2693 = vadd.f32 %v2688, 1.0
    %v2694 = vadd.f32 %v2690, 1.0
    %v2695 = vadd.f32 %v2692, 1.0
    %v2696 = vrcp.pop %v2693
    %v2697 = vmul.f32 1.0, %v2696
    %v2698 = vrcp.pop %v2694
    %v2699 = vmul.f32 1.0, %v2698
    %v2700 = vrcp.pop %v2695
    %v2701 = vmul.f32 1.0, %v2700
    %v2702 = vtanh.pop %v2683
    %v2703 = vld [vmem:[#allocation5] sm:$0xff]
    %v2704 = vmul.f32 %v2699, %v2703
    %v2705 = vmul.f32 %v2697, %v2702
    %v2706 = vadd.f32 %v2704, %v2705
    %v2707 = vtanh.pop %v2706
    %v2708 = vmul.f32 %v2701, %v2707
    %2709 = vst [vmem:[#allocation5] sm:$0xff] %v2706
    %2710 = vst [vmem:[#allocation4] sm:$0xff] %v2708
    %v2711 = vld [vmem:[%s841] sm:$0xff]
    %v2712 = vld [vmem:[%s841 + $0x8] sm:$0xff]
    %v2713 = vld [vmem:[%s841 + $0x10] sm:$0xff]
    %v2714 = vld [vmem:[%s841 + $0x18] sm:$0xff]
    %v2715 = vld [vmem:[#allocation4] sm:$0xff]
    %2716 = vmatprep.subr.mxu0 %v2002
    %2717 = vmatpush1.msra.mxu0 %v2001
    %2718 = vmatprep.subr.mxu0 %v2006
    %2719 = vmatpush1.msra.mxu0 %v2005
    %2720 = vmatprep.subr.mxu0 %v2010
    %2721 = vmatpush1.msra.mxu0 %v2009
    %2722 = vmatprep.subr.mxu0 %v2014
    %2723 = vmatpush1.msra.mxu0 %v2013
    %2724 = vmatprep.subr.mxu0 %v2018
    %2725 = vmatpush1.msra.mxu0 %v2017
    %2726 = vmatprep.subr.mxu0 %v2022
    %2727 = vmatpush1.msra.mxu0 %v2021
    %2728 = vmatprep.subr.mxu0 %v2026
    %2729 = vmatpush1.msra.mxu0 %v2025
    %2730 = vmatprep.subr.mxu0 %v2030
    %2731 = vmatpush1.msra.mxu0 %v2029
    %2732 = vmatprep.subr.mxu0 %v2034
    %2733 = vmatpush1.msra.mxu0 %v2033
    %2734 = vmatprep.subr.mxu0 %v2038
    %2735 = vmatpush1.msra.mxu0 %v2037
    %2736 = vmatprep.subr.mxu0 %v2042
    %2737 = vmatpush1.msra.mxu0 %v2041
    %2738 = vmatprep.subr.mxu0 %v2046
    %2739 = vmatpush1.msra.mxu0 %v2045
    %2740 = vmatprep.subr.mxu0 %v2050
    %2741 = vmatpush1.msra.mxu0 %v2049
    %2742 = vmatprep.subr.mxu0 %v2054
    %2743 = vmatpush1.msra.mxu0 %v2053
    %2744 = vmatprep.subr.mxu0 %v2058
    %2745 = vmatpush1.msra.mxu0 %v2057
    %2746 = vmatprep.subr.mxu0 %v2062
    %2747 = vmatpush1.msra.mxu0 %v2061
    %2748 = vmatprep.subr.mxu0 0.0
    %2749 = vmatpush1.msra.mxu0 0.0
    %2750 = vmatprep.subr.mxu0 0.0
    %2751 = vmatpush1.msra.mxu0 0.0
    %2752 = vmatprep.subr.mxu0 0.0
    %2753 = vmatpush1.msra.mxu0 0.0
    %2754 = vmatprep.subr.mxu0 0.0
    %2755 = vmatpush1.msra.mxu0 0.0
    %2756 = vmatprep.subr.mxu0 0.0
    %2757 = vmatpush1.msra.mxu0 0.0
    %2758 = vmatprep.subr.mxu0 0.0
    %2759 = vmatpush1.msra.mxu0 0.0
    %2760 = vmatprep.subr.mxu0 0.0
    %2761 = vmatpush1.msra.mxu0 0.0
    %2762 = vmatprep.subr.mxu0 0.0
    %2763 = vmatpush1.msra.mxu0 0.0
    %2764 = vmatprep.subr.mxu0 0.0
    %2765 = vmatpush1.msra.mxu0 0.0
    %2766 = vmatprep.subr.mxu0 0.0
    %2767 = vmatpush1.msra.mxu0 0.0
    %2768 = vmatprep.subr.mxu0 0.0
    %2769 = vmatpush1.msra.mxu0 0.0
    %2770 = vmatprep.subr.mxu0 0.0
    %2771 = vmatpush1.msra.mxu0 0.0
    %2772 = vmatprep.subr.mxu0 0.0
    %2773 = vmatpush1.msra.mxu0 0.0
    %2774 = vmatprep.subr.mxu0 0.0
    %2775 = vmatpush1.msra.mxu0 0.0
    %2776 = vmatprep.subr.mxu0 0.0
    %2777 = vmatpush1.msra.mxu0 0.0
    %2778 = vmatprep.subr.mxu0 0.0
    %2779 = vmatpush1.msra.mxu0 0.0
    %2780 = vmatprep.mubr.f32.mxu0 0.0
    %2781 = vmatmul.mubr.f32.gmra.mrb[0].mxu0 %v2715
    %v2782 = vpop.f32.mrb[0].mxu0
    %v2783 = vadd.f32 0.0, %v2782
    %v2784 = vpop.f32.mrb[0].mxu0
    %v2785 = vadd.f32 0.0, %v2784
    %2786 = vdwg.mxu0
    %2787 = vmatprep.subr.mxu0 %v2004
    %2788 = vmatpush1.msra.mxu0 %v2003
    %2789 = vmatprep.subr.mxu0 %v2008
    %2790 = vmatpush1.msra.mxu0 %v2007
    %2791 = vmatprep.subr.mxu0 %v2012
    %2792 = vmatpush1.msra.mxu0 %v2011
    %2793 = vmatprep.subr.mxu0 %v2016
    %2794 = vmatpush1.msra.mxu0 %v2015
    %2795 = vmatprep.subr.mxu0 %v2020
    %2796 = vmatpush1.msra.mxu0 %v2019
    %2797 = vmatprep.subr.mxu0 %v2024
    %2798 = vmatpush1.msra.mxu0 %v2023
    %2799 = vmatprep.subr.mxu0 %v2028
    %2800 = vmatpush1.msra.mxu0 %v2027
    %2801 = vmatprep.subr.mxu0 %v2032
    %2802 = vmatpush1.msra.mxu0 %v2031
    %2803 = vmatprep.subr.mxu0 %v2036
    %2804 = vmatpush1.msra.mxu0 %v2035
    %2805 = vmatprep.subr.mxu0 %v2040
    %2806 = vmatpush1.msra.mxu0 %v2039
    %2807 = vmatprep.subr.mxu0 %v2044
    %2808 = vmatpush1.msra.mxu0 %v2043
    %2809 = vmatprep.subr.mxu0 %v2048
    %2810 = vmatpush1.msra.mxu0 %v2047
    %2811 = vmatprep.subr.mxu0 %v2052
    %2812 = vmatpush1.msra.mxu0 %v2051
    %2813 = vmatprep.subr.mxu0 %v2056
    %2814 = vmatpush1.msra.mxu0 %v2055
    %2815 = vmatprep.subr.mxu0 %v2060
    %2816 = vmatpush1.msra.mxu0 %v2059
    %2817 = vmatprep.subr.mxu0 %v2064
    %2818 = vmatpush1.msra.mxu0 %v2063
    %2819 = vmatprep.subr.mxu0 0.0
    %2820 = vmatpush1.msra.mxu0 0.0
    %2821 = vmatprep.subr.mxu0 0.0
    %2822 = vmatpush1.msra.mxu0 0.0
    %2823 = vmatprep.subr.mxu0 0.0
    %2824 = vmatpush1.msra.mxu0 0.0
    %2825 = vmatprep.subr.mxu0 0.0
    %2826 = vmatpush1.msra.mxu0 0.0
    %2827 = vmatprep.subr.mxu0 0.0
    %2828 = vmatpush1.msra.mxu0 0.0
    %2829 = vmatprep.subr.mxu0 0.0
    %2830 = vmatpush1.msra.mxu0 0.0
    %2831 = vmatprep.subr.mxu0 0.0
    %2832 = vmatpush1.msra.mxu0 0.0
    %2833 = vmatprep.subr.mxu0 0.0
    %2834 = vmatpush1.msra.mxu0 0.0
    %2835 = vmatprep.subr.mxu0 0.0
    %2836 = vmatpush1.msra.mxu0 0.0
    %2837 = vmatprep.subr.mxu0 0.0
    %2838 = vmatpush1.msra.mxu0 0.0
    %2839 = vmatprep.subr.mxu0 0.0
    %2840 = vmatpush1.msra.mxu0 0.0
    %2841 = vmatprep.subr.mxu0 0.0
    %2842 = vmatpush1.msra.mxu0 0.0
    %2843 = vmatprep.subr.mxu0 0.0
    %2844 = vmatpush1.msra.mxu0 0.0
    %2845 = vmatprep.subr.mxu0 0.0
    %2846 = vmatpush1.msra.mxu0 0.0
    %2847 = vmatprep.subr.mxu0 0.0
    %2848 = vmatpush1.msra.mxu0 0.0
    %2849 = vmatprep.subr.mxu0 0.0
    %2850 = vmatpush1.msra.mxu0 0.0
    %2851 = vmatprep.mubr.f32.mxu0 0.0
    %2852 = vmatmul.mubr.f32.gmra.mrb[0].mxu0 %v2715
    %v2853 = vpop.f32.mrb[0].mxu0
    %v2854 = vadd.f32 0.0, %v2853
    %v2855 = vpop.f32.mrb[0].mxu0
    %v2856 = vadd.f32 0.0, %v2855
    %2857 = vdwg.mxu0
    %v2858 = vadd.f32 %v2711, %v2783
    %v2859 = vadd.f32 %v2712, %v2785
    %v2860 = vadd.f32 %v2713, %v2854
    %v2861 = vadd.f32 %v2714, %v2856
    %v2862 = vxor.u32 %v2858, 2147483648
    %v2863 = vxor.u32 %v2859, 2147483648
    %v2864 = vxor.u32 %v2860, 2147483648
    %v2865 = vmul.f32 %v2862, 1.442695
    %v2866 = vpow.pop %v2865
    %v2867 = vmul.f32 %v2863, 1.442695
    %v2868 = vpow.pop %v2867
    %v2869 = vmul.f32 %v2864, 1.442695
    %v2870 = vpow.pop %v2869
    %v2871 = vadd.f32 %v2866, 1.0
    %v2872 = vadd.f32 %v2868, 1.0
    %v2873 = vadd.f32 %v2870, 1.0
    %v2874 = vrcp.pop %v2871
    %v2875 = vmul.f32 1.0, %v2874
    %v2876 = vrcp.pop %v2872
    %v2877 = vmul.f32 1.0, %v2876
    %v2878 = vrcp.pop %v2873
    %v2879 = vmul.f32 1.0, %v2878
    %v2880 = vtanh.pop %v2861
    %v2881 = vld [vmem:[#allocation5] sm:$0xff]
    %v2882 = vmul.f32 %v2877, %v2881
    %v2883 = vmul.f32 %v2875, %v2880
    %v2884 = vadd.f32 %v2882, %v2883
    %v2885 = vtanh.pop %v2884
    %v2886 = vmul.f32 %v2879, %v2885
    %2887 = vst [vmem:[#allocation5] sm:$0xff] %v2884
    %2888 = vst [vmem:[#allocation4] sm:$0xff] %v2886
    %v2889 = vld [vmem:[%s1024] sm:$0xff]
    %v2890 = vld [vmem:[%s1024 + $0x8] sm:$0xff]
    %v2891 = vld [vmem:[%s1024 + $0x10] sm:$0xff]
    %v2892 = vld [vmem:[%s1024 + $0x18] sm:$0xff]
    %v2893 = vld [vmem:[#allocation4] sm:$0xff]
    %2894 = vmatprep.subr.mxu0 %v2002
    %2895 = vmatpush1.msra.mxu0 %v2001
    %2896 = vmatprep.subr.mxu0 %v2006
    %2897 = vmatpush1.msra.mxu0 %v2005
    %2898 = vmatprep.subr.mxu0 %v2010
    %2899 = vmatpush1.msra.mxu0 %v2009
    %2900 = vmatprep.subr.mxu0 %v2014
    %2901 = vmatpush1.msra.mxu0 %v2013
    %2902 = vmatprep.subr.mxu0 %v2018
    %2903 = vmatpush1.msra.mxu0 %v2017
    %2904 = vmatprep.subr.mxu0 %v2022
    %2905 = vmatpush1.msra.mxu0 %v2021
    %2906 = vmatprep.subr.mxu0 %v2026
    %2907 = vmatpush1.msra.mxu0 %v2025
    %2908 = vmatprep.subr.mxu0 %v2030
    %2909 = vmatpush1.msra.mxu0 %v2029
    %2910 = vmatprep.subr.mxu0 %v2034
    %2911 = vmatpush1.msra.mxu0 %v2033
    %2912 = vmatprep.subr.mxu0 %v2038
    %2913 = vmatpush1.msra.mxu0 %v2037
    %2914 = vmatprep.subr.mxu0 %v2042
    %2915 = vmatpush1.msra.mxu0 %v2041
    %2916 = vmatprep.subr.mxu0 %v2046
    %2917 = vmatpush1.msra.mxu0 %v2045
    %2918 = vmatprep.subr.mxu0 %v2050
    %2919 = vmatpush1.msra.mxu0 %v2049
    %2920 = vmatprep.subr.mxu0 %v2054
    %2921 = vmatpush1.msra.mxu0 %v2053
    %2922 = vmatprep.subr.mxu0 %v2058
    %2923 = vmatpush1.msra.mxu0 %v2057
    %2924 = vmatprep.subr.mxu0 %v2062
    %2925 = vmatpush1.msra.mxu0 %v2061
    %2926 = vmatprep.subr.mxu0 0.0
    %2927 = vmatpush1.msra.mxu0 0.0
    %2928 = vmatprep.subr.mxu0 0.0
    %2929 = vmatpush1.msra.mxu0 0.0
    %2930 = vmatprep.subr.mxu0 0.0
    %2931 = vmatpush1.msra.mxu0 0.0
    %2932 = vmatprep.subr.mxu0 0.0
    %2933 = vmatpush1.msra.mxu0 0.0
    %2934 = vmatprep.subr.mxu0 0.0
    %2935 = vmatpush1.msra.mxu0 0.0
    %2936 = vmatprep.subr.mxu0 0.0
    %2937 = vmatpush1.msra.mxu0 0.0
    %2938 = vmatprep.subr.mxu0 0.0
    %2939 = vmatpush1.msra.mxu0 0.0
    %2940 = vmatprep.subr.mxu0 0.0
    %2941 = vmatpush1.msra.mxu0 0.0
    %2942 = vmatprep.subr.mxu0 0.0
    %2943 = vmatpush1.msra.mxu0 0.0
    %2944 = vmatprep.subr.mxu0 0.0
    %2945 = vmatpush1.msra.mxu0 0.0
    %2946 = vmatprep.subr.mxu0 0.0
    %2947 = vmatpush1.msra.mxu0 0.0
    %2948 = vmatprep.subr.mxu0 0.0
    %2949 = vmatpush1.msra.mxu0 0.0
    %2950 = vmatprep.subr.mxu0 0.0
    %2951 = vmatpush1.msra.mxu0 0.0
    %2952 = vmatprep.subr.mxu0 0.0
    %2953 = vmatpush1.msra.mxu0 0.0
    %2954 = vmatprep.subr.mxu0 0.0
    %2955 = vmatpush1.msra.mxu0 0.0
    %2956 = vmatprep.subr.mxu0 0.0
    %2957 = vmatpush1.msra.mxu0 0.0
    %2958 = vmatprep.mubr.f32.mxu0 0.0
    %2959 = vmatmul.mubr.f32.gmra.mrb[0].mxu0 %v2893
    %v2960 = vpop.f32.mrb[0].mxu0
    %v2961 = vadd.f32 0.0, %v2960
    %v2962 = vpop.f32.mrb[0].mxu0
    %v2963 = vadd.f32 0.0, %v2962
    %2964 = vdwg.mxu0
    %2965 = vmatprep.subr.mxu0 %v2004
    %2966 = vmatpush1.msra.mxu0 %v2003
    %2967 = vmatprep.subr.mxu0 %v2008
    %2968 = vmatpush1.msra.mxu0 %v2007
    %2969 = vmatprep.subr.mxu0 %v2012
    %2970 = vmatpush1.msra.mxu0 %v2011
    %2971 = vmatprep.subr.mxu0 %v2016
    %2972 = vmatpush1.msra.mxu0 %v2015
    %2973 = vmatprep.subr.mxu0 %v2020
    %2974 = vmatpush1.msra.mxu0 %v2019
    %2975 = vmatprep.subr.mxu0 %v2024
    %2976 = vmatpush1.msra.mxu0 %v2023
    %2977 = vmatprep.subr.mxu0 %v2028
    %2978 = vmatpush1.msra.mxu0 %v2027
    %2979 = vmatprep.subr.mxu0 %v2032
    %2980 = vmatpush1.msra.mxu0 %v2031
    %2981 = vmatprep.subr.mxu0 %v2036
    %2982 = vmatpush1.msra.mxu0 %v2035
    %2983 = vmatprep.subr.mxu0 %v2040
    %2984 = vmatpush1.msra.mxu0 %v2039
    %2985 = vmatprep.subr.mxu0 %v2044
    %2986 = vmatpush1.msra.mxu0 %v2043
    %2987 = vmatprep.subr.mxu0 %v2048
    %2988 = vmatpush1.msra.mxu0 %v2047
    %2989 = vmatprep.subr.mxu0 %v2052
    %2990 = vmatpush1.msra.mxu0 %v2051
    %2991 = vmatprep.subr.mxu0 %v2056
    %2992 = vmatpush1.msra.mxu0 %v2055
    %2993 = vmatprep.subr.mxu0 %v2060
    %2994 = vmatpush1.msra.mxu0 %v2059
    %2995 = vmatprep.subr.mxu0 %v2064
    %2996 = vmatpush1.msra.mxu0 %v2063
    %2997 = vmatprep.subr.mxu0 0.0
    %2998 = vmatpush1.msra.mxu0 0.0
    %2999 = vmatprep.subr.mxu0 0.0
    %3000 = vmatpush1.msra.mxu0 0.0
    %3001 = vmatprep.subr.mxu0 0.0
    %3002 = vmatpush1.msra.mxu0 0.0
    %3003 = vmatprep.subr.mxu0 0.0
    %3004 = vmatpush1.msra.mxu0 0.0
    %3005 = vmatprep.subr.mxu0 0.0
    %3006 = vmatpush1.msra.mxu0 0.0
    %3007 = vmatprep.subr.mxu0 0.0
    %3008 = vmatpush1.msra.mxu0 0.0
    %3009 = vmatprep.subr.mxu0 0.0
    %3010 = vmatpush1.msra.mxu0 0.0
    %3011 = vmatprep.subr.mxu0 0.0
    %3012 = vmatpush1.msra.mxu0 0.0
    %3013 = vmatprep.subr.mxu0 0.0
    %3014 = vmatpush1.msra.mxu0 0.0
    %3015 = vmatprep.subr.mxu0 0.0
    %3016 = vmatpush1.msra.mxu0 0.0
    %3017 = vmatprep.subr.mxu0 0.0
    %3018 = vmatpush1.msra.mxu0 0.0
    %3019 = vmatprep.subr.mxu0 0.0
    %3020 = vmatpush1.msra.mxu0 0.0
    %3021 = vmatprep.subr.mxu0 0.0
    %3022 = vmatpush1.msra.mxu0 0.0
    %3023 = vmatprep.subr.mxu0 0.0
    %3024 = vmatpush1.msra.mxu0 0.0
    %3025 = vmatprep.subr.mxu0 0.0
    %3026 = vmatpush1.msra.mxu0 0.0
    %3027 = vmatprep.subr.mxu0 0.0
    %3028 = vmatpush1.msra.mxu0 0.0
    %3029 = vmatprep.mubr.f32.mxu0 0.0
    %3030 = vmatmul.mubr.f32.gmra.mrb[0].mxu0 %v2893
    %v3031 = vpop.f32.mrb[0].mxu0
    %v3032 = vadd.f32 0.0, %v3031
    %v3033 = vpop.f32.mrb[0].mxu0
    %v3034 = vadd.f32 0.0, %v3033
    %3035 = vdwg.mxu0
    %v3036 = vadd.f32 %v2889, %v2961
    %v3037 = vadd.f32 %v2890, %v2963
    %v3038 = vadd.f32 %v2891, %v3032
    %v3039 = vadd.f32 %v2892, %v3034
    %v3040 = vxor.u32 %v3036, 2147483648
    %v3041 = vxor.u32 %v3037, 2147483648
    %v3042 = vxor.u32 %v3038, 2147483648
    %v3043 = vmul.f32 %v3040, 1.442695
    %v3044 = vpow.pop %v3043
    %v3045 = vmul.f32 %v3041, 1.442695
    %v3046 = vpow.pop %v3045
    %v3047 = vmul.f32 %v3042, 1.442695
    %v3048 = vpow.pop %v3047
    %v3049 = vadd.f32 %v3044, 1.0
    %v3050 = vadd.f32 %v3046, 1.0
    %v3051 = vadd.f32 %v3048, 1.0
    %v3052 = vrcp.pop %v3049
    %v3053 = vmul.f32 1.0, %v3052
    %v3054 = vrcp.pop %v3050
    %v3055 = vmul.f32 1.0, %v3054
    %v3056 = vrcp.pop %v3051
    %v3057 = vmul.f32 1.0, %v3056
    %v3058 = vtanh.pop %v3039
    %v3059 = vld [vmem:[#allocation5] sm:$0xff]
    %v3060 = vmul.f32 %v3055, %v3059
    %v3061 = vmul.f32 %v3053, %v3058
    %v3062 = vadd.f32 %v3060, %v3061
    %v3063 = vtanh.pop %v3062
    %v3064 = vmul.f32 %v3057, %v3063
    %3065 = vst [vmem:[#allocation5] sm:$0xff] %v3062
    %3066 = vst [vmem:[#allocation4] sm:$0xff] %v3064
    %v3067 = vld [vmem:[%s1207] sm:$0xff]
    %v3068 = vld [vmem:[%s1207 + $0x8] sm:$0xff]
    %v3069 = vld [vmem:[%s1207 + $0x10] sm:$0xff]
    %v3070 = vld [vmem:[%s1207 + $0x18] sm:$0xff]
    %v3071 = vld [vmem:[#allocation4] sm:$0xff]
    %3072 = vmatprep.subr.mxu0 %v2002
    %3073 = vmatpush1.msra.mxu0 %v2001
    %3074 = vmatprep.subr.mxu0 %v2006
    %3075 = vmatpush1.msra.mxu0 %v2005
    %3076 = vmatprep.subr.mxu0 %v2010
    %3077 = vmatpush1.msra.mxu0 %v2009
    %3078 = vmatprep.subr.mxu0 %v2014
    %3079 = vmatpush1.msra.mxu0 %v2013
    %3080 = vmatprep.subr.mxu0 %v2018
    %3081 = vmatpush1.msra.mxu0 %v2017
    %3082 = vmatprep.subr.mxu0 %v2022
    %3083 = vmatpush1.msra.mxu0 %v2021
    %3084 = vmatprep.subr.mxu0 %v2026
    %3085 = vmatpush1.msra.mxu0 %v2025
    %3086 = vmatprep.subr.mxu0 %v2030
    %3087 = vmatpush1.msra.mxu0 %v2029
    %3088 = vmatprep.subr.mxu0 %v2034
    %3089 = vmatpush1.msra.mxu0 %v2033
    %3090 = vmatprep.subr.mxu0 %v2038
    %3091 = vmatpush1.msra.mxu0 %v2037
    %3092 = vmatprep.subr.mxu0 %v2042
    %3093 = vmatpush1.msra.mxu0 %v2041
    %3094 = vmatprep.subr.mxu0 %v2046
    %3095 = vmatpush1.msra.mxu0 %v2045
    %3096 = vmatprep.subr.mxu0 %v2050
    %3097 = vmatpush1.msra.mxu0 %v2049
    %3098 = vmatprep.subr.mxu0 %v2054
    %3099 = vmatpush1.msra.mxu0 %v2053
    %3100 = vmatprep.subr.mxu0 %v2058
    %3101 = vmatpush1.msra.mxu0 %v2057
    %3102 = vmatprep.subr.mxu0 %v2062
    %3103 = vmatpush1.msra.mxu0 %v2061
    %3104 = vmatprep.subr.mxu0 0.0
    %3105 = vmatpush1.msra.mxu0 0.0
    %3106 = vmatprep.subr.mxu0 0.0
    %3107 = vmatpush1.msra.mxu0 0.0
    %3108 = vmatprep.subr.mxu0 0.0
    %3109 = vmatpush1.msra.mxu0 0.0
    %3110 = vmatprep.subr.mxu0 0.0
    %3111 = vmatpush1.msra.mxu0 0.0
    %3112 = vmatprep.subr.mxu0 0.0
    %3113 = vmatpush1.msra.mxu0 0.0
    %3114 = vmatprep.subr.mxu0 0.0
    %3115 = vmatpush1.msra.mxu0 0.0
    %3116 = vmatprep.subr.mxu0 0.0
    %3117 = vmatpush1.msra.mxu0 0.0
    %3118 = vmatprep.subr.mxu0 0.0
    %3119 = vmatpush1.msra.mxu0 0.0
    %3120 = vmatprep.subr.mxu0 0.0
    %3121 = vmatpush1.msra.mxu0 0.0
    %3122 = vmatprep.subr.mxu0 0.0
    %3123 = vmatpush1.msra.mxu0 0.0
    %3124 = vmatprep.subr.mxu0 0.0
    %3125 = vmatpush1.msra.mxu0 0.0
    %3126 = vmatprep.subr.mxu0 0.0
    %3127 = vmatpush1.msra.mxu0 0.0
    %3128 = vmatprep.subr.mxu0 0.0
    %3129 = vmatpush1.msra.mxu0 0.0
    %3130 = vmatprep.subr.mxu0 0.0
    %3131 = vmatpush1.msra.mxu0 0.0
    %3132 = vmatprep.subr.mxu0 0.0
    %3133 = vmatpush1.msra.mxu0 0.0
    %3134 = vmatprep.subr.mxu0 0.0
    %3135 = vmatpush1.msra.mxu0 0.0
    %3136 = vmatprep.mubr.f32.mxu0 0.0
    %3137 = vmatmul.mubr.f32.gmra.mrb[0].mxu0 %v3071
    %v3138 = vpop.f32.mrb[0].mxu0
    %v3139 = vadd.f32 0.0, %v3138
    %v3140 = vpop.f32.mrb[0].mxu0
    %v3141 = vadd.f32 0.0, %v3140
    %3142 = vdwg.mxu0
    %3143 = vmatprep.subr.mxu0 %v2004
    %3144 = vmatpush1.msra.mxu0 %v2003
    %3145 = vmatprep.subr.mxu0 %v2008
    %3146 = vmatpush1.msra.mxu0 %v2007
    %3147 = vmatprep.subr.mxu0 %v2012
    %3148 = vmatpush1.msra.mxu0 %v2011
    %3149 = vmatprep.subr.mxu0 %v2016
    %3150 = vmatpush1.msra.mxu0 %v2015
    %3151 = vmatprep.subr.mxu0 %v2020
    %3152 = vmatpush1.msra.mxu0 %v2019
    %3153 = vmatprep.subr.mxu0 %v2024
    %3154 = vmatpush1.msra.mxu0 %v2023
    %3155 = vmatprep.subr.mxu0 %v2028
    %3156 = vmatpush1.msra.mxu0 %v2027
    %3157 = vmatprep.subr.mxu0 %v2032
    %3158 = vmatpush1.msra.mxu0 %v2031
    %3159 = vmatprep.subr.mxu0 %v2036
    %3160 = vmatpush1.msra.mxu0 %v2035
    %3161 = vmatprep.subr.mxu0 %v2040
    %3162 = vmatpush1.msra.mxu0 %v2039
    %3163 = vmatprep.subr.mxu0 %v2044
    %3164 = vmatpush1.msra.mxu0 %v2043
    %3165 = vmatprep.subr.mxu0 %v2048
    %3166 = vmatpush1.msra.mxu0 %v2047
    %3167 = vmatprep.subr.mxu0 %v2052
    %3168 = vmatpush1.msra.mxu0 %v2051
    %3169 = vmatprep.subr.mxu0 %v2056
    %3170 = vmatpush1.msra.mxu0 %v2055
    %3171 = vmatprep.subr.mxu0 %v2060
    %3172 = vmatpush1.msra.mxu0 %v2059
    %3173 = vmatprep.subr.mxu0 %v2064
    %3174 = vmatpush1.msra.mxu0 %v2063
    %3175 = vmatprep.subr.mxu0 0.0
    %3176 = vmatpush1.msra.mxu0 0.0
    %3177 = vmatprep.subr.mxu0 0.0
    %3178 = vmatpush1.msra.mxu0 0.0
    %3179 = vmatprep.subr.mxu0 0.0
    %3180 = vmatpush1.msra.mxu0 0.0
    %3181 = vmatprep.subr.mxu0 0.0
    %3182 = vmatpush1.msra.mxu0 0.0
    %3183 = vmatprep.subr.mxu0 0.0
    %3184 = vmatpush1.msra.mxu0 0.0
    %3185 = vmatprep.subr.mxu0 0.0
    %3186 = vmatpush1.msra.mxu0 0.0
    %3187 = vmatprep.subr.mxu0 0.0
    %3188 = vmatpush1.msra.mxu0 0.0
    %3189 = vmatprep.subr.mxu0 0.0
    %3190 = vmatpush1.msra.mxu0 0.0
    %3191 = vmatprep.subr.mxu0 0.0
    %3192 = vmatpush1.msra.mxu0 0.0
    %3193 = vmatprep.subr.mxu0 0.0
    %3194 = vmatpush1.msra.mxu0 0.0
    %3195 = vmatprep.subr.mxu0 0.0
    %3196 = vmatpush1.msra.mxu0 0.0
    %3197 = vmatprep.subr.mxu0 0.0
    %3198 = vmatpush1.msra.mxu0 0.0
    %3199 = vmatprep.subr.mxu0 0.0
    %3200 = vmatpush1.msra.mxu0 0.0
    %3201 = vmatprep.subr.mxu0 0.0
    %3202 = vmatpush1.msra.mxu0 0.0
    %3203 = vmatprep.subr.mxu0 0.0
    %3204 = vmatpush1.msra.mxu0 0.0
    %3205 = vmatprep.subr.mxu0 0.0
    %3206 = vmatpush1.msra.mxu0 0.0
    %3207 = vmatprep.mubr.f32.mxu0 0.0
    %3208 = vmatmul.mubr.f32.gmra.mrb[0].mxu0 %v3071
    %v3209 = vpop.f32.mrb[0].mxu0
    %v3210 = vadd.f32 0.0, %v3209
    %v3211 = vpop.f32.mrb[0].mxu0
    %v3212 = vadd.f32 0.0, %v3211
    %3213 = vdwg.mxu0
    %v3214 = vadd.f32 %v3067, %v3139
    %v3215 = vadd.f32 %v3068, %v3141
    %v3216 = vadd.f32 %v3069, %v3210
    %v3217 = vadd.f32 %v3070, %v3212
    %v3218 = vxor.u32 %v3214, 2147483648
    %v3219 = vxor.u32 %v3215, 2147483648
    %v3220 = vxor.u32 %v3216, 2147483648
    %v3221 = vmul.f32 %v3218, 1.442695
    %v3222 = vpow.pop %v3221
    %v3223 = vmul.f32 %v3219, 1.442695
    %v3224 = vpow.pop %v3223
    %v3225 = vmul.f32 %v3220, 1.442695
    %v3226 = vpow.pop %v3225
    %v3227 = vadd.f32 %v3222, 1.0
    %v3228 = vadd.f32 %v3224, 1.0
    %v3229 = vadd.f32 %v3226, 1.0
    %v3230 = vrcp.pop %v3227
    %v3231 = vmul.f32 1.0, %v3230
    %v3232 = vrcp.pop %v3228
    %v3233 = vmul.f32 1.0, %v3232
    %v3234 = vrcp.pop %v3229
    %v3235 = vmul.f32 1.0, %v3234
    %v3236 = vtanh.pop %v3217
    %v3237 = vld [vmem:[#allocation5] sm:$0xff]
    %v3238 = vmul.f32 %v3233, %v3237
    %v3239 = vmul.f32 %v3231, %v3236
    %v3240 = vadd.f32 %v3238, %v3239
    %v3241 = vtanh.pop %v3240
    %v3242 = vmul.f32 %v3235, %v3241
    %3243 = vst [vmem:[#allocation5] sm:$0xff] %v3240
    %3244 = vst [vmem:[#allocation4] sm:$0xff] %v3242
    %v3245 = vld [vmem:[%s1390] sm:$0xff]
    %v3246 = vld [vmem:[%s1390 + $0x8] sm:$0xff]
    %v3247 = vld [vmem:[%s1390 + $0x10] sm:$0xff]
    %v3248 = vld [vmem:[%s1390 + $0x18] sm:$0xff]
    %v3249 = vld [vmem:[#allocation4] sm:$0xff]
    %3250 = vmatprep.subr.mxu0 %v2002
    %3251 = vmatpush1.msra.mxu0 %v2001
    %3252 = vmatprep.subr.mxu0 %v2006
    %3253 = vmatpush1.msra.mxu0 %v2005
    %3254 = vmatprep.subr.mxu0 %v2010
    %3255 = vmatpush1.msra.mxu0 %v2009
    %3256 = vmatprep.subr.mxu0 %v2014
    %3257 = vmatpush1.msra.mxu0 %v2013
    %3258 = vmatprep.subr.mxu0 %v2018
    %3259 = vmatpush1.msra.mxu0 %v2017
    %3260 = vmatprep.subr.mxu0 %v2022
    %3261 = vmatpush1.msra.mxu0 %v2021
    %3262 = vmatprep.subr.mxu0 %v2026
    %3263 = vmatpush1.msra.mxu0 %v2025
    %3264 = vmatprep.subr.mxu0 %v2030
    %3265 = vmatpush1.msra.mxu0 %v2029
    %3266 = vmatprep.subr.mxu0 %v2034
    %3267 = vmatpush1.msra.mxu0 %v2033
    %3268 = vmatprep.subr.mxu0 %v2038
    %3269 = vmatpush1.msra.mxu0 %v2037
    %3270 = vmatprep.subr.mxu0 %v2042
    %3271 = vmatpush1.msra.mxu0 %v2041
    %3272 = vmatprep.subr.mxu0 %v2046
    %3273 = vmatpush1.msra.mxu0 %v2045
    %3274 = vmatprep.subr.mxu0 %v2050
    %3275 = vmatpush1.msra.mxu0 %v2049
    %3276 = vmatprep.subr.mxu0 %v2054
    %3277 = vmatpush1.msra.mxu0 %v2053
    %3278 = vmatprep.subr.mxu0 %v2058
    %3279 = vmatpush1.msra.mxu0 %v2057
    %3280 = vmatprep.subr.mxu0 %v2062
    %3281 = vmatpush1.msra.mxu0 %v2061
    %3282 = vmatprep.subr.mxu0 0.0
    %3283 = vmatpush1.msra.mxu0 0.0
    %3284 = vmatprep.subr.mxu0 0.0
    %3285 = vmatpush1.msra.mxu0 0.0
    %3286 = vmatprep.subr.mxu0 0.0
    %3287 = vmatpush1.msra.mxu0 0.0
    %3288 = vmatprep.subr.mxu0 0.0
    %3289 = vmatpush1.msra.mxu0 0.0
    %3290 = vmatprep.subr.mxu0 0.0
    %3291 = vmatpush1.msra.mxu0 0.0
    %3292 = vmatprep.subr.mxu0 0.0
    %3293 = vmatpush1.msra.mxu0 0.0
    %3294 = vmatprep.subr.mxu0 0.0
    %3295 = vmatpush1.msra.mxu0 0.0
    %3296 = vmatprep.subr.mxu0 0.0
    %3297 = vmatpush1.msra.mxu0 0.0
    %3298 = vmatprep.subr.mxu0 0.0
    %3299 = vmatpush1.msra.mxu0 0.0
    %3300 = vmatprep.subr.mxu0 0.0
    %3301 = vmatpush1.msra.mxu0 0.0
    %3302 = vmatprep.subr.mxu0 0.0
    %3303 = vmatpush1.msra.mxu0 0.0
    %3304 = vmatprep.subr.mxu0 0.0
    %3305 = vmatpush1.msra.mxu0 0.0
    %3306 = vmatprep.subr.mxu0 0.0
    %3307 = vmatpush1.msra.mxu0 0.0
    %3308 = vmatprep.subr.mxu0 0.0
    %3309 = vmatpush1.msra.mxu0 0.0
    %3310 = vmatprep.subr.mxu0 0.0
    %3311 = vmatpush1.msra.mxu0 0.0
    %3312 = vmatprep.subr.mxu0 0.0
    %3313 = vmatpush1.msra.mxu0 0.0
    %3314 = vmatprep.mubr.f32.mxu0 0.0
    %3315 = vmatmul.mubr.f32.gmra.mrb[0].mxu0 %v3249
    %v3316 = vpop.f32.mrb[0].mxu0
    %v3317 = vadd.f32 0.0, %v3316
    %v3318 = vpop.f32.mrb[0].mxu0
    %v3319 = vadd.f32 0.0, %v3318
    %3320 = vdwg.mxu0
    %3321 = vmatprep.subr.mxu0 %v2004
    %3322 = vmatpush1.msra.mxu0 %v2003
    %3323 = vmatprep.subr.mxu0 %v2008
    %3324 = vmatpush1.msra.mxu0 %v2007
    %3325 = vmatprep.subr.mxu0 %v2012
    %3326 = vmatpush1.msra.mxu0 %v2011
    %3327 = vmatprep.subr.mxu0 %v2016
    %3328 = vmatpush1.msra.mxu0 %v2015
    %3329 = vmatprep.subr.mxu0 %v2020
    %3330 = vmatpush1.msra.mxu0 %v2019
    %3331 = vmatprep.subr.mxu0 %v2024
    %3332 = vmatpush1.msra.mxu0 %v2023
    %3333 = vmatprep.subr.mxu0 %v2028
    %3334 = vmatpush1.msra.mxu0 %v2027
    %3335 = vmatprep.subr.mxu0 %v2032
    %3336 = vmatpush1.msra.mxu0 %v2031
    %3337 = vmatprep.subr.mxu0 %v2036
    %3338 = vmatpush1.msra.mxu0 %v2035
    %3339 = vmatprep.subr.mxu0 %v2040
    %3340 = vmatpush1.msra.mxu0 %v2039
    %3341 = vmatprep.subr.mxu0 %v2044
    %3342 = vmatpush1.msra.mxu0 %v2043
    %3343 = vmatprep.subr.mxu0 %v2048
    %3344 = vmatpush1.msra.mxu0 %v2047
    %3345 = vmatprep.subr.mxu0 %v2052
    %3346 = vmatpush1.msra.mxu0 %v2051
    %3347 = vmatprep.subr.mxu0 %v2056
    %3348 = vmatpush1.msra.mxu0 %v2055
    %3349 = vmatprep.subr.mxu0 %v2060
    %3350 = vmatpush1.msra.mxu0 %v2059
    %3351 = vmatprep.subr.mxu0 %v2064
    %3352 = vmatpush1.msra.mxu0 %v2063
    %3353 = vmatprep.subr.mxu0 0.0
    %3354 = vmatpush1.msra.mxu0 0.0
    %3355 = vmatprep.subr.mxu0 0.0
    %3356 = vmatpush1.msra.mxu0 0.0
    %3357 = vmatprep.subr.mxu0 0.0
    %3358 = vmatpush1.msra.mxu0 0.0
    %3359 = vmatprep.subr.mxu0 0.0
    %3360 = vmatpush1.msra.mxu0 0.0
    %3361 = vmatprep.subr.mxu0 0.0
    %3362 = vmatpush1.msra.mxu0 0.0
    %3363 = vmatprep.subr.mxu0 0.0
    %3364 = vmatpush1.msra.mxu0 0.0
    %3365 = vmatprep.subr.mxu0 0.0
    %3366 = vmatpush1.msra.mxu0 0.0
    %3367 = vmatprep.subr.mxu0 0.0
    %3368 = vmatpush1.msra.mxu0 0.0
    %3369 = vmatprep.subr.mxu0 0.0
    %3370 = vmatpush1.msra.mxu0 0.0
    %3371 = vmatprep.subr.mxu0 0.0
    %3372 = vmatpush1.msra.mxu0 0.0
    %3373 = vmatprep.subr.mxu0 0.0
    %3374 = vmatpush1.msra.mxu0 0.0
    %3375 = vmatprep.subr.mxu0 0.0
    %3376 = vmatpush1.msra.mxu0 0.0
    %3377 = vmatprep.subr.mxu0 0.0
    %3378 = vmatpush1.msra.mxu0 0.0
    %3379 = vmatprep.subr.mxu0 0.0
    %3380 = vmatpush1.msra.mxu0 0.0
    %3381 = vmatprep.subr.mxu0 0.0
    %3382 = vmatpush1.msra.mxu0 0.0
    %3383 = vmatprep.subr.mxu0 0.0
    %3384 = vmatpush1.msra.mxu0 0.0
    %3385 = vmatprep.mubr.f32.mxu0 0.0
    %3386 = vmatmul.mubr.f32.gmra.mrb[0].mxu0 %v3249
    %v3387 = vpop.f32.mrb[0].mxu0
    %v3388 = vadd.f32 0.0, %v3387
    %v3389 = vpop.f32.mrb[0].mxu0
    %v3390 = vadd.f32 0.0, %v3389
    %3391 = vdwg.mxu0
    %v3392 = vadd.f32 %v3245, %v3317
    %v3393 = vadd.f32 %v3246, %v3319
    %v3394 = vadd.f32 %v3247, %v3388
    %v3395 = vadd.f32 %v3248, %v3390
    %v3396 = vxor.u32 %v3392, 2147483648
    %v3397 = vxor.u32 %v3393, 2147483648
    %v3398 = vxor.u32 %v3394, 2147483648
    %v3399 = vmul.f32 %v3396, 1.442695
    %v3400 = vpow.pop %v3399
    %v3401 = vmul.f32 %v3397, 1.442695
    %v3402 = vpow.pop %v3401
    %v3403 = vmul.f32 %v3398, 1.442695
    %v3404 = vpow.pop %v3403
    %v3405 = vadd.f32 %v3400, 1.0
    %v3406 = vadd.f32 %v3402, 1.0
    %v3407 = vadd.f32 %v3404, 1.0
    %v3408 = vrcp.pop %v3405
    %v3409 = vmul.f32 1.0, %v3408
    %v3410 = vrcp.pop %v3406
    %v3411 = vmul.f32 1.0, %v3410
    %v3412 = vrcp.pop %v3407
    %v3413 = vmul.f32 1.0, %v3412
    %v3414 = vtanh.pop %v3395
    %v3415 = vld [vmem:[#allocation5] sm:$0xff]
    %v3416 = vmul.f32 %v3411, %v3415
    %v3417 = vmul.f32 %v3409, %v3414
    %v3418 = vadd.f32 %v3416, %v3417
    %v3419 = vtanh.pop %v3418
    %v3420 = vmul.f32 %v3413, %v3419
    %3421 = vst [vmem:[#allocation5] sm:$0xff] %v3418
    %3422 = vst [vmem:[#allocation4] sm:$0xff] %v3420
    %v3423 = vld [vmem:[%s1573] sm:$0xff]
    %v3424 = vld [vmem:[%s1573 + $0x8] sm:$0xff]
    %v3425 = vld [vmem:[%s1573 + $0x10] sm:$0xff]
    %v3426 = vld [vmem:[%s1573 + $0x18] sm:$0xff]
    %v3427 = vld [vmem:[#allocation4] sm:$0xff]
    %3428 = vmatprep.subr.mxu0 %v2002
    %3429 = vmatpush1.msra.mxu0 %v2001
    %3430 = vmatprep.subr.mxu0 %v2006
    %3431 = vmatpush1.msra.mxu0 %v2005
    %3432 = vmatprep.subr.mxu0 %v2010
    %3433 = vmatpush1.msra.mxu0 %v2009
    %3434 = vmatprep.subr.mxu0 %v2014
    %3435 = vmatpush1.msra.mxu0 %v2013
    %3436 = vmatprep.subr.mxu0 %v2018
    %3437 = vmatpush1.msra.mxu0 %v2017
    %3438 = vmatprep.subr.mxu0 %v2022
    %3439 = vmatpush1.msra.mxu0 %v2021
    %3440 = vmatprep.subr.mxu0 %v2026
    %3441 = vmatpush1.msra.mxu0 %v2025
    %3442 = vmatprep.subr.mxu0 %v2030
    %3443 = vmatpush1.msra.mxu0 %v2029
    %3444 = vmatprep.subr.mxu0 %v2034
    %3445 = vmatpush1.msra.mxu0 %v2033
    %3446 = vmatprep.subr.mxu0 %v2038
    %3447 = vmatpush1.msra.mxu0 %v2037
    %3448 = vmatprep.subr.mxu0 %v2042
    %3449 = vmatpush1.msra.mxu0 %v2041
    %3450 = vmatprep.subr.mxu0 %v2046
    %3451 = vmatpush1.msra.mxu0 %v2045
    %3452 = vmatprep.subr.mxu0 %v2050
    %3453 = vmatpush1.msra.mxu0 %v2049
    %3454 = vmatprep.subr.mxu0 %v2054
    %3455 = vmatpush1.msra.mxu0 %v2053
    %3456 = vmatprep.subr.mxu0 %v2058
    %3457 = vmatpush1.msra.mxu0 %v2057
    %3458 = vmatprep.subr.mxu0 %v2062
    %3459 = vmatpush1.msra.mxu0 %v2061
    %3460 = vmatprep.subr.mxu0 0.0
    %3461 = vmatpush1.msra.mxu0 0.0
    %3462 = vmatprep.subr.mxu0 0.0
    %3463 = vmatpush1.msra.mxu0 0.0
    %3464 = vmatprep.subr.mxu0 0.0
    %3465 = vmatpush1.msra.mxu0 0.0
    %3466 = vmatprep.subr.mxu0 0.0
    %3467 = vmatpush1.msra.mxu0 0.0
    %3468 = vmatprep.subr.mxu0 0.0
    %3469 = vmatpush1.msra.mxu0 0.0
    %3470 = vmatprep.subr.mxu0 0.0
    %3471 = vmatpush1.msra.mxu0 0.0
    %3472 = vmatprep.subr.mxu0 0.0
    %3473 = vmatpush1.msra.mxu0 0.0
    %3474 = vmatprep.subr.mxu0 0.0
    %3475 = vmatpush1.msra.mxu0 0.0
    %3476 = vmatprep.subr.mxu0 0.0
    %3477 = vmatpush1.msra.mxu0 0.0
    %3478 = vmatprep.subr.mxu0 0.0
    %3479 = vmatpush1.msra.mxu0 0.0
    %3480 = vmatprep.subr.mxu0 0.0
    %3481 = vmatpush1.msra.mxu0 0.0
    %3482 = vmatprep.subr.mxu0 0.0
    %3483 = vmatpush1.msra.mxu0 0.0
    %3484 = vmatprep.subr.mxu0 0.0
    %3485 = vmatpush1.msra.mxu0 0.0
    %3486 = vmatprep.subr.mxu0 0.0
    %3487 = vmatpush1.msra.mxu0 0.0
    %3488 = vmatprep.subr.mxu0 0.0
    %3489 = vmatpush1.msra.mxu0 0.0
    %3490 = vmatprep.subr.mxu0 0.0
    %3491 = vmatpush1.msra.mxu0 0.0
    %3492 = vmatprep.mubr.f32.mxu0 0.0
    %3493 = vmatmul.mubr.f32.gmra.mrb[0].mxu0 %v3427
    %v3494 = vpop.f32.mrb[0].mxu0
    %v3495 = vadd.f32 0.0, %v3494
    %v3496 = vpop.f32.mrb[0].mxu0
    %v3497 = vadd.f32 0.0, %v3496
    %3498 = vdwg.mxu0
    %3499 = vmatprep.subr.mxu0 %v2004
    %3500 = vmatpush1.msra.mxu0 %v2003
    %3501 = vmatprep.subr.mxu0 %v2008
    %3502 = vmatpush1.msra.mxu0 %v2007
    %3503 = vmatprep.subr.mxu0 %v2012
    %3504 = vmatpush1.msra.mxu0 %v2011
    %3505 = vmatprep.subr.mxu0 %v2016
    %3506 = vmatpush1.msra.mxu0 %v2015
    %3507 = vmatprep.subr.mxu0 %v2020
    %3508 = vmatpush1.msra.mxu0 %v2019
    %3509 = vmatprep.subr.mxu0 %v2024
    %3510 = vmatpush1.msra.mxu0 %v2023
    %3511 = vmatprep.subr.mxu0 %v2028
    %3512 = vmatpush1.msra.mxu0 %v2027
    %3513 = vmatprep.subr.mxu0 %v2032
    %3514 = vmatpush1.msra.mxu0 %v2031
    %3515 = vmatprep.subr.mxu0 %v2036
    %3516 = vmatpush1.msra.mxu0 %v2035
    %3517 = vmatprep.subr.mxu0 %v2040
    %3518 = vmatpush1.msra.mxu0 %v2039
    %3519 = vmatprep.subr.mxu0 %v2044
    %3520 = vmatpush1.msra.mxu0 %v2043
    %3521 = vmatprep.subr.mxu0 %v2048
    %3522 = vmatpush1.msra.mxu0 %v2047
    %3523 = vmatprep.subr.mxu0 %v2052
    %3524 = vmatpush1.msra.mxu0 %v2051
    %3525 = vmatprep.subr.mxu0 %v2056
    %3526 = vmatpush1.msra.mxu0 %v2055
    %3527 = vmatprep.subr.mxu0 %v2060
    %3528 = vmatpush1.msra.mxu0 %v2059
    %3529 = vmatprep.subr.mxu0 %v2064
    %3530 = vmatpush1.msra.mxu0 %v2063
    %3531 = vmatprep.subr.mxu0 0.0
    %3532 = vmatpush1.msra.mxu0 0.0
    %3533 = vmatprep.subr.mxu0 0.0
    %3534 = vmatpush1.msra.mxu0 0.0
    %3535 = vmatprep.subr.mxu0 0.0
    %3536 = vmatpush1.msra.mxu0 0.0
    %3537 = vmatprep.subr.mxu0 0.0
    %3538 = vmatpush1.msra.mxu0 0.0
    %3539 = vmatprep.subr.mxu0 0.0
    %3540 = vmatpush1.msra.mxu0 0.0
    %3541 = vmatprep.subr.mxu0 0.0
    %3542 = vmatpush1.msra.mxu0 0.0
    %3543 = vmatprep.subr.mxu0 0.0
    %3544 = vmatpush1.msra.mxu0 0.0
    %3545 = vmatprep.subr.mxu0 0.0
    %3546 = vmatpush1.msra.mxu0 0.0
    %3547 = vmatprep.subr.mxu0 0.0
    %3548 = vmatpush1.msra.mxu0 0.0
    %3549 = vmatprep.subr.mxu0 0.0
    %3550 = vmatpush1.msra.mxu0 0.0
    %3551 = vmatprep.subr.mxu0 0.0
    %3552 = vmatpush1.msra.mxu0 0.0
    %3553 = vmatprep.subr.mxu0 0.0
    %3554 = vmatpush1.msra.mxu0 0.0
    %3555 = vmatprep.subr.mxu0 0.0
    %3556 = vmatpush1.msra.mxu0 0.0
    %3557 = vmatprep.subr.mxu0 0.0
    %3558 = vmatpush1.msra.mxu0 0.0
    %3559 = vmatprep.subr.mxu0 0.0
    %3560 = vmatpush1.msra.mxu0 0.0
    %3561 = vmatprep.subr.mxu0 0.0
    %3562 = vmatpush1.msra.mxu0 0.0
    %3563 = vmatprep.mubr.f32.mxu0 0.0
    %3564 = vmatmul.mubr.f32.gmra.mrb[0].mxu0 %v3427
    %v3565 = vpop.f32.mrb[0].mxu0
    %v3566 = vadd.f32 0.0, %v3565
    %v3567 = vpop.f32.mrb[0].mxu0
    %v3568 = vadd.f32 0.0, %v3567
    %3569 = vdwg.mxu0
    %v3570 = vadd.f32 %v3423, %v3495
    %v3571 = vadd.f32 %v3424, %v3497
    %v3572 = vadd.f32 %v3425, %v3566
    %v3573 = vadd.f32 %v3426, %v3568
    %v3574 = vxor.u32 %v3570, 2147483648
    %v3575 = vxor.u32 %v3571, 2147483648
    %v3576 = vxor.u32 %v3572, 2147483648
    %v3577 = vmul.f32 %v3574, 1.442695
    %v3578 = vpow.pop %v3577
    %v3579 = vmul.f32 %v3575, 1.442695
    %v3580 = vpow.pop %v3579
    %v3581 = vmul.f32 %v3576, 1.442695
    %v3582 = vpow.pop %v3581
    %v3583 = vadd.f32 %v3578, 1.0
    %v3584 = vadd.f32 %v3580, 1.0
    %v3585 = vadd.f32 %v3582, 1.0
    %v3586 = vrcp.pop %v3583
    %v3587 = vmul.f32 1.0, %v3586
    %v3588 = vrcp.pop %v3584
    %v3589 = vmul.f32 1.0, %v3588
    %v3590 = vrcp.pop %v3585
    %v3591 = vmul.f32 1.0, %v3590
    %v3592 = vtanh.pop %v3573
    %v3593 = vld [vmem:[#allocation5] sm:$0xff]
    %v3594 = vmul.f32 %v3589, %v3593
    %v3595 = vmul.f32 %v3587, %v3592
    %v3596 = vadd.f32 %v3594, %v3595
    %v3597 = vtanh.pop %v3596
    %v3598 = vmul.f32 %v3591, %v3597
    %3599 = vst [vmem:[#allocation5] sm:$0xff] %v3596
    %3600 = vst [vmem:[#allocation4] sm:$0xff] %v3598
    %v3601 = vld [vmem:[%s1756] sm:$0xff]
    %v3602 = vld [vmem:[%s1756 + $0x8] sm:$0xff]
    %v3603 = vld [vmem:[%s1756 + $0x10] sm:$0xff]
    %v3604 = vld [vmem:[%s1756 + $0x18] sm:$0xff]
    %v3605 = vld [vmem:[#allocation4] sm:$0xff]
    %3606 = vmatprep.subr.mxu0 %v2002
    %3607 = vmatpush1.msra.mxu0 %v2001
    %3608 = vmatprep.subr.mxu0 %v2006
    %3609 = vmatpush1.msra.mxu0 %v2005
    %3610 = vmatprep.subr.mxu0 %v2010
    %3611 = vmatpush1.msra.mxu0 %v2009
    %3612 = vmatprep.subr.mxu0 %v2014
    %3613 = vmatpush1.msra.mxu0 %v2013
    %3614 = vmatprep.subr.mxu0 %v2018
    %3615 = vmatpush1.msra.mxu0 %v2017
    %3616 = vmatprep.subr.mxu0 %v2022
    %3617 = vmatpush1.msra.mxu0 %v2021
    %3618 = vmatprep.subr.mxu0 %v2026
    %3619 = vmatpush1.msra.mxu0 %v2025
    %3620 = vmatprep.subr.mxu0 %v2030
    %3621 = vmatpush1.msra.mxu0 %v2029
    %3622 = vmatprep.subr.mxu0 %v2034
    %3623 = vmatpush1.msra.mxu0 %v2033
    %3624 = vmatprep.subr.mxu0 %v2038
    %3625 = vmatpush1.msra.mxu0 %v2037
    %3626 = vmatprep.subr.mxu0 %v2042
    %3627 = vmatpush1.msra.mxu0 %v2041
    %3628 = vmatprep.subr.mxu0 %v2046
    %3629 = vmatpush1.msra.mxu0 %v2045
    %3630 = vmatprep.subr.mxu0 %v2050
    %3631 = vmatpush1.msra.mxu0 %v2049
    %3632 = vmatprep.subr.mxu0 %v2054
    %3633 = vmatpush1.msra.mxu0 %v2053
    %3634 = vmatprep.subr.mxu0 %v2058
    %3635 = vmatpush1.msra.mxu0 %v2057
    %3636 = vmatprep.subr.mxu0 %v2062
    %3637 = vmatpush1.msra.mxu0 %v2061
    %3638 = vmatprep.subr.mxu0 0.0
    %3639 = vmatpush1.msra.mxu0 0.0
    %3640 = vmatprep.subr.mxu0 0.0
    %3641 = vmatpush1.msra.mxu0 0.0
    %3642 = vmatprep.subr.mxu0 0.0
    %3643 = vmatpush1.msra.mxu0 0.0
    %3644 = vmatprep.subr.mxu0 0.0
    %3645 = vmatpush1.msra.mxu0 0.0
    %3646 = vmatprep.subr.mxu0 0.0
    %3647 = vmatpush1.msra.mxu0 0.0
    %3648 = vmatprep.subr.mxu0 0.0
    %3649 = vmatpush1.msra.mxu0 0.0
    %3650 = vmatprep.subr.mxu0 0.0
    %3651 = vmatpush1.msra.mxu0 0.0
    %3652 = vmatprep.subr.mxu0 0.0
    %3653 = vmatpush1.msra.mxu0 0.0
    %3654 = vmatprep.subr.mxu0 0.0
    %3655 = vmatpush1.msra.mxu0 0.0
    %3656 = vmatprep.subr.mxu0 0.0
    %3657 = vmatpush1.msra.mxu0 0.0
    %3658 = vmatprep.subr.mxu0 0.0
    %3659 = vmatpush1.msra.mxu0 0.0
    %3660 = vmatprep.subr.mxu0 0.0
    %3661 = vmatpush1.msra.mxu0 0.0
    %3662 = vmatprep.subr.mxu0 0.0
    %3663 = vmatpush1.msra.mxu0 0.0
    %3664 = vmatprep.subr.mxu0 0.0
    %3665 = vmatpush1.msra.mxu0 0.0
    %3666 = vmatprep.subr.mxu0 0.0
    %3667 = vmatpush1.msra.mxu0 0.0
    %3668 = vmatprep.subr.mxu0 0.0
    %3669 = vmatpush1.msra.mxu0 0.0
    %3670 = vmatprep.mubr.f32.mxu0 0.0
    %3671 = vmatmul.mubr.f32.gmra.mrb[0].mxu0 %v3605
    %v3672 = vpop.f32.mrb[0].mxu0
    %v3673 = vadd.f32 0.0, %v3672
    %v3674 = vpop.f32.mrb[0].mxu0
    %v3675 = vadd.f32 0.0, %v3674
    %3676 = vdwg.mxu0
    %3677 = vmatprep.subr.mxu0 %v2004
    %3678 = vmatpush1.msra.mxu0 %v2003
    %3679 = vmatprep.subr.mxu0 %v2008
    %3680 = vmatpush1.msra.mxu0 %v2007
    %3681 = vmatprep.subr.mxu0 %v2012
    %3682 = vmatpush1.msra.mxu0 %v2011
    %3683 = vmatprep.subr.mxu0 %v2016
    %3684 = vmatpush1.msra.mxu0 %v2015
    %3685 = vmatprep.subr.mxu0 %v2020
    %3686 = vmatpush1.msra.mxu0 %v2019
    %3687 = vmatprep.subr.mxu0 %v2024
    %3688 = vmatpush1.msra.mxu0 %v2023
    %3689 = vmatprep.subr.mxu0 %v2028
    %3690 = vmatpush1.msra.mxu0 %v2027
    %3691 = vmatprep.subr.mxu0 %v2032
    %3692 = vmatpush1.msra.mxu0 %v2031
    %3693 = vmatprep.subr.mxu0 %v2036
    %3694 = vmatpush1.msra.mxu0 %v2035
    %3695 = vmatprep.subr.mxu0 %v2040
    %3696 = vmatpush1.msra.mxu0 %v2039
    %3697 = vmatprep.subr.mxu0 %v2044
    %3698 = vmatpush1.msra.mxu0 %v2043
    %3699 = vmatprep.subr.mxu0 %v2048
    %3700 = vmatpush1.msra.mxu0 %v2047
    %3701 = vmatprep.subr.mxu0 %v2052
    %3702 = vmatpush1.msra.mxu0 %v2051
    %3703 = vmatprep.subr.mxu0 %v2056
    %3704 = vmatpush1.msra.mxu0 %v2055
    %3705 = vmatprep.subr.mxu0 %v2060
    %3706 = vmatpush1.msra.mxu0 %v2059
    %3707 = vmatprep.subr.mxu0 %v2064
    %3708 = vmatpush1.msra.mxu0 %v2063
    %3709 = vmatprep.subr.mxu0 0.0
    %3710 = vmatpush1.msra.mxu0 0.0
    %3711 = vmatprep.subr.mxu0 0.0
    %3712 = vmatpush1.msra.mxu0 0.0
    %3713 = vmatprep.subr.mxu0 0.0
    %3714 = vmatpush1.msra.mxu0 0.0
    %3715 = vmatprep.subr.mxu0 0.0
    %3716 = vmatpush1.msra.mxu0 0.0
    %3717 = vmatprep.subr.mxu0 0.0
    %3718 = vmatpush1.msra.mxu0 0.0
    %3719 = vmatprep.subr.mxu0 0.0
    %3720 = vmatpush1.msra.mxu0 0.0
    %3721 = vmatprep.subr.mxu0 0.0
    %3722 = vmatpush1.msra.mxu0 0.0
    %3723 = vmatprep.subr.mxu0 0.0
    %3724 = vmatpush1.msra.mxu0 0.0
    %3725 = vmatprep.subr.mxu0 0.0
    %3726 = vmatpush1.msra.mxu0 0.0
    %3727 = vmatprep.subr.mxu0 0.0
    %3728 = vmatpush1.msra.mxu0 0.0
    %3729 = vmatprep.subr.mxu0 0.0
    %3730 = vmatpush1.msra.mxu0 0.0
    %3731 = vmatprep.subr.mxu0 0.0
    %3732 = vmatpush1.msra.mxu0 0.0
    %3733 = vmatprep.subr.mxu0 0.0
    %3734 = vmatpush1.msra.mxu0 0.0
    %3735 = vmatprep.subr.mxu0 0.0
    %3736 = vmatpush1.msra.mxu0 0.0
    %3737 = vmatprep.subr.mxu0 0.0
    %3738 = vmatpush1.msra.mxu0 0.0
    %3739 = vmatprep.subr.mxu0 0.0
    %3740 = vmatpush1.msra.mxu0 0.0
    %3741 = vmatprep.mubr.f32.mxu0 0.0
    %3742 = vmatmul.mubr.f32.gmra.mrb[0].mxu0 %v3605
    %v3743 = vpop.f32.mrb[0].mxu0
    %v3744 = vadd.f32 0.0, %v3743
    %v3745 = vpop.f32.mrb[0].mxu0
    %v3746 = vadd.f32 0.0, %v3745
    %3747 = vdwg.mxu0
    %v3748 = vadd.f32 %v3601, %v3673
    %v3749 = vadd.f32 %v3602, %v3675
    %v3750 = vadd.f32 %v3603, %v3744
    %v3751 = vadd.f32 %v3604, %v3746
    %v3752 = vxor.u32 %v3748, 2147483648
    %v3753 = vxor.u32 %v3749, 2147483648
    %v3754 = vxor.u32 %v3750, 2147483648
    %v3755 = vmul.f32 %v3752, 1.442695
    %v3756 = vpow.pop %v3755
    %v3757 = vmul.f32 %v3753, 1.442695
    %v3758 = vpow.pop %v3757
    %v3759 = vmul.f32 %v3754, 1.442695
    %v3760 = vpow.pop %v3759
    %v3761 = vadd.f32 %v3756, 1.0
    %v3762 = vadd.f32 %v3758, 1.0
    %v3763 = vadd.f32 %v3760, 1.0
    %v3764 = vrcp.pop %v3761
    %v3765 = vmul.f32 1.0, %v3764
    %v3766 = vrcp.pop %v3762
    %v3767 = vmul.f32 1.0, %v3766
    %v3768 = vrcp.pop %v3763
    %v3769 = vmul.f32 1.0, %v3768
    %v3770 = vtanh.pop %v3751
    %v3771 = vld [vmem:[#allocation5] sm:$0xff]
    %v3772 = vmul.f32 %v3767, %v3771
    %v3773 = vmul.f32 %v3765, %v3770
    %v3774 = vadd.f32 %v3772, %v3773
    %v3775 = vtanh.pop %v3774
    %v3776 = vmul.f32 %v3769, %v3775
    %3777 = vst [vmem:[#allocation5] sm:$0xff] %v3774
    %3778 = vst [vmem:[#allocation4] sm:$0xff] %v3776
    %v3779 = vld [vmem:[#allocation4] sm:$0xff]
    %v3780 = vld [vmem:[#allocation11] sm:$0xff]
    %v3781 = vld [vmem:[#allocation11 + $0x8] sm:$0xff]
    %v3782 = vld [vmem:[#allocation11 + $0x10] sm:$0xff]
    %v3783 = vld [vmem:[#allocation11 + $0x18] sm:$0xff]
    %v3784 = vld [vmem:[#allocation11 + $0x20] sm:$0xff]
    %v3785 = vld [vmem:[#allocation11 + $0x28] sm:$0xff]
    %v3786 = vld [vmem:[#allocation11 + $0x30] sm:$0xff]
    %v3787 = vld [vmem:[#allocation11 + $0x38] sm:$0xff]
    %v3788 = vld [vmem:[#allocation11 + $0x40] sm:$0xff]
    %v3789 = vld [vmem:[#allocation11 + $0x48] sm:$0xff]
    %v3790 = vld [vmem:[#allocation11 + $0x50] sm:$0xff]
    %v3791 = vld [vmem:[#allocation11 + $0x58] sm:$0xff]
    %v3792 = vld [vmem:[#allocation11 + $0x60] sm:$0xff]
    %v3793 = vld [vmem:[#allocation11 + $0x68] sm:$0xff]
    %v3794 = vld [vmem:[#allocation11 + $0x70] sm:$0xff]
    %v3795 = vld [vmem:[#allocation11 + $0x78] sm:$0xff]
    %v3796 = vld [vmem:[%s8] sm:$0x1]
    %v3798 = vlaneseq
    %v3799 = vshrl.u32 %v3798, 7
    %v3800 = vsub.s32 0, %v3799
    %v3801 = vrot.slane %v3796, %v3800
    %3803 = vmatprep.subr.mxu0 0.0
    %3804 = vmatpush1.msra.mxu0 %v3780
    %3805 = vmatprep.subr.mxu0 0.0
    %3806 = vmatpush1.msra.mxu0 %v3781
    %3807 = vmatprep.subr.mxu0 0.0
    %3808 = vmatpush1.msra.mxu0 %v3782
    %3809 = vmatprep.subr.mxu0 0.0
    %3810 = vmatpush1.msra.mxu0 %v3783
    %3811 = vmatprep.subr.mxu0 0.0
    %3812 = vmatpush1.msra.mxu0 %v3784
    %3813 = vmatprep.subr.mxu0 0.0
    %3814 = vmatpush1.msra.mxu0 %v3785
    %3815 = vmatprep.subr.mxu0 0.0
    %3816 = vmatpush1.msra.mxu0 %v3786
    %3817 = vmatprep.subr.mxu0 0.0
    %3818 = vmatpush1.msra.mxu0 %v3787
    %3819 = vmatprep.subr.mxu0 0.0
    %3820 = vmatpush1.msra.mxu0 %v3788
    %3821 = vmatprep.subr.mxu0 0.0
    %3822 = vmatpush1.msra.mxu0 %v3789
    %3823 = vmatprep.subr.mxu0 0.0
    %3824 = vmatpush1.msra.mxu0 %v3790
    %3825 = vmatprep.subr.mxu0 0.0
    %3826 = vmatpush1.msra.mxu0 %v3791
    %3827 = vmatprep.subr.mxu0 0.0
    %3828 = vmatpush1.msra.mxu0 %v3792
    %3829 = vmatprep.subr.mxu0 0.0
    %3830 = vmatpush1.msra.mxu0 %v3793
    %3831 = vmatprep.subr.mxu0 0.0
    %3832 = vmatpush1.msra.mxu0 %v3794
    %3833 = vmatprep.subr.mxu0 0.0
    %3834 = vmatpush1.msra.mxu0 %v3795
    %3835 = vmatprep.subr.mxu0 0.0
    %3836 = vmatpush1.msra.mxu0 0.0
    %3837 = vmatprep.subr.mxu0 0.0
    %3838 = vmatpush1.msra.mxu0 0.0
    %3839 = vmatprep.subr.mxu0 0.0
    %3840 = vmatpush1.msra.mxu0 0.0
    %3841 = vmatprep.subr.mxu0 0.0
    %3842 = vmatpush1.msra.mxu0 0.0
    %3843 = vmatprep.subr.mxu0 0.0
    %3844 = vmatpush1.msra.mxu0 0.0
    %3845 = vmatprep.subr.mxu0 0.0
    %3846 = vmatpush1.msra.mxu0 0.0
    %3847 = vmatprep.subr.mxu0 0.0
    %3848 = vmatpush1.msra.mxu0 0.0
    %3849 = vmatprep.subr.mxu0 0.0
    %3850 = vmatpush1.msra.mxu0 0.0
    %3851 = vmatprep.subr.mxu0 0.0
    %3852 = vmatpush1.msra.mxu0 0.0
    %3853 = vmatprep.subr.mxu0 0.0
    %3854 = vmatpush1.msra.mxu0 0.0
    %3855 = vmatprep.subr.mxu0 0.0
    %3856 = vmatpush1.msra.mxu0 0.0
    %3857 = vmatprep.subr.mxu0 0.0
    %3858 = vmatpush1.msra.mxu0 0.0
    %3859 = vmatprep.subr.mxu0 0.0
    %3860 = vmatpush1.msra.mxu0 0.0
    %3861 = vmatprep.subr.mxu0 0.0
    %3862 = vmatpush1.msra.mxu0 0.0
    %3863 = vmatprep.subr.mxu0 0.0
    %3864 = vmatpush1.msra.mxu0 0.0
    %3865 = vmatprep.subr.mxu0 0.0
    %3866 = vmatpush1.msra.mxu0 0.0
    %3867 = vmatprep.mubr.f32.mxu0 0.0
    %3868 = vmatmul.mubr.f32.gmra.mrb[0].mxu0 %v3779
    %v3869 = vpop.f32.mrb[0].mxu0
    %v3870 = vadd.f32 %v3801, %v3869
    %v3871 = vpop.f32.mrb[0].mxu0
    %3872 = vdwg.mxu0
    %3873 = vst [vmem:[%s9] sm:$0xff] %v3870
    // Predicated region
    $region54: #{lstm_forward.1} parent=1 // pred_check
      _
    $region55: #{lstm_forward.1} parent=1 // pred_check_branch
      %3875 = sbr.rel (0) target = $region57
    $region56: #{lstm_forward.1} parent=1 // pred_region
      _
    $region57: #{lstm_forward.1} parent=1 // pred_fallthru
      _
    // Predicated region
    $region58: #{lstm_forward.1} parent=1 // pred_check
      _
    $region59: #{lstm_forward.1} parent=1 // pred_check_branch
      %3877 = sbr.rel (0) target = $region61
    $region60: #{lstm_forward.1} parent=1 // pred_region
      _
    $region61: #{lstm_forward.1} parent=1 // pred_fallthru
      _
    %3878 = vsyncpa [#allocation7], 1
    %3879 = vsyncpa [#allocation9], 1
    %3880 = vsyncpa [#allocation12], 1

</llo_original>
